<compile_context>
chip_gen: v7x
topology: tpu7x:2x2x1
jax: 0.10.0
libtpu: 0.0.40
codegen_flags: <defaults>
</compile_context>

<pallas_src>
import jax
import jax.numpy as jnp
from jax.experimental import pallas as pl
from jax.experimental.pallas import tpu as pltpu

_VMEM = pl.BlockSpec(memory_space=pltpu.MemorySpace.VMEM)
_K = 5                                                # depthwise kernel size
_H = 64                                               # LSTM hidden size
_CH = ((258, 16), (16, 32), (32, 32), (32, 64))       # (cin, cout) per stage


# ----------------------------------------------------------------------------
# Packed-parameter layout: two flat 2-D buffers -> 2 parameter DMAs.
# Row offsets are static Python ints shared by the host packer and the kernel.
# ----------------------------------------------------------------------------
def _build_layout():
    w_entries, f_entries = [], []                     # bf16 MXU weights / f32 rest
    for i, (cin, cout) in enumerate(_CH):
        w_entries += [(f"pw{i}", cin, cout),          # ConvBlock 1x1 (cin -> cout)
                      (f"pj{i}", cout, cin),          # ConvBlock proj (cout -> cin)
                      (f"enc{i}", cin, cout)]         # encoder 1x1 with folded BN
        f_entries += [(f"dw_w{i}", _K, cin), (f"dw_b{i}", 1, cin),
                      (f"pw_b{i}", 1, cout), (f"pj_b{i}", 1, cin),
                      (f"enc_b{i}", 1, cout)]
    for l in range(2):
        w_entries += [(f"wih{l}", _H, 4 * _H), (f"whh{l}", _H, 4 * _H)]
        f_entries += [(f"b{l}", 1, 4 * _H)]
    f_entries += [("wout", 1, _H), ("bout", 1, 1)]

    def offsets(entries, pad):
        lay, off, width = {}, 0, 0
        for name, r, c in entries:
            lay[name] = (off, r, c)
            off += -(-r // pad) * pad                 # keep row offsets tile-aligned
            width = max(width, c)
        return lay, off, width

    wl, wr, wc = offsets(w_entries, 16)               # bf16: (16, 128) tiles
    fl, fr, fc = offsets(f_entries, 8)                # f32:  (8, 128) tiles
    return wl, wr, wc, fl, fr, fc


(_W_LAYOUT, _W_ROWS, _W_COLS, _F_LAYOUT, _F_ROWS, _F_COLS) = _build_layout()


# ----------------------------------------------------------------------------
# In-kernel building blocks (traced inline into the fused kernel)
# ----------------------------------------------------------------------------
def _conv_block(x, dw_w, dw_b, pw_w, pw_b, pj_w, pj_b):
    """ConvBlock: depthwise conv (valid) -> ReLU -> 1x1 conv -> 1x1 proj -> ReLU.

    x: (B, T, C) f32, channels on lanes.  pw_w/pj_w are bf16.  Returns (B, T-K+1, C).
    """
    B, T, C = x.shape
    K = dw_w.shape[0]
    t_out = T - (K - 1)
    # Depthwise conv: K shifted time windows, K static -> fully unrolled.
    acc = x[:, 0:t_out, :] * dw_w[0:1]
    for k in range(1, K):
        acc = acc + x[:, k:k + t_out, :] * dw_w[k:k + 1]
    h = jnp.maximum(acc + dw_b, 0.0)
    # 1x1 convs as single bf16 MXU matmuls (batch*time folded into rows), f32 acc.
    hf = h.reshape(B * t_out, C).astype(jnp.bfloat16)
    y = jnp.dot(hf, pw_w, preferred_element_type=jnp.float32) + pw_b
    z = jnp.dot(y.astype(jnp.bfloat16), pj_w,
                preferred_element_type=jnp.float32) + pj_b
    return jnp.maximum(z, 0.0).reshape(B, t_out, C)


def _conv1x1_bn_relu(x, w, b):
    """Conv1d(k=1) with BatchNorm1d (eval) pre-folded into (w, b), then ReLU."""
    B, T, C = x.shape
    y = jnp.dot(x.reshape(B * T, C).astype(jnp.bfloat16), w,
                preferred_element_type=jnp.float32) + b
    return jnp.maximum(y, 0.0).reshape(B, T, w.shape[1])


def _lstm_cell(pre, h_prev, c_prev, whh):
    """One fused-gate LSTM step.

    pre: (B, 4H) f32 input-side pre-activation (gate column order i|f|o|g).
    whh: (H, 4H) bf16.  One MXU matmul, one grouped sigmoid, two tanh per step.
    """
    H = _H
    gates = pre + jnp.dot(h_prev.astype(jnp.bfloat16), whh,
                          preferred_element_type=jnp.float32)        # (B, 4H)
    sfo = jax.nn.sigmoid(gates[:, :3 * H])                           # i | f | o
    g_t = jnp.tanh(gates[:, 3 * H:])
    i_t = sfo[:, 0:H]
    f_t = sfo[:, H:2 * H]
    o_t = sfo[:, 2 * H:3 * H]
    c_new = f_t * c_prev + i_t * g_t
    h_new = o_t * jnp.tanh(c_new)
    return h_new, c_new


# ----------------------------------------------------------------------------
# Fused whole-model kernel
# ----------------------------------------------------------------------------
def fused_forward_kernel(x_ref, wq_ref, fp_ref, o_ref, seq_ref):
    # Static carving of the two packed parameter buffers (slices are loads; no
    # per-parameter DMA, no reshape).
    def wq(name):
        off, r, c = _W_LAYOUT[name]
        return wq_ref[off:off + r, 0:c]

    def fp(name):
        off, r, c = _F_LAYOUT[name]
        return fp_ref[off:off + r, 0:c]

    x = x_ref[...]                                   # (B, T0, 258) channels-last

    # ---- first_layer + encoder (Dropout == identity in eval mode) ----
    for i in range(len(_CH)):
        x = _conv_block(x, fp(f"dw_w{i}"), fp(f"dw_b{i}"),
                        wq(f"pw{i}"), fp(f"pw_b{i}"),
                        wq(f"pj{i}"), fp(f"pj_b{i}"))
        x = _conv1x1_bn_relu(x, wq(f"enc{i}"), fp(f"enc_b{i}"))

    # ---- decoder: LSTM(64, 64, 2) -> ReLU -> Conv1d(64, 1, 1) -> Sigmoid ----
    B, Tf, H = x.shape
    H4 = 4 * _H

    # Hoist the recurrent weight loads out of the time loops.
    whh0 = wq("whh0")
    whh1 = wq("whh1")

    # Stage the decoder input time-major via the sequence scratch so both
    # LSTM layers read their hoisted pre-activations as leading-axis blocks
    # inside the serial recurrence (no per-step middle-axis relayout).
    for t in range(Tf):
        seq_ref[t, :, :] = x[:, t, :]
    x_tm = seq_ref[...]                              # (Tf, B, H), time-major

    # Layer-0 input projection hoisted out of the recurrence:
    # one (Tf*B, 64) @ (64, 256) bf16 matmul, f32 accumulate, bias folded in.
    xp0 = (jnp.dot(x_tm.reshape(Tf * B, H).astype(jnp.bfloat16), wq("wih0"),
                   preferred_element_type=jnp.float32) + fp("b0")
           ).reshape(Tf, B, H4)

    # TODO(synk): switch the time loops to lax.fori_loop(..., unroll=k) once
    # the window length grows beyond toy size (keeps vreg pressure flat).
    h = jnp.zeros((B, _H), jnp.float32)
    c = jnp.zeros((B, _H), jnp.float32)
    for t in range(Tf):
        h, c = _lstm_cell(xp0[t], h, c, whh0)
        seq_ref[t, :, :] = h                         # collect h0 sequence

    # Layer-1 input projection hoisted as well (was 4 tiny matmuls per step).
    h0_seq = seq_ref[...]                            # (Tf, B, H)
    xp1 = (jnp.dot(h0_seq.reshape(Tf * B, H).astype(jnp.bfloat16), wq("wih1"),
                   preferred_element_type=jnp.float32) + fp("b1")
           ).reshape(Tf, B, H4)

    h = jnp.zeros((B, _H), jnp.float32)
    c = jnp.zeros((B, _H), jnp.float32)
    for t in range(Tf):
        h, c = _lstm_cell(xp1[t], h, c, whh1)
        seq_ref[t, :, :] = h                         # reuse scratch for h1 sequence

    # ReLU -> Conv1d(64 -> 1, k=1) as a lane reduction -> Sigmoid.
    h_all = jnp.maximum(seq_ref[...], 0.0)                           # (Tf, B, H)
    logits = jnp.sum(h_all * fp("wout"), axis=-1) + fp("bout")       # (Tf, B)
    o_ref[...] = jnp.transpose(jax.nn.sigmoid(logits), (1, 0))       # (B, Tf)


# ----------------------------------------------------------------------------
# Wrapper
# ----------------------------------------------------------------------------
def silero_vad_forward(x, packed_params):
    """x: (B, 258, T) f32 (PyTorch Conv1d layout).  Returns (B, 1, T-16)."""
    w_packed, f_packed = packed_params
    B, _, T0 = x.shape
    shrink = 4 * (_K - 1)
    if T0 <= shrink:
        raise ValueError(f"T0={T0}: four valid k={_K} convs need T0 > {shrink}.")
    t_final = T0 - shrink
    # Layout change done by XLA OUTSIDE the kernel: the input DMA then lands
    # already in the channels-on-lanes compute layout.
    x_tc = jnp.transpose(x, (0, 2, 1))               # (B, T0, 258)
    probs = pl.pallas_call(
        fused_forward_kernel,
        out_shape=jax.ShapeDtypeStruct((B, t_final), jnp.float32),
        in_specs=[_VMEM, _VMEM, _VMEM],              # x + 2 packed param buffers
        out_specs=_VMEM,
        scratch_shapes=[pltpu.VMEM((t_final, B, _H), jnp.float32)],
        # Defaults suffice at this size (<1 MiB of VMEM); for much larger B/T0
        # set pltpu.CompilerParams(vmem_limit_bytes=...) (v5e scoped default is
        # 16 MiB) or tile over B/T.
        # TODO(synk): on v7x shard the batch over the two TensorCores with
        # grid=(2,) + dimension_semantics=("parallel",) (or pl.core_map); kept
        # single-invocation here so the batched recurrence stays optimal on
        # single-core v5e/v6e.
    )(x_tc, w_packed, f_packed)
    return probs[:, None, :]                         # (B, 1, T-16)


# ----------------------------------------------------------------------------
# Deterministic parameter initialization (PyTorch-style layouts and bounds)
# ----------------------------------------------------------------------------
def _uniform(key, shape, fan_in):
    bound = 1.0 / float(fan_in) ** 0.5
    return jax.random.uniform(key, shape, jnp.float32, -bound, bound)


def init_params(key):
    keys = iter(jax.random.split(key, 80))

    def nk():
        return next(keys)

    def conv1d(cin, cout, k):
        fan = cin * k
        return dict(w=_uniform(nk(), (cout, cin, k), fan),
                    b=_uniform(nk(), (cout,), fan))

    def conv_block(cin, cout, k):
        return dict(
            dw=dict(w=_uniform(nk(), (cin, 1, k), k),      # groups=cin -> fan=k
                    b=_uniform(nk(), (cin,), k)),
            pw=conv1d(cin, cout, 1),
            proj=conv1d(cout, cin, 1))

    def bn(c):
        return dict(gamma=jnp.ones((c,), jnp.float32), beta=jnp.zeros((c,), jnp.float32),
                    mean=jnp.zeros((c,), jnp.float32), var=jnp.ones((c,), jnp.float32))

    def lstm_layer(in_dim):
        return dict(w_ih=_uniform(nk(), (4 * _H, in_dim), _H),
                    w_hh=_uniform(nk(), (4 * _H, _H), _H),
                    b_ih=_uniform(nk(), (4 * _H,), _H),
                    b_hh=_uniform(nk(), (4 * _H,), _H))

    p = {}
    for i, (cin, cout) in enumerate(_CH):
        p[f"cb{i}"] = conv_block(cin, cout, _K)
        # NOTE: reference 1x1-conv in_channels adapted to the actual ConvBlock
        # output channel counts (258/16/32/32) to keep the pipeline consistent.
        p[f"enc{i}"] = dict(conv=conv1d(cin, cout, 1), bn=bn(cout))
    p["lstm0"] = lstm_layer(_H)
    p["lstm1"] = lstm_layer(_H)
    p["head"] = conv1d(_H, 1, 1)
    return p


def _prep_lstm(w_ih, w_hh, b_ih, b_hh):
    """PyTorch (4H, in) gate rows [i,f,g,o] -> transposed (in, 4H) with gate
    column order [i,f,o,g] so sigmoid/tanh group cleanly; biases summed."""
    order = (0, 1, 3, 2)

    def cols(w):
        return jnp.concatenate([w[g * _H:(g + 1) * _H, :].T for g in order], axis=1)

    bias = b_ih + b_hh
    b = jnp.concatenate([bias[g * _H:(g + 1) * _H] for g in order])[None, :]
    return cols(w_ih), cols(w_hh), b


def pack_params(p, eps=1e-5):
    """One-time host-side packing into (bf16 MXU-weight buffer, f32 buffer)."""
    wbuf = jnp.zeros((_W_ROWS, _W_COLS), jnp.bfloat16)
    fbuf = jnp.zeros((_F_ROWS, _F_COLS), jnp.float32)

    def put_w(name, arr):
        nonlocal wbuf
        off, r, c = _W_LAYOUT[name]
        wbuf = wbuf.at[off:off + r, 0:c].set(arr.astype(jnp.bfloat16))

    def put_f(name, arr):
        nonlocal fbuf
        off, r, c = _F_LAYOUT[name]
        fbuf = fbuf.at[off:off + r, 0:c].set(arr.astype(jnp.float32))

    for i, (cin, cout) in enumerate(_CH):
        cb = p[f"cb{i}"]
        put_f(f"dw_w{i}", cb["dw"]["w"][:, 0, :].T)          # (K, cin)
        put_f(f"dw_b{i}", cb["dw"]["b"][None, :])
        put_w(f"pw{i}", cb["pw"]["w"][:, :, 0].T)            # (cin, cout)
        put_f(f"pw_b{i}", cb["pw"]["b"][None, :])
        put_w(f"pj{i}", cb["proj"]["w"][:, :, 0].T)          # (cout, cin)
        put_f(f"pj_b{i}", cb["proj"]["b"][None, :])
        enc = p[f"enc{i}"]
        scale = enc["bn"]["gamma"] / jnp.sqrt(enc["bn"]["var"] + eps)
        shift = enc["bn"]["beta"] - enc["bn"]["mean"] * scale
        put_w(f"enc{i}", enc["conv"]["w"][:, :, 0].T * scale[None, :])
        put_f(f"enc_b{i}", (enc["conv"]["b"] * scale + shift)[None, :])

    for l in range(2):
        lp = p[f"lstm{l}"]
        wih, whh, bias = _prep_lstm(lp["w_ih"], lp["w_hh"], lp["b_ih"], lp["b_hh"])
        put_w(f"wih{l}", wih)
        put_w(f"whh{l}", whh)
        put_f(f"b{l}", bias)

    put_f("wout", p["head"]["w"][:, :, 0])                   # (1, 64)
    put_f("bout", p["head"]["b"][None, :])                   # (1, 1)
    return wbuf, fbuf


# ----------------------------------------------------------------------------
if __name__ == "__main__":
    key = jax.random.PRNGKey(0)
    kp, kx = jax.random.split(key)
    params = init_params(kp)
    packed = pack_params(params)          # done once, outside the jit'd forward

    B, C_IN, T0 = 2, 258, 24              # four valid k=5 convs -> final T = 8
    x = jax.random.normal(kx, (B, C_IN, T0), jnp.float32)

    fwd = jax.jit(lambda inp: silero_vad_forward(inp, packed))
    out = jax.block_until_ready(fwd(x))

    assert out.shape == (B, 1, T0 - 16), out.shape
    assert bool(jnp.all(jnp.isfinite(out)))
    assert bool(jnp.all((out >= 0.0) & (out <= 1.0)))   # sigmoid output range
    print("KERNEL_OK")
</pallas_src>

<mosaic_0001>
module attributes {stable_mosaic.version = 11 : i64} {
  func.func @fused_forward_kernel(%arg0: memref<2x24x258xf32, #tpu.memory_space<vmem>>, %arg1: memref<1104x258xbf16, #tpu.memory_space<vmem>>, %arg2: memref<192x258xf32, #tpu.memory_space<vmem>>, %arg3: memref<2x8xf32, #tpu.memory_space<vmem>>, %arg4: memref<8x2x64xf32, #tpu.memory_space<vmem>>) attributes {dimension_semantics = [], scalar_prefetch = 0 : i64, scratch_operands = 1 : i64, tpu.core_type = #tpu.core_type<tc>} {
    %c0 = arith.constant 0 : index
    %c0_0 = arith.constant 0 : index
    %c0_1 = arith.constant 0 : index
    %0 = vector.load %arg0[%c0, %c0_0, %c0_1] : memref<2x24x258xf32, #tpu.memory_space<vmem>>, vector<2x24x258xf32>
    %c0_2 = arith.constant 0 : index
    %c0_3 = arith.constant 0 : index
    %1 = vector.load %arg2[%c0_2, %c0_3] : memref<192x258xf32, #tpu.memory_space<vmem>>, vector<5x258xf32>
    %c8 = arith.constant 8 : index
    %c0_4 = arith.constant 0 : index
    %2 = vector.load %arg2[%c8, %c0_4] : memref<192x258xf32, #tpu.memory_space<vmem>>, vector<1x258xf32>
    %c0_5 = arith.constant 0 : index
    %c0_6 = arith.constant 0 : index
    %3 = vector.load %arg1[%c0_5, %c0_6] : memref<1104x258xbf16, #tpu.memory_space<vmem>>, vector<258x16xbf16>
    %c16 = arith.constant 16 : index
    %c0_7 = arith.constant 0 : index
    %4 = vector.load %arg2[%c16, %c0_7] : memref<192x258xf32, #tpu.memory_space<vmem>>, vector<1x16xf32>
    %c272 = arith.constant 272 : index
    %c0_8 = arith.constant 0 : index
    %5 = vector.load %arg1[%c272, %c0_8] : memref<1104x258xbf16, #tpu.memory_space<vmem>>, vector<16x258xbf16>
    %c24 = arith.constant 24 : index
    %c0_9 = arith.constant 0 : index
    %6 = vector.load %arg2[%c24, %c0_9] : memref<192x258xf32, #tpu.memory_space<vmem>>, vector<1x258xf32>
    %7 = vector.extract_strided_slice %0 {offsets = [0, 0, 0], sizes = [2, 20, 258], strides = [1, 1, 1]} : vector<2x24x258xf32> to vector<2x20x258xf32>
    %8 = vector.extract_strided_slice %1 {offsets = [0, 0], sizes = [1, 258], strides = [1, 1]} : vector<5x258xf32> to vector<1x258xf32>
    %9 = vector.shape_cast %8 : vector<1x258xf32> to vector<1x1x258xf32>
    %10 = vector.broadcast %9 : vector<1x1x258xf32> to vector<2x20x258xf32>
    %11 = arith.mulf %7, %10 : vector<2x20x258xf32>
    %12 = vector.extract_strided_slice %0 {offsets = [0, 1, 0], sizes = [2, 20, 258], strides = [1, 1, 1]} : vector<2x24x258xf32> to vector<2x20x258xf32>
    %13 = vector.extract_strided_slice %1 {offsets = [1, 0], sizes = [1, 258], strides = [1, 1]} : vector<5x258xf32> to vector<1x258xf32>
    %14 = vector.shape_cast %13 : vector<1x258xf32> to vector<1x1x258xf32>
    %15 = vector.broadcast %14 : vector<1x1x258xf32> to vector<2x20x258xf32>
    %16 = arith.mulf %12, %15 : vector<2x20x258xf32>
    %17 = arith.addf %11, %16 : vector<2x20x258xf32>
    %18 = vector.extract_strided_slice %0 {offsets = [0, 2, 0], sizes = [2, 20, 258], strides = [1, 1, 1]} : vector<2x24x258xf32> to vector<2x20x258xf32>
    %19 = vector.extract_strided_slice %1 {offsets = [2, 0], sizes = [1, 258], strides = [1, 1]} : vector<5x258xf32> to vector<1x258xf32>
    %20 = vector.shape_cast %19 : vector<1x258xf32> to vector<1x1x258xf32>
    %21 = vector.broadcast %20 : vector<1x1x258xf32> to vector<2x20x258xf32>
    %22 = arith.mulf %18, %21 : vector<2x20x258xf32>
    %23 = arith.addf %17, %22 : vector<2x20x258xf32>
    %24 = vector.extract_strided_slice %0 {offsets = [0, 3, 0], sizes = [2, 20, 258], strides = [1, 1, 1]} : vector<2x24x258xf32> to vector<2x20x258xf32>
    %25 = vector.extract_strided_slice %1 {offsets = [3, 0], sizes = [1, 258], strides = [1, 1]} : vector<5x258xf32> to vector<1x258xf32>
    %26 = vector.shape_cast %25 : vector<1x258xf32> to vector<1x1x258xf32>
    %27 = vector.broadcast %26 : vector<1x1x258xf32> to vector<2x20x258xf32>
    %28 = arith.mulf %24, %27 : vector<2x20x258xf32>
    %29 = arith.addf %23, %28 : vector<2x20x258xf32>
    %30 = vector.extract_strided_slice %0 {offsets = [0, 4, 0], sizes = [2, 20, 258], strides = [1, 1, 1]} : vector<2x24x258xf32> to vector<2x20x258xf32>
    %31 = vector.extract_strided_slice %1 {offsets = [4, 0], sizes = [1, 258], strides = [1, 1]} : vector<5x258xf32> to vector<1x258xf32>
    %32 = vector.shape_cast %31 : vector<1x258xf32> to vector<1x1x258xf32>
    %33 = vector.broadcast %32 : vector<1x1x258xf32> to vector<2x20x258xf32>
    %34 = arith.mulf %30, %33 : vector<2x20x258xf32>
    %35 = arith.addf %29, %34 : vector<2x20x258xf32>
    %36 = vector.shape_cast %2 : vector<1x258xf32> to vector<1x1x258xf32>
    %37 = vector.broadcast %36 : vector<1x1x258xf32> to vector<2x20x258xf32>
    %38 = arith.addf %35, %37 : vector<2x20x258xf32>
    %cst = arith.constant 0.000000e+00 : f32
    %39 = vector.broadcast %cst : f32 to vector<2x20x258xf32>
    %40 = arith.maximumf %38, %39 : vector<2x20x258xf32>
    %41 = vector.shape_cast %40 : vector<2x20x258xf32> to vector<40x258xf32>
    %42 = arith.truncf %41 : vector<40x258xf32> to vector<40x258xbf16>
    %cst_10 = arith.constant dense<0.000000e+00> : vector<40x16xf32>
    %43 = tpu.matmul %42, %3, %cst_10 {dimension_numbers = #tpu.dot_dimension_numbers<[1], [0], [0], [1], [0, 0, 1, 1], [], []>} : vector<40x258xbf16>, vector<258x16xbf16>, vector<40x16xf32> -> vector<40x16xf32>
    %44 = vector.broadcast %4 : vector<1x16xf32> to vector<40x16xf32>
    %45 = arith.addf %43, %44 : vector<40x16xf32>
    %46 = arith.truncf %45 : vector<40x16xf32> to vector<40x16xbf16>
    %cst_11 = arith.constant dense<0.000000e+00> : vector<40x258xf32>
    %47 = tpu.matmul %46, %5, %cst_11 {dimension_numbers = #tpu.dot_dimension_numbers<[1], [0], [0], [1], [0, 0, 1, 1], [], []>} : vector<40x16xbf16>, vector<16x258xbf16>, vector<40x258xf32> -> vector<40x258xf32>
    %48 = vector.broadcast %6 : vector<1x258xf32> to vector<40x258xf32>
    %49 = arith.addf %47, %48 : vector<40x258xf32>
    %cst_12 = arith.constant 0.000000e+00 : f32
    %50 = vector.broadcast %cst_12 : f32 to vector<40x258xf32>
    %51 = arith.maximumf %49, %50 : vector<40x258xf32>
    %52 = vector.shape_cast %51 : vector<40x258xf32> to vector<2x20x258xf32>
    %c288 = arith.constant 288 : index
    %c0_13 = arith.constant 0 : index
    %53 = vector.load %arg1[%c288, %c0_13] : memref<1104x258xbf16, #tpu.memory_space<vmem>>, vector<258x16xbf16>
    %c32 = arith.constant 32 : index
    %c0_14 = arith.constant 0 : index
    %54 = vector.load %arg2[%c32, %c0_14] : memref<192x258xf32, #tpu.memory_space<vmem>>, vector<1x16xf32>
    %55 = vector.shape_cast %52 : vector<2x20x258xf32> to vector<40x258xf32>
    %56 = arith.truncf %55 : vector<40x258xf32> to vector<40x258xbf16>
    %cst_15 = arith.constant dense<0.000000e+00> : vector<40x16xf32>
    %57 = tpu.matmul %56, %53, %cst_15 {dimension_numbers = #tpu.dot_dimension_numbers<[1], [0], [0], [1], [0, 0, 1, 1], [], []>} : vector<40x258xbf16>, vector<258x16xbf16>, vector<40x16xf32> -> vector<40x16xf32>
    %58 = vector.broadcast %54 : vector<1x16xf32> to vector<40x16xf32>
    %59 = arith.addf %57, %58 : vector<40x16xf32>
    %cst_16 = arith.constant 0.000000e+00 : f32
    %60 = vector.broadcast %cst_16 : f32 to vector<40x16xf32>
    %61 = arith.maximumf %59, %60 : vector<40x16xf32>
    %62 = vector.shape_cast %61 : vector<40x16xf32> to vector<2x20x16xf32>
    %c40 = arith.constant 40 : index
    %c0_17 = arith.constant 0 : index
    %63 = vector.load %arg2[%c40, %c0_17] : memref<192x258xf32, #tpu.memory_space<vmem>>, vector<5x16xf32>
    %c48 = arith.constant 48 : index
    %c0_18 = arith.constant 0 : index
    %64 = vector.load %arg2[%c48, %c0_18] : memref<192x258xf32, #tpu.memory_space<vmem>>, vector<1x16xf32>
    %c560 = arith.constant 560 : index
    %c0_19 = arith.constant 0 : index
    %65 = vector.load %arg1[%c560, %c0_19] : memref<1104x258xbf16, #tpu.memory_space<vmem>>, vector<16x32xbf16>
    %c56 = arith.constant 56 : index
    %c0_20 = arith.constant 0 : index
    %66 = vector.load %arg2[%c56, %c0_20] : memref<192x258xf32, #tpu.memory_space<vmem>>, vector<1x32xf32>
    %c576 = arith.constant 576 : index
    %c0_21 = arith.constant 0 : index
    %67 = vector.load %arg1[%c576, %c0_21] : memref<1104x258xbf16, #tpu.memory_space<vmem>>, vector<32x16xbf16>
    %c64 = arith.constant 64 : index
    %c0_22 = arith.constant 0 : index
    %68 = vector.load %arg2[%c64, %c0_22] : memref<192x258xf32, #tpu.memory_space<vmem>>, vector<1x16xf32>
    %69 = vector.extract_strided_slice %62 {offsets = [0, 0, 0], sizes = [2, 16, 16], strides = [1, 1, 1]} : vector<2x20x16xf32> to vector<2x16x16xf32>
    %70 = vector.extract_strided_slice %63 {offsets = [0, 0], sizes = [1, 16], strides = [1, 1]} : vector<5x16xf32> to vector<1x16xf32>
    %71 = vector.shape_cast %70 : vector<1x16xf32> to vector<1x1x16xf32>
    %72 = vector.broadcast %71 : vector<1x1x16xf32> to vector<2x16x16xf32>
    %73 = arith.mulf %69, %72 : vector<2x16x16xf32>
    %74 = vector.extract_strided_slice %62 {offsets = [0, 1, 0], sizes = [2, 16, 16], strides = [1, 1, 1]} : vector<2x20x16xf32> to vector<2x16x16xf32>
    %75 = vector.extract_strided_slice %63 {offsets = [1, 0], sizes = [1, 16], strides = [1, 1]} : vector<5x16xf32> to vector<1x16xf32>
    %76 = vector.shape_cast %75 : vector<1x16xf32> to vector<1x1x16xf32>
    %77 = vector.broadcast %76 : vector<1x1x16xf32> to vector<2x16x16xf32>
    %78 = arith.mulf %74, %77 : vector<2x16x16xf32>
    %79 = arith.addf %73, %78 : vector<2x16x16xf32>
    %80 = vector.extract_strided_slice %62 {offsets = [0, 2, 0], sizes = [2, 16, 16], strides = [1, 1, 1]} : vector<2x20x16xf32> to vector<2x16x16xf32>
    %81 = vector.extract_strided_slice %63 {offsets = [2, 0], sizes = [1, 16], strides = [1, 1]} : vector<5x16xf32> to vector<1x16xf32>
    %82 = vector.shape_cast %81 : vector<1x16xf32> to vector<1x1x16xf32>
    %83 = vector.broadcast %82 : vector<1x1x16xf32> to vector<2x16x16xf32>
    %84 = arith.mulf %80, %83 : vector<2x16x16xf32>
    %85 = arith.addf %79, %84 : vector<2x16x16xf32>
    %86 = vector.extract_strided_slice %62 {offsets = [0, 3, 0], sizes = [2, 16, 16], strides = [1, 1, 1]} : vector<2x20x16xf32> to vector<2x16x16xf32>
    %87 = vector.extract_strided_slice %63 {offsets = [3, 0], sizes = [1, 16], strides = [1, 1]} : vector<5x16xf32> to vector<1x16xf32>
    %88 = vector.shape_cast %87 : vector<1x16xf32> to vector<1x1x16xf32>
    %89 = vector.broadcast %88 : vector<1x1x16xf32> to vector<2x16x16xf32>
    %90 = arith.mulf %86, %89 : vector<2x16x16xf32>
    %91 = arith.addf %85, %90 : vector<2x16x16xf32>
    %92 = vector.extract_strided_slice %62 {offsets = [0, 4, 0], sizes = [2, 16, 16], strides = [1, 1, 1]} : vector<2x20x16xf32> to vector<2x16x16xf32>
    %93 = vector.extract_strided_slice %63 {offsets = [4, 0], sizes = [1, 16], strides = [1, 1]} : vector<5x16xf32> to vector<1x16xf32>
    %94 = vector.shape_cast %93 : vector<1x16xf32> to vector<1x1x16xf32>
    %95 = vector.broadcast %94 : vector<1x1x16xf32> to vector<2x16x16xf32>
    %96 = arith.mulf %92, %95 : vector<2x16x16xf32>
    %97 = arith.addf %91, %96 : vector<2x16x16xf32>
    %98 = vector.shape_cast %64 : vector<1x16xf32> to vector<1x1x16xf32>
    %99 = vector.broadcast %98 : vector<1x1x16xf32> to vector<2x16x16xf32>
    %100 = arith.addf %97, %99 : vector<2x16x16xf32>
    %cst_23 = arith.constant 0.000000e+00 : f32
    %101 = vector.broadcast %cst_23 : f32 to vector<2x16x16xf32>
    %102 = arith.maximumf %100, %101 : vector<2x16x16xf32>
    %103 = vector.shape_cast %102 : vector<2x16x16xf32> to vector<32x16xf32>
    %104 = arith.truncf %103 : vector<32x16xf32> to vector<32x16xbf16>
    %cst_24 = arith.constant dense<0.000000e+00> : vector<32x32xf32>
    %105 = tpu.matmul %104, %65, %cst_24 {dimension_numbers = #tpu.dot_dimension_numbers<[1], [0], [0], [1], [0, 0, 1, 1], [], []>} : vector<32x16xbf16>, vector<16x32xbf16>, vector<32x32xf32> -> vector<32x32xf32>
    %106 = vector.broadcast %66 : vector<1x32xf32> to vector<32x32xf32>
    %107 = arith.addf %105, %106 : vector<32x32xf32>
    %108 = arith.truncf %107 : vector<32x32xf32> to vector<32x32xbf16>
    %cst_25 = arith.constant dense<0.000000e+00> : vector<32x16xf32>
    %109 = tpu.matmul %108, %67, %cst_25 {dimension_numbers = #tpu.dot_dimension_numbers<[1], [0], [0], [1], [0, 0, 1, 1], [], []>} : vector<32x32xbf16>, vector<32x16xbf16>, vector<32x16xf32> -> vector<32x16xf32>
    %110 = vector.broadcast %68 : vector<1x16xf32> to vector<32x16xf32>
    %111 = arith.addf %109, %110 : vector<32x16xf32>
    %cst_26 = arith.constant 0.000000e+00 : f32
    %112 = vector.broadcast %cst_26 : f32 to vector<32x16xf32>
    %113 = arith.maximumf %111, %112 : vector<32x16xf32>
    %114 = vector.shape_cast %113 : vector<32x16xf32> to vector<2x16x16xf32>
    %c608 = arith.constant 608 : index
    %c0_27 = arith.constant 0 : index
    %115 = vector.load %arg1[%c608, %c0_27] : memref<1104x258xbf16, #tpu.memory_space<vmem>>, vector<16x32xbf16>
    %c72 = arith.constant 72 : index
    %c0_28 = arith.constant 0 : index
    %116 = vector.load %arg2[%c72, %c0_28] : memref<192x258xf32, #tpu.memory_space<vmem>>, vector<1x32xf32>
    %117 = vector.shape_cast %114 : vector<2x16x16xf32> to vector<32x16xf32>
    %118 = arith.truncf %117 : vector<32x16xf32> to vector<32x16xbf16>
    %cst_29 = arith.constant dense<0.000000e+00> : vector<32x32xf32>
    %119 = tpu.matmul %118, %115, %cst_29 {dimension_numbers = #tpu.dot_dimension_numbers<[1], [0], [0], [1], [0, 0, 1, 1], [], []>} : vector<32x16xbf16>, vector<16x32xbf16>, vector<32x32xf32> -> vector<32x32xf32>
    %120 = vector.broadcast %116 : vector<1x32xf32> to vector<32x32xf32>
    %121 = arith.addf %119, %120 : vector<32x32xf32>
    %cst_30 = arith.constant 0.000000e+00 : f32
    %122 = vector.broadcast %cst_30 : f32 to vector<32x32xf32>
    %123 = arith.maximumf %121, %122 : vector<32x32xf32>
    %124 = vector.shape_cast %123 : vector<32x32xf32> to vector<2x16x32xf32>
    %c80 = arith.constant 80 : index
    %c0_31 = arith.constant 0 : index
    %125 = vector.load %arg2[%c80, %c0_31] : memref<192x258xf32, #tpu.memory_space<vmem>>, vector<5x32xf32>
    %c88 = arith.constant 88 : index
    %c0_32 = arith.constant 0 : index
    %126 = vector.load %arg2[%c88, %c0_32] : memref<192x258xf32, #tpu.memory_space<vmem>>, vector<1x32xf32>
    %c624 = arith.constant 624 : index
    %c0_33 = arith.constant 0 : index
    %127 = vector.load %arg1[%c624, %c0_33] : memref<1104x258xbf16, #tpu.memory_space<vmem>>, vector<32x32xbf16>
    %c96 = arith.constant 96 : index
    %c0_34 = arith.constant 0 : index
    %128 = vector.load %arg2[%c96, %c0_34] : memref<192x258xf32, #tpu.memory_space<vmem>>, vector<1x32xf32>
    %c656 = arith.constant 656 : index
    %c0_35 = arith.constant 0 : index
    %129 = vector.load %arg1[%c656, %c0_35] : memref<1104x258xbf16, #tpu.memory_space<vmem>>, vector<32x32xbf16>
    %c104 = arith.constant 104 : index
    %c0_36 = arith.constant 0 : index
    %130 = vector.load %arg2[%c104, %c0_36] : memref<192x258xf32, #tpu.memory_space<vmem>>, vector<1x32xf32>
    %131 = vector.extract_strided_slice %124 {offsets = [0, 0, 0], sizes = [2, 12, 32], strides = [1, 1, 1]} : vector<2x16x32xf32> to vector<2x12x32xf32>
    %132 = vector.extract_strided_slice %125 {offsets = [0, 0], sizes = [1, 32], strides = [1, 1]} : vector<5x32xf32> to vector<1x32xf32>
    %133 = vector.shape_cast %132 : vector<1x32xf32> to vector<1x1x32xf32>
    %134 = vector.broadcast %133 : vector<1x1x32xf32> to vector<2x12x32xf32>
    %135 = arith.mulf %131, %134 : vector<2x12x32xf32>
    %136 = vector.extract_strided_slice %124 {offsets = [0, 1, 0], sizes = [2, 12, 32], strides = [1, 1, 1]} : vector<2x16x32xf32> to vector<2x12x32xf32>
    %137 = vector.extract_strided_slice %125 {offsets = [1, 0], sizes = [1, 32], strides = [1, 1]} : vector<5x32xf32> to vector<1x32xf32>
    %138 = vector.shape_cast %137 : vector<1x32xf32> to vector<1x1x32xf32>
    %139 = vector.broadcast %138 : vector<1x1x32xf32> to vector<2x12x32xf32>
    %140 = arith.mulf %136, %139 : vector<2x12x32xf32>
    %141 = arith.addf %135, %140 : vector<2x12x32xf32>
    %142 = vector.extract_strided_slice %124 {offsets = [0, 2, 0], sizes = [2, 12, 32], strides = [1, 1, 1]} : vector<2x16x32xf32> to vector<2x12x32xf32>
    %143 = vector.extract_strided_slice %125 {offsets = [2, 0], sizes = [1, 32], strides = [1, 1]} : vector<5x32xf32> to vector<1x32xf32>
    %144 = vector.shape_cast %143 : vector<1x32xf32> to vector<1x1x32xf32>
    %145 = vector.broadcast %144 : vector<1x1x32xf32> to vector<2x12x32xf32>
    %146 = arith.mulf %142, %145 : vector<2x12x32xf32>
    %147 = arith.addf %141, %146 : vector<2x12x32xf32>
    %148 = vector.extract_strided_slice %124 {offsets = [0, 3, 0], sizes = [2, 12, 32], strides = [1, 1, 1]} : vector<2x16x32xf32> to vector<2x12x32xf32>
    %149 = vector.extract_strided_slice %125 {offsets = [3, 0], sizes = [1, 32], strides = [1, 1]} : vector<5x32xf32> to vector<1x32xf32>
    %150 = vector.shape_cast %149 : vector<1x32xf32> to vector<1x1x32xf32>
    %151 = vector.broadcast %150 : vector<1x1x32xf32> to vector<2x12x32xf32>
    %152 = arith.mulf %148, %151 : vector<2x12x32xf32>
    %153 = arith.addf %147, %152 : vector<2x12x32xf32>
    %154 = vector.extract_strided_slice %124 {offsets = [0, 4, 0], sizes = [2, 12, 32], strides = [1, 1, 1]} : vector<2x16x32xf32> to vector<2x12x32xf32>
    %155 = vector.extract_strided_slice %125 {offsets = [4, 0], sizes = [1, 32], strides = [1, 1]} : vector<5x32xf32> to vector<1x32xf32>
    %156 = vector.shape_cast %155 : vector<1x32xf32> to vector<1x1x32xf32>
    %157 = vector.broadcast %156 : vector<1x1x32xf32> to vector<2x12x32xf32>
    %158 = arith.mulf %154, %157 : vector<2x12x32xf32>
    %159 = arith.addf %153, %158 : vector<2x12x32xf32>
    %160 = vector.shape_cast %126 : vector<1x32xf32> to vector<1x1x32xf32>
    %161 = vector.broadcast %160 : vector<1x1x32xf32> to vector<2x12x32xf32>
    %162 = arith.addf %159, %161 : vector<2x12x32xf32>
    %cst_37 = arith.constant 0.000000e+00 : f32
    %163 = vector.broadcast %cst_37 : f32 to vector<2x12x32xf32>
    %164 = arith.maximumf %162, %163 : vector<2x12x32xf32>
    %165 = vector.shape_cast %164 : vector<2x12x32xf32> to vector<24x32xf32>
    %166 = arith.truncf %165 : vector<24x32xf32> to vector<24x32xbf16>
    %cst_38 = arith.constant dense<0.000000e+00> : vector<24x32xf32>
    %167 = tpu.matmul %166, %127, %cst_38 {dimension_numbers = #tpu.dot_dimension_numbers<[1], [0], [0], [1], [0, 0, 1, 1], [], []>} : vector<24x32xbf16>, vector<32x32xbf16>, vector<24x32xf32> -> vector<24x32xf32>
    %168 = vector.broadcast %128 : vector<1x32xf32> to vector<24x32xf32>
    %169 = arith.addf %167, %168 : vector<24x32xf32>
    %170 = arith.truncf %169 : vector<24x32xf32> to vector<24x32xbf16>
    %cst_39 = arith.constant dense<0.000000e+00> : vector<24x32xf32>
    %171 = tpu.matmul %170, %129, %cst_39 {dimension_numbers = #tpu.dot_dimension_numbers<[1], [0], [0], [1], [0, 0, 1, 1], [], []>} : vector<24x32xbf16>, vector<32x32xbf16>, vector<24x32xf32> -> vector<24x32xf32>
    %172 = vector.broadcast %130 : vector<1x32xf32> to vector<24x32xf32>
    %173 = arith.addf %171, %172 : vector<24x32xf32>
    %cst_40 = arith.constant 0.000000e+00 : f32
    %174 = vector.broadcast %cst_40 : f32 to vector<24x32xf32>
    %175 = arith.maximumf %173, %174 : vector<24x32xf32>
    %176 = vector.shape_cast %175 : vector<24x32xf32> to vector<2x12x32xf32>
    %c688 = arith.constant 688 : index
    %c0_41 = arith.constant 0 : index
    %177 = vector.load %arg1[%c688, %c0_41] : memref<1104x258xbf16, #tpu.memory_space<vmem>>, vector<32x32xbf16>
    %c112 = arith.constant 112 : index
    %c0_42 = arith.constant 0 : index
    %178 = vector.load %arg2[%c112, %c0_42] : memref<192x258xf32, #tpu.memory_space<vmem>>, vector<1x32xf32>
    %179 = vector.shape_cast %176 : vector<2x12x32xf32> to vector<24x32xf32>
    %180 = arith.truncf %179 : vector<24x32xf32> to vector<24x32xbf16>
    %cst_43 = arith.constant dense<0.000000e+00> : vector<24x32xf32>
    %181 = tpu.matmul %180, %177, %cst_43 {dimension_numbers = #tpu.dot_dimension_numbers<[1], [0], [0], [1], [0, 0, 1, 1], [], []>} : vector<24x32xbf16>, vector<32x32xbf16>, vector<24x32xf32> -> vector<24x32xf32>
    %182 = vector.broadcast %178 : vector<1x32xf32> to vector<24x32xf32>
    %183 = arith.addf %181, %182 : vector<24x32xf32>
    %cst_44 = arith.constant 0.000000e+00 : f32
    %184 = vector.broadcast %cst_44 : f32 to vector<24x32xf32>
    %185 = arith.maximumf %183, %184 : vector<24x32xf32>
    %186 = vector.shape_cast %185 : vector<24x32xf32> to vector<2x12x32xf32>
    %c120 = arith.constant 120 : index
    %c0_45 = arith.constant 0 : index
    %187 = vector.load %arg2[%c120, %c0_45] : memref<192x258xf32, #tpu.memory_space<vmem>>, vector<5x32xf32>
    %c128 = arith.constant 128 : index
    %c0_46 = arith.constant 0 : index
    %188 = vector.load %arg2[%c128, %c0_46] : memref<192x258xf32, #tpu.memory_space<vmem>>, vector<1x32xf32>
    %c720 = arith.constant 720 : index
    %c0_47 = arith.constant 0 : index
    %189 = vector.load %arg1[%c720, %c0_47] : memref<1104x258xbf16, #tpu.memory_space<vmem>>, vector<32x64xbf16>
    %c136 = arith.constant 136 : index
    %c0_48 = arith.constant 0 : index
    %190 = vector.load %arg2[%c136, %c0_48] : memref<192x258xf32, #tpu.memory_space<vmem>>, vector<1x64xf32>
    %c752 = arith.constant 752 : index
    %c0_49 = arith.constant 0 : index
    %191 = vector.load %arg1[%c752, %c0_49] : memref<1104x258xbf16, #tpu.memory_space<vmem>>, vector<64x32xbf16>
    %c144 = arith.constant 144 : index
    %c0_50 = arith.constant 0 : index
    %192 = vector.load %arg2[%c144, %c0_50] : memref<192x258xf32, #tpu.memory_space<vmem>>, vector<1x32xf32>
    %193 = vector.extract_strided_slice %186 {offsets = [0, 0, 0], sizes = [2, 8, 32], strides = [1, 1, 1]} : vector<2x12x32xf32> to vector<2x8x32xf32>
    %194 = vector.extract_strided_slice %187 {offsets = [0, 0], sizes = [1, 32], strides = [1, 1]} : vector<5x32xf32> to vector<1x32xf32>
    %195 = vector.shape_cast %194 : vector<1x32xf32> to vector<1x1x32xf32>
    %196 = vector.broadcast %195 : vector<1x1x32xf32> to vector<2x8x32xf32>
    %197 = arith.mulf %193, %196 : vector<2x8x32xf32>
    %198 = vector.extract_strided_slice %186 {offsets = [0, 1, 0], sizes = [2, 8, 32], strides = [1, 1, 1]} : vector<2x12x32xf32> to vector<2x8x32xf32>
    %199 = vector.extract_strided_slice %187 {offsets = [1, 0], sizes = [1, 32], strides = [1, 1]} : vector<5x32xf32> to vector<1x32xf32>
    %200 = vector.shape_cast %199 : vector<1x32xf32> to vector<1x1x32xf32>
    %201 = vector.broadcast %200 : vector<1x1x32xf32> to vector<2x8x32xf32>
    %202 = arith.mulf %198, %201 : vector<2x8x32xf32>
    %203 = arith.addf %197, %202 : vector<2x8x32xf32>
    %204 = vector.extract_strided_slice %186 {offsets = [0, 2, 0], sizes = [2, 8, 32], strides = [1, 1, 1]} : vector<2x12x32xf32> to vector<2x8x32xf32>
    %205 = vector.extract_strided_slice %187 {offsets = [2, 0], sizes = [1, 32], strides = [1, 1]} : vector<5x32xf32> to vector<1x32xf32>
    %206 = vector.shape_cast %205 : vector<1x32xf32> to vector<1x1x32xf32>
    %207 = vector.broadcast %206 : vector<1x1x32xf32> to vector<2x8x32xf32>
    %208 = arith.mulf %204, %207 : vector<2x8x32xf32>
    %209 = arith.addf %203, %208 : vector<2x8x32xf32>
    %210 = vector.extract_strided_slice %186 {offsets = [0, 3, 0], sizes = [2, 8, 32], strides = [1, 1, 1]} : vector<2x12x32xf32> to vector<2x8x32xf32>
    %211 = vector.extract_strided_slice %187 {offsets = [3, 0], sizes = [1, 32], strides = [1, 1]} : vector<5x32xf32> to vector<1x32xf32>
    %212 = vector.shape_cast %211 : vector<1x32xf32> to vector<1x1x32xf32>
    %213 = vector.broadcast %212 : vector<1x1x32xf32> to vector<2x8x32xf32>
    %214 = arith.mulf %210, %213 : vector<2x8x32xf32>
    %215 = arith.addf %209, %214 : vector<2x8x32xf32>
    %216 = vector.extract_strided_slice %186 {offsets = [0, 4, 0], sizes = [2, 8, 32], strides = [1, 1, 1]} : vector<2x12x32xf32> to vector<2x8x32xf32>
    %217 = vector.extract_strided_slice %187 {offsets = [4, 0], sizes = [1, 32], strides = [1, 1]} : vector<5x32xf32> to vector<1x32xf32>
    %218 = vector.shape_cast %217 : vector<1x32xf32> to vector<1x1x32xf32>
    %219 = vector.broadcast %218 : vector<1x1x32xf32> to vector<2x8x32xf32>
    %220 = arith.mulf %216, %219 : vector<2x8x32xf32>
    %221 = arith.addf %215, %220 : vector<2x8x32xf32>
    %222 = vector.shape_cast %188 : vector<1x32xf32> to vector<1x1x32xf32>
    %223 = vector.broadcast %222 : vector<1x1x32xf32> to vector<2x8x32xf32>
    %224 = arith.addf %221, %223 : vector<2x8x32xf32>
    %cst_51 = arith.constant 0.000000e+00 : f32
    %225 = vector.broadcast %cst_51 : f32 to vector<2x8x32xf32>
    %226 = arith.maximumf %224, %225 : vector<2x8x32xf32>
    %227 = vector.shape_cast %226 : vector<2x8x32xf32> to vector<16x32xf32>
    %228 = arith.truncf %227 : vector<16x32xf32> to vector<16x32xbf16>
    %cst_52 = arith.constant dense<0.000000e+00> : vector<16x64xf32>
    %229 = tpu.matmul %228, %189, %cst_52 {dimension_numbers = #tpu.dot_dimension_numbers<[1], [0], [0], [1], [0, 0, 1, 1], [], []>} : vector<16x32xbf16>, vector<32x64xbf16>, vector<16x64xf32> -> vector<16x64xf32>
    %230 = vector.broadcast %190 : vector<1x64xf32> to vector<16x64xf32>
    %231 = arith.addf %229, %230 : vector<16x64xf32>
    %232 = arith.truncf %231 : vector<16x64xf32> to vector<16x64xbf16>
    %cst_53 = arith.constant dense<0.000000e+00> : vector<16x32xf32>
    %233 = tpu.matmul %232, %191, %cst_53 {dimension_numbers = #tpu.dot_dimension_numbers<[1], [0], [0], [1], [0, 0, 1, 1], [], []>} : vector<16x64xbf16>, vector<64x32xbf16>, vector<16x32xf32> -> vector<16x32xf32>
    %234 = vector.broadcast %192 : vector<1x32xf32> to vector<16x32xf32>
    %235 = arith.addf %233, %234 : vector<16x32xf32>
    %cst_54 = arith.constant 0.000000e+00 : f32
    %236 = vector.broadcast %cst_54 : f32 to vector<16x32xf32>
    %237 = arith.maximumf %235, %236 : vector<16x32xf32>
    %238 = vector.shape_cast %237 : vector<16x32xf32> to vector<2x8x32xf32>
    %c816 = arith.constant 816 : index
    %c0_55 = arith.constant 0 : index
    %239 = vector.load %arg1[%c816, %c0_55] : memref<1104x258xbf16, #tpu.memory_space<vmem>>, vector<32x64xbf16>
    %c152 = arith.constant 152 : index
    %c0_56 = arith.constant 0 : index
    %240 = vector.load %arg2[%c152, %c0_56] : memref<192x258xf32, #tpu.memory_space<vmem>>, vector<1x64xf32>
    %241 = vector.shape_cast %238 : vector<2x8x32xf32> to vector<16x32xf32>
    %242 = arith.truncf %241 : vector<16x32xf32> to vector<16x32xbf16>
    %cst_57 = arith.constant dense<0.000000e+00> : vector<16x64xf32>
    %243 = tpu.matmul %242, %239, %cst_57 {dimension_numbers = #tpu.dot_dimension_numbers<[1], [0], [0], [1], [0, 0, 1, 1], [], []>} : vector<16x32xbf16>, vector<32x64xbf16>, vector<16x64xf32> -> vector<16x64xf32>
    %244 = vector.broadcast %240 : vector<1x64xf32> to vector<16x64xf32>
    %245 = arith.addf %243, %244 : vector<16x64xf32>
    %cst_58 = arith.constant 0.000000e+00 : f32
    %246 = vector.broadcast %cst_58 : f32 to vector<16x64xf32>
    %247 = arith.maximumf %245, %246 : vector<16x64xf32>
    %248 = vector.shape_cast %247 : vector<16x64xf32> to vector<2x8x64xf32>
    %c912 = arith.constant 912 : index
    %c0_59 = arith.constant 0 : index
    %249 = vector.load %arg1[%c912, %c0_59] : memref<1104x258xbf16, #tpu.memory_space<vmem>>, vector<64x256xbf16>
    %c1040 = arith.constant 1040 : index
    %c0_60 = arith.constant 0 : index
    %250 = vector.load %arg1[%c1040, %c0_60] : memref<1104x258xbf16, #tpu.memory_space<vmem>>, vector<64x256xbf16>
    %251 = vector.extract_strided_slice %248 {offsets = [0, 0, 0], sizes = [2, 1, 64], strides = [1, 1, 1]} : vector<2x8x64xf32> to vector<2x1x64xf32>
    %252 = vector.shape_cast %251 : vector<2x1x64xf32> to vector<2x64xf32>
    %c0_61 = arith.constant 0 : index
    %c0_62 = arith.constant 0 : index
    %c0_63 = arith.constant 0 : index
    %253 = vector.load %arg4[%c0_61, %c0_62, %c0_63] : memref<8x2x64xf32, #tpu.memory_space<vmem>>, vector<1x2x64xf32>
    %254 = vector.shape_cast %253 : vector<1x2x64xf32> to vector<2x64xf32>
    %255 = vector.shape_cast %252 : vector<2x64xf32> to vector<1x2x64xf32>
    tpu.vector_store %arg4[%c0_61, %c0_62, %c0_63], %255 {strides = array<i32>} : memref<8x2x64xf32, #tpu.memory_space<vmem>>, vector<1x2x64xf32>,
    %256 = vector.extract_strided_slice %248 {offsets = [0, 1, 0], sizes = [2, 1, 64], strides = [1, 1, 1]} : vector<2x8x64xf32> to vector<2x1x64xf32>
    %257 = vector.shape_cast %256 : vector<2x1x64xf32> to vector<2x64xf32>
    %c1 = arith.constant 1 : index
    %c0_64 = arith.constant 0 : index
    %c0_65 = arith.constant 0 : index
    %258 = vector.load %arg4[%c1, %c0_64, %c0_65] : memref<8x2x64xf32, #tpu.memory_space<vmem>>, vector<1x2x64xf32>
    %259 = vector.shape_cast %258 : vector<1x2x64xf32> to vector<2x64xf32>
    %260 = vector.shape_cast %257 : vector<2x64xf32> to vector<1x2x64xf32>
    tpu.vector_store %arg4[%c1, %c0_64, %c0_65], %260 {strides = array<i32>} : memref<8x2x64xf32, #tpu.memory_space<vmem>>, vector<1x2x64xf32>,
    %261 = vector.extract_strided_slice %248 {offsets = [0, 2, 0], sizes = [2, 1, 64], strides = [1, 1, 1]} : vector<2x8x64xf32> to vector<2x1x64xf32>
    %262 = vector.shape_cast %261 : vector<2x1x64xf32> to vector<2x64xf32>
    %c2 = arith.constant 2 : index
    %c0_66 = arith.constant 0 : index
    %c0_67 = arith.constant 0 : index
    %263 = vector.load %arg4[%c2, %c0_66, %c0_67] : memref<8x2x64xf32, #tpu.memory_space<vmem>>, vector<1x2x64xf32>
    %264 = vector.shape_cast %263 : vector<1x2x64xf32> to vector<2x64xf32>
    %265 = vector.shape_cast %262 : vector<2x64xf32> to vector<1x2x64xf32>
    tpu.vector_store %arg4[%c2, %c0_66, %c0_67], %265 {strides = array<i32>} : memref<8x2x64xf32, #tpu.memory_space<vmem>>, vector<1x2x64xf32>,
    %266 = vector.extract_strided_slice %248 {offsets = [0, 3, 0], sizes = [2, 1, 64], strides = [1, 1, 1]} : vector<2x8x64xf32> to vector<2x1x64xf32>
    %267 = vector.shape_cast %266 : vector<2x1x64xf32> to vector<2x64xf32>
    %c3 = arith.constant 3 : index
    %c0_68 = arith.constant 0 : index
    %c0_69 = arith.constant 0 : index
    %268 = vector.load %arg4[%c3, %c0_68, %c0_69] : memref<8x2x64xf32, #tpu.memory_space<vmem>>, vector<1x2x64xf32>
    %269 = vector.shape_cast %268 : vector<1x2x64xf32> to vector<2x64xf32>
    %270 = vector.shape_cast %267 : vector<2x64xf32> to vector<1x2x64xf32>
    tpu.vector_store %arg4[%c3, %c0_68, %c0_69], %270 {strides = array<i32>} : memref<8x2x64xf32, #tpu.memory_space<vmem>>, vector<1x2x64xf32>,
    %271 = vector.extract_strided_slice %248 {offsets = [0, 4, 0], sizes = [2, 1, 64], strides = [1, 1, 1]} : vector<2x8x64xf32> to vector<2x1x64xf32>
    %272 = vector.shape_cast %271 : vector<2x1x64xf32> to vector<2x64xf32>
    %c4 = arith.constant 4 : index
    %c0_70 = arith.constant 0 : index
    %c0_71 = arith.constant 0 : index
    %273 = vector.load %arg4[%c4, %c0_70, %c0_71] : memref<8x2x64xf32, #tpu.memory_space<vmem>>, vector<1x2x64xf32>
    %274 = vector.shape_cast %273 : vector<1x2x64xf32> to vector<2x64xf32>
    %275 = vector.shape_cast %272 : vector<2x64xf32> to vector<1x2x64xf32>
    tpu.vector_store %arg4[%c4, %c0_70, %c0_71], %275 {strides = array<i32>} : memref<8x2x64xf32, #tpu.memory_space<vmem>>, vector<1x2x64xf32>,
    %276 = vector.extract_strided_slice %248 {offsets = [0, 5, 0], sizes = [2, 1, 64], strides = [1, 1, 1]} : vector<2x8x64xf32> to vector<2x1x64xf32>
    %277 = vector.shape_cast %276 : vector<2x1x64xf32> to vector<2x64xf32>
    %c5 = arith.constant 5 : index
    %c0_72 = arith.constant 0 : index
    %c0_73 = arith.constant 0 : index
    %278 = vector.load %arg4[%c5, %c0_72, %c0_73] : memref<8x2x64xf32, #tpu.memory_space<vmem>>, vector<1x2x64xf32>
    %279 = vector.shape_cast %278 : vector<1x2x64xf32> to vector<2x64xf32>
    %280 = vector.shape_cast %277 : vector<2x64xf32> to vector<1x2x64xf32>
    tpu.vector_store %arg4[%c5, %c0_72, %c0_73], %280 {strides = array<i32>} : memref<8x2x64xf32, #tpu.memory_space<vmem>>, vector<1x2x64xf32>,
    %281 = vector.extract_strided_slice %248 {offsets = [0, 6, 0], sizes = [2, 1, 64], strides = [1, 1, 1]} : vector<2x8x64xf32> to vector<2x1x64xf32>
    %282 = vector.shape_cast %281 : vector<2x1x64xf32> to vector<2x64xf32>
    %c6 = arith.constant 6 : index
    %c0_74 = arith.constant 0 : index
    %c0_75 = arith.constant 0 : index
    %283 = vector.load %arg4[%c6, %c0_74, %c0_75] : memref<8x2x64xf32, #tpu.memory_space<vmem>>, vector<1x2x64xf32>
    %284 = vector.shape_cast %283 : vector<1x2x64xf32> to vector<2x64xf32>
    %285 = vector.shape_cast %282 : vector<2x64xf32> to vector<1x2x64xf32>
    tpu.vector_store %arg4[%c6, %c0_74, %c0_75], %285 {strides = array<i32>} : memref<8x2x64xf32, #tpu.memory_space<vmem>>, vector<1x2x64xf32>,
    %286 = vector.extract_strided_slice %248 {offsets = [0, 7, 0], sizes = [2, 1, 64], strides = [1, 1, 1]} : vector<2x8x64xf32> to vector<2x1x64xf32>
    %287 = vector.shape_cast %286 : vector<2x1x64xf32> to vector<2x64xf32>
    %c7 = arith.constant 7 : index
    %c0_76 = arith.constant 0 : index
    %c0_77 = arith.constant 0 : index
    %288 = vector.load %arg4[%c7, %c0_76, %c0_77] : memref<8x2x64xf32, #tpu.memory_space<vmem>>, vector<1x2x64xf32>
    %289 = vector.shape_cast %288 : vector<1x2x64xf32> to vector<2x64xf32>
    %290 = vector.shape_cast %287 : vector<2x64xf32> to vector<1x2x64xf32>
    tpu.vector_store %arg4[%c7, %c0_76, %c0_77], %290 {strides = array<i32>} : memref<8x2x64xf32, #tpu.memory_space<vmem>>, vector<1x2x64xf32>,
    %c0_78 = arith.constant 0 : index
    %c0_79 = arith.constant 0 : index
    %c0_80 = arith.constant 0 : index
    %291 = vector.load %arg4[%c0_78, %c0_79, %c0_80] : memref<8x2x64xf32, #tpu.memory_space<vmem>>, vector<8x2x64xf32>
    %292 = vector.shape_cast %291 : vector<8x2x64xf32> to vector<16x64xf32>
    %293 = arith.truncf %292 : vector<16x64xf32> to vector<16x64xbf16>
    %c848 = arith.constant 848 : index
    %c0_81 = arith.constant 0 : index
    %294 = vector.load %arg1[%c848, %c0_81] : memref<1104x258xbf16, #tpu.memory_space<vmem>>, vector<64x256xbf16>
    %cst_82 = arith.constant dense<0.000000e+00> : vector<16x256xf32>
    %295 = tpu.matmul %293, %294, %cst_82 {dimension_numbers = #tpu.dot_dimension_numbers<[1], [0], [0], [1], [0, 0, 1, 1], [], []>} : vector<16x64xbf16>, vector<64x256xbf16>, vector<16x256xf32> -> vector<16x256xf32>
    %c160 = arith.constant 160 : index
    %c0_83 = arith.constant 0 : index
    %296 = vector.load %arg2[%c160, %c0_83] : memref<192x258xf32, #tpu.memory_space<vmem>>, vector<1x256xf32>
    %297 = vector.broadcast %296 : vector<1x256xf32> to vector<16x256xf32>
    %298 = arith.addf %295, %297 : vector<16x256xf32>
    %299 = vector.shape_cast %298 : vector<16x256xf32> to vector<8x2x256xf32>
    %cst_84 = arith.constant 0.000000e+00 : f32
    %300 = vector.broadcast %cst_84 : f32 to vector<2x64xf32>
    %cst_85 = arith.constant 0.000000e+00 : f32
    %301 = vector.broadcast %cst_85 : f32 to vector<2x64xf32>
    %302 = vector.extract_strided_slice %299 {offsets = [0, 0, 0], sizes = [1, 2, 256], strides = [1, 1, 1]} : vector<8x2x256xf32> to vector<1x2x256xf32>
    %303 = vector.shape_cast %302 : vector<1x2x256xf32> to vector<2x256xf32>
    %304 = arith.truncf %300 : vector<2x64xf32> to vector<2x64xbf16>
    %cst_86 = arith.constant dense<0.000000e+00> : vector<2x256xf32>
    %305 = tpu.matmul %304, %249, %cst_86 {dimension_numbers = #tpu.dot_dimension_numbers<[1], [0], [0], [1], [0, 0, 1, 1], [], []>} : vector<2x64xbf16>, vector<64x256xbf16>, vector<2x256xf32> -> vector<2x256xf32>
    %306 = arith.addf %303, %305 : vector<2x256xf32>
    %307 = vector.extract_strided_slice %306 {offsets = [0, 0], sizes = [2, 192], strides = [1, 1]} : vector<2x256xf32> to vector<2x192xf32>
    %308 = arith.negf %307 : vector<2x192xf32>
    %309 = math.exp %308 : vector<2x192xf32>
    %cst_87 = arith.constant 1.000000e+00 : f32
    %310 = vector.broadcast %cst_87 : f32 to vector<2x192xf32>
    %311 = arith.addf %310, %309 : vector<2x192xf32>
    %312 = arith.divf %310, %311 : vector<2x192xf32>
    %313 = vector.extract_strided_slice %306 {offsets = [0, 192], sizes = [2, 64], strides = [1, 1]} : vector<2x256xf32> to vector<2x64xf32>
    %314 = math.tanh %313 : vector<2x64xf32>
    %315 = vector.extract_strided_slice %312 {offsets = [0, 0], sizes = [2, 64], strides = [1, 1]} : vector<2x192xf32> to vector<2x64xf32>
    %316 = vector.extract_strided_slice %312 {offsets = [0, 64], sizes = [2, 64], strides = [1, 1]} : vector<2x192xf32> to vector<2x64xf32>
    %317 = vector.extract_strided_slice %312 {offsets = [0, 128], sizes = [2, 64], strides = [1, 1]} : vector<2x192xf32> to vector<2x64xf32>
    %318 = arith.mulf %316, %301 : vector<2x64xf32>
    %319 = arith.mulf %315, %314 : vector<2x64xf32>
    %320 = arith.addf %318, %319 : vector<2x64xf32>
    %321 = math.tanh %320 : vector<2x64xf32>
    %322 = arith.mulf %317, %321 : vector<2x64xf32>
    %c0_88 = arith.constant 0 : index
    %c0_89 = arith.constant 0 : index
    %c0_90 = arith.constant 0 : index
    %323 = vector.load %arg4[%c0_88, %c0_89, %c0_90] : memref<8x2x64xf32, #tpu.memory_space<vmem>>, vector<1x2x64xf32>
    %324 = vector.shape_cast %323 : vector<1x2x64xf32> to vector<2x64xf32>
    %325 = vector.shape_cast %322 : vector<2x64xf32> to vector<1x2x64xf32>
    tpu.vector_store %arg4[%c0_88, %c0_89, %c0_90], %325 {strides = array<i32>} : memref<8x2x64xf32, #tpu.memory_space<vmem>>, vector<1x2x64xf32>,
    %326 = vector.extract_strided_slice %299 {offsets = [1, 0, 0], sizes = [1, 2, 256], strides = [1, 1, 1]} : vector<8x2x256xf32> to vector<1x2x256xf32>
    %327 = vector.shape_cast %326 : vector<1x2x256xf32> to vector<2x256xf32>
    %328 = arith.truncf %322 : vector<2x64xf32> to vector<2x64xbf16>
    %cst_91 = arith.constant dense<0.000000e+00> : vector<2x256xf32>
    %329 = tpu.matmul %328, %249, %cst_91 {dimension_numbers = #tpu.dot_dimension_numbers<[1], [0], [0], [1], [0, 0, 1, 1], [], []>} : vector<2x64xbf16>, vector<64x256xbf16>, vector<2x256xf32> -> vector<2x256xf32>
    %330 = arith.addf %327, %329 : vector<2x256xf32>
    %331 = vector.extract_strided_slice %330 {offsets = [0, 0], sizes = [2, 192], strides = [1, 1]} : vector<2x256xf32> to vector<2x192xf32>
    %332 = arith.negf %331 : vector<2x192xf32>
    %333 = math.exp %332 : vector<2x192xf32>
    %cst_92 = arith.constant 1.000000e+00 : f32
    %334 = vector.broadcast %cst_92 : f32 to vector<2x192xf32>
    %335 = arith.addf %334, %333 : vector<2x192xf32>
    %336 = arith.divf %334, %335 : vector<2x192xf32>
    %337 = vector.extract_strided_slice %330 {offsets = [0, 192], sizes = [2, 64], strides = [1, 1]} : vector<2x256xf32> to vector<2x64xf32>
    %338 = math.tanh %337 : vector<2x64xf32>
    %339 = vector.extract_strided_slice %336 {offsets = [0, 0], sizes = [2, 64], strides = [1, 1]} : vector<2x192xf32> to vector<2x64xf32>
    %340 = vector.extract_strided_slice %336 {offsets = [0, 64], sizes = [2, 64], strides = [1, 1]} : vector<2x192xf32> to vector<2x64xf32>
    %341 = vector.extract_strided_slice %336 {offsets = [0, 128], sizes = [2, 64], strides = [1, 1]} : vector<2x192xf32> to vector<2x64xf32>
    %342 = arith.mulf %340, %320 : vector<2x64xf32>
    %343 = arith.mulf %339, %338 : vector<2x64xf32>
    %344 = arith.addf %342, %343 : vector<2x64xf32>
    %345 = math.tanh %344 : vector<2x64xf32>
    %346 = arith.mulf %341, %345 : vector<2x64xf32>
    %c1_93 = arith.constant 1 : index
    %c0_94 = arith.constant 0 : index
    %c0_95 = arith.constant 0 : index
    %347 = vector.load %arg4[%c1_93, %c0_94, %c0_95] : memref<8x2x64xf32, #tpu.memory_space<vmem>>, vector<1x2x64xf32>
    %348 = vector.shape_cast %347 : vector<1x2x64xf32> to vector<2x64xf32>
    %349 = vector.shape_cast %346 : vector<2x64xf32> to vector<1x2x64xf32>
    tpu.vector_store %arg4[%c1_93, %c0_94, %c0_95], %349 {strides = array<i32>} : memref<8x2x64xf32, #tpu.memory_space<vmem>>, vector<1x2x64xf32>,
    %350 = vector.extract_strided_slice %299 {offsets = [2, 0, 0], sizes = [1, 2, 256], strides = [1, 1, 1]} : vector<8x2x256xf32> to vector<1x2x256xf32>
    %351 = vector.shape_cast %350 : vector<1x2x256xf32> to vector<2x256xf32>
    %352 = arith.truncf %346 : vector<2x64xf32> to vector<2x64xbf16>
    %cst_96 = arith.constant dense<0.000000e+00> : vector<2x256xf32>
    %353 = tpu.matmul %352, %249, %cst_96 {dimension_numbers = #tpu.dot_dimension_numbers<[1], [0], [0], [1], [0, 0, 1, 1], [], []>} : vector<2x64xbf16>, vector<64x256xbf16>, vector<2x256xf32> -> vector<2x256xf32>
    %354 = arith.addf %351, %353 : vector<2x256xf32>
    %355 = vector.extract_strided_slice %354 {offsets = [0, 0], sizes = [2, 192], strides = [1, 1]} : vector<2x256xf32> to vector<2x192xf32>
    %356 = arith.negf %355 : vector<2x192xf32>
    %357 = math.exp %356 : vector<2x192xf32>
    %cst_97 = arith.constant 1.000000e+00 : f32
    %358 = vector.broadcast %cst_97 : f32 to vector<2x192xf32>
    %359 = arith.addf %358, %357 : vector<2x192xf32>
    %360 = arith.divf %358, %359 : vector<2x192xf32>
    %361 = vector.extract_strided_slice %354 {offsets = [0, 192], sizes = [2, 64], strides = [1, 1]} : vector<2x256xf32> to vector<2x64xf32>
    %362 = math.tanh %361 : vector<2x64xf32>
    %363 = vector.extract_strided_slice %360 {offsets = [0, 0], sizes = [2, 64], strides = [1, 1]} : vector<2x192xf32> to vector<2x64xf32>
    %364 = vector.extract_strided_slice %360 {offsets = [0, 64], sizes = [2, 64], strides = [1, 1]} : vector<2x192xf32> to vector<2x64xf32>
    %365 = vector.extract_strided_slice %360 {offsets = [0, 128], sizes = [2, 64], strides = [1, 1]} : vector<2x192xf32> to vector<2x64xf32>
    %366 = arith.mulf %364, %344 : vector<2x64xf32>
    %367 = arith.mulf %363, %362 : vector<2x64xf32>
    %368 = arith.addf %366, %367 : vector<2x64xf32>
    %369 = math.tanh %368 : vector<2x64xf32>
    %370 = arith.mulf %365, %369 : vector<2x64xf32>
    %c2_98 = arith.constant 2 : index
    %c0_99 = arith.constant 0 : index
    %c0_100 = arith.constant 0 : index
    %371 = vector.load %arg4[%c2_98, %c0_99, %c0_100] : memref<8x2x64xf32, #tpu.memory_space<vmem>>, vector<1x2x64xf32>
    %372 = vector.shape_cast %371 : vector<1x2x64xf32> to vector<2x64xf32>
    %373 = vector.shape_cast %370 : vector<2x64xf32> to vector<1x2x64xf32>
    tpu.vector_store %arg4[%c2_98, %c0_99, %c0_100], %373 {strides = array<i32>} : memref<8x2x64xf32, #tpu.memory_space<vmem>>, vector<1x2x64xf32>,
    %374 = vector.extract_strided_slice %299 {offsets = [3, 0, 0], sizes = [1, 2, 256], strides = [1, 1, 1]} : vector<8x2x256xf32> to vector<1x2x256xf32>
    %375 = vector.shape_cast %374 : vector<1x2x256xf32> to vector<2x256xf32>
    %376 = arith.truncf %370 : vector<2x64xf32> to vector<2x64xbf16>
    %cst_101 = arith.constant dense<0.000000e+00> : vector<2x256xf32>
    %377 = tpu.matmul %376, %249, %cst_101 {dimension_numbers = #tpu.dot_dimension_numbers<[1], [0], [0], [1], [0, 0, 1, 1], [], []>} : vector<2x64xbf16>, vector<64x256xbf16>, vector<2x256xf32> -> vector<2x256xf32>
    %378 = arith.addf %375, %377 : vector<2x256xf32>
    %379 = vector.extract_strided_slice %378 {offsets = [0, 0], sizes = [2, 192], strides = [1, 1]} : vector<2x256xf32> to vector<2x192xf32>
    %380 = arith.negf %379 : vector<2x192xf32>
    %381 = math.exp %380 : vector<2x192xf32>
    %cst_102 = arith.constant 1.000000e+00 : f32
    %382 = vector.broadcast %cst_102 : f32 to vector<2x192xf32>
    %383 = arith.addf %382, %381 : vector<2x192xf32>
    %384 = arith.divf %382, %383 : vector<2x192xf32>
    %385 = vector.extract_strided_slice %378 {offsets = [0, 192], sizes = [2, 64], strides = [1, 1]} : vector<2x256xf32> to vector<2x64xf32>
    %386 = math.tanh %385 : vector<2x64xf32>
    %387 = vector.extract_strided_slice %384 {offsets = [0, 0], sizes = [2, 64], strides = [1, 1]} : vector<2x192xf32> to vector<2x64xf32>
    %388 = vector.extract_strided_slice %384 {offsets = [0, 64], sizes = [2, 64], strides = [1, 1]} : vector<2x192xf32> to vector<2x64xf32>
    %389 = vector.extract_strided_slice %384 {offsets = [0, 128], sizes = [2, 64], strides = [1, 1]} : vector<2x192xf32> to vector<2x64xf32>
    %390 = arith.mulf %388, %368 : vector<2x64xf32>
    %391 = arith.mulf %387, %386 : vector<2x64xf32>
    %392 = arith.addf %390, %391 : vector<2x64xf32>
    %393 = math.tanh %392 : vector<2x64xf32>
    %394 = arith.mulf %389, %393 : vector<2x64xf32>
    %c3_103 = arith.constant 3 : index
    %c0_104 = arith.constant 0 : index
    %c0_105 = arith.constant 0 : index
    %395 = vector.load %arg4[%c3_103, %c0_104, %c0_105] : memref<8x2x64xf32, #tpu.memory_space<vmem>>, vector<1x2x64xf32>
    %396 = vector.shape_cast %395 : vector<1x2x64xf32> to vector<2x64xf32>
    %397 = vector.shape_cast %394 : vector<2x64xf32> to vector<1x2x64xf32>
    tpu.vector_store %arg4[%c3_103, %c0_104, %c0_105], %397 {strides = array<i32>} : memref<8x2x64xf32, #tpu.memory_space<vmem>>, vector<1x2x64xf32>,
    %398 = vector.extract_strided_slice %299 {offsets = [4, 0, 0], sizes = [1, 2, 256], strides = [1, 1, 1]} : vector<8x2x256xf32> to vector<1x2x256xf32>
    %399 = vector.shape_cast %398 : vector<1x2x256xf32> to vector<2x256xf32>
    %400 = arith.truncf %394 : vector<2x64xf32> to vector<2x64xbf16>
    %cst_106 = arith.constant dense<0.000000e+00> : vector<2x256xf32>
    %401 = tpu.matmul %400, %249, %cst_106 {dimension_numbers = #tpu.dot_dimension_numbers<[1], [0], [0], [1], [0, 0, 1, 1], [], []>} : vector<2x64xbf16>, vector<64x256xbf16>, vector<2x256xf32> -> vector<2x256xf32>
    %402 = arith.addf %399, %401 : vector<2x256xf32>
    %403 = vector.extract_strided_slice %402 {offsets = [0, 0], sizes = [2, 192], strides = [1, 1]} : vector<2x256xf32> to vector<2x192xf32>
    %404 = arith.negf %403 : vector<2x192xf32>
    %405 = math.exp %404 : vector<2x192xf32>
    %cst_107 = arith.constant 1.000000e+00 : f32
    %406 = vector.broadcast %cst_107 : f32 to vector<2x192xf32>
    %407 = arith.addf %406, %405 : vector<2x192xf32>
    %408 = arith.divf %406, %407 : vector<2x192xf32>
    %409 = vector.extract_strided_slice %402 {offsets = [0, 192], sizes = [2, 64], strides = [1, 1]} : vector<2x256xf32> to vector<2x64xf32>
    %410 = math.tanh %409 : vector<2x64xf32>
    %411 = vector.extract_strided_slice %408 {offsets = [0, 0], sizes = [2, 64], strides = [1, 1]} : vector<2x192xf32> to vector<2x64xf32>
    %412 = vector.extract_strided_slice %408 {offsets = [0, 64], sizes = [2, 64], strides = [1, 1]} : vector<2x192xf32> to vector<2x64xf32>
    %413 = vector.extract_strided_slice %408 {offsets = [0, 128], sizes = [2, 64], strides = [1, 1]} : vector<2x192xf32> to vector<2x64xf32>
    %414 = arith.mulf %412, %392 : vector<2x64xf32>
    %415 = arith.mulf %411, %410 : vector<2x64xf32>
    %416 = arith.addf %414, %415 : vector<2x64xf32>
    %417 = math.tanh %416 : vector<2x64xf32>
    %418 = arith.mulf %413, %417 : vector<2x64xf32>
    %c4_108 = arith.constant 4 : index
    %c0_109 = arith.constant 0 : index
    %c0_110 = arith.constant 0 : index
    %419 = vector.load %arg4[%c4_108, %c0_109, %c0_110] : memref<8x2x64xf32, #tpu.memory_space<vmem>>, vector<1x2x64xf32>
    %420 = vector.shape_cast %419 : vector<1x2x64xf32> to vector<2x64xf32>
    %421 = vector.shape_cast %418 : vector<2x64xf32> to vector<1x2x64xf32>
    tpu.vector_store %arg4[%c4_108, %c0_109, %c0_110], %421 {strides = array<i32>} : memref<8x2x64xf32, #tpu.memory_space<vmem>>, vector<1x2x64xf32>,
    %422 = vector.extract_strided_slice %299 {offsets = [5, 0, 0], sizes = [1, 2, 256], strides = [1, 1, 1]} : vector<8x2x256xf32> to vector<1x2x256xf32>
    %423 = vector.shape_cast %422 : vector<1x2x256xf32> to vector<2x256xf32>
    %424 = arith.truncf %418 : vector<2x64xf32> to vector<2x64xbf16>
    %cst_111 = arith.constant dense<0.000000e+00> : vector<2x256xf32>
    %425 = tpu.matmul %424, %249, %cst_111 {dimension_numbers = #tpu.dot_dimension_numbers<[1], [0], [0], [1], [0, 0, 1, 1], [], []>} : vector<2x64xbf16>, vector<64x256xbf16>, vector<2x256xf32> -> vector<2x256xf32>
    %426 = arith.addf %423, %425 : vector<2x256xf32>
    %427 = vector.extract_strided_slice %426 {offsets = [0, 0], sizes = [2, 192], strides = [1, 1]} : vector<2x256xf32> to vector<2x192xf32>
    %428 = arith.negf %427 : vector<2x192xf32>
    %429 = math.exp %428 : vector<2x192xf32>
    %cst_112 = arith.constant 1.000000e+00 : f32
    %430 = vector.broadcast %cst_112 : f32 to vector<2x192xf32>
    %431 = arith.addf %430, %429 : vector<2x192xf32>
    %432 = arith.divf %430, %431 : vector<2x192xf32>
    %433 = vector.extract_strided_slice %426 {offsets = [0, 192], sizes = [2, 64], strides = [1, 1]} : vector<2x256xf32> to vector<2x64xf32>
    %434 = math.tanh %433 : vector<2x64xf32>
    %435 = vector.extract_strided_slice %432 {offsets = [0, 0], sizes = [2, 64], strides = [1, 1]} : vector<2x192xf32> to vector<2x64xf32>
    %436 = vector.extract_strided_slice %432 {offsets = [0, 64], sizes = [2, 64], strides = [1, 1]} : vector<2x192xf32> to vector<2x64xf32>
    %437 = vector.extract_strided_slice %432 {offsets = [0, 128], sizes = [2, 64], strides = [1, 1]} : vector<2x192xf32> to vector<2x64xf32>
    %438 = arith.mulf %436, %416 : vector<2x64xf32>
    %439 = arith.mulf %435, %434 : vector<2x64xf32>
    %440 = arith.addf %438, %439 : vector<2x64xf32>
    %441 = math.tanh %440 : vector<2x64xf32>
    %442 = arith.mulf %437, %441 : vector<2x64xf32>
    %c5_113 = arith.constant 5 : index
    %c0_114 = arith.constant 0 : index
    %c0_115 = arith.constant 0 : index
    %443 = vector.load %arg4[%c5_113, %c0_114, %c0_115] : memref<8x2x64xf32, #tpu.memory_space<vmem>>, vector<1x2x64xf32>
    %444 = vector.shape_cast %443 : vector<1x2x64xf32> to vector<2x64xf32>
    %445 = vector.shape_cast %442 : vector<2x64xf32> to vector<1x2x64xf32>
    tpu.vector_store %arg4[%c5_113, %c0_114, %c0_115], %445 {strides = array<i32>} : memref<8x2x64xf32, #tpu.memory_space<vmem>>, vector<1x2x64xf32>,
    %446 = vector.extract_strided_slice %299 {offsets = [6, 0, 0], sizes = [1, 2, 256], strides = [1, 1, 1]} : vector<8x2x256xf32> to vector<1x2x256xf32>
    %447 = vector.shape_cast %446 : vector<1x2x256xf32> to vector<2x256xf32>
    %448 = arith.truncf %442 : vector<2x64xf32> to vector<2x64xbf16>
    %cst_116 = arith.constant dense<0.000000e+00> : vector<2x256xf32>
    %449 = tpu.matmul %448, %249, %cst_116 {dimension_numbers = #tpu.dot_dimension_numbers<[1], [0], [0], [1], [0, 0, 1, 1], [], []>} : vector<2x64xbf16>, vector<64x256xbf16>, vector<2x256xf32> -> vector<2x256xf32>
    %450 = arith.addf %447, %449 : vector<2x256xf32>
    %451 = vector.extract_strided_slice %450 {offsets = [0, 0], sizes = [2, 192], strides = [1, 1]} : vector<2x256xf32> to vector<2x192xf32>
    %452 = arith.negf %451 : vector<2x192xf32>
    %453 = math.exp %452 : vector<2x192xf32>
    %cst_117 = arith.constant 1.000000e+00 : f32
    %454 = vector.broadcast %cst_117 : f32 to vector<2x192xf32>
    %455 = arith.addf %454, %453 : vector<2x192xf32>
    %456 = arith.divf %454, %455 : vector<2x192xf32>
    %457 = vector.extract_strided_slice %450 {offsets = [0, 192], sizes = [2, 64], strides = [1, 1]} : vector<2x256xf32> to vector<2x64xf32>
    %458 = math.tanh %457 : vector<2x64xf32>
    %459 = vector.extract_strided_slice %456 {offsets = [0, 0], sizes = [2, 64], strides = [1, 1]} : vector<2x192xf32> to vector<2x64xf32>
    %460 = vector.extract_strided_slice %456 {offsets = [0, 64], sizes = [2, 64], strides = [1, 1]} : vector<2x192xf32> to vector<2x64xf32>
    %461 = vector.extract_strided_slice %456 {offsets = [0, 128], sizes = [2, 64], strides = [1, 1]} : vector<2x192xf32> to vector<2x64xf32>
    %462 = arith.mulf %460, %440 : vector<2x64xf32>
    %463 = arith.mulf %459, %458 : vector<2x64xf32>
    %464 = arith.addf %462, %463 : vector<2x64xf32>
    %465 = math.tanh %464 : vector<2x64xf32>
    %466 = arith.mulf %461, %465 : vector<2x64xf32>
    %c6_118 = arith.constant 6 : index
    %c0_119 = arith.constant 0 : index
    %c0_120 = arith.constant 0 : index
    %467 = vector.load %arg4[%c6_118, %c0_119, %c0_120] : memref<8x2x64xf32, #tpu.memory_space<vmem>>, vector<1x2x64xf32>
    %468 = vector.shape_cast %467 : vector<1x2x64xf32> to vector<2x64xf32>
    %469 = vector.shape_cast %466 : vector<2x64xf32> to vector<1x2x64xf32>
    tpu.vector_store %arg4[%c6_118, %c0_119, %c0_120], %469 {strides = array<i32>} : memref<8x2x64xf32, #tpu.memory_space<vmem>>, vector<1x2x64xf32>,
    %470 = vector.extract_strided_slice %299 {offsets = [7, 0, 0], sizes = [1, 2, 256], strides = [1, 1, 1]} : vector<8x2x256xf32> to vector<1x2x256xf32>
    %471 = vector.shape_cast %470 : vector<1x2x256xf32> to vector<2x256xf32>
    %472 = arith.truncf %466 : vector<2x64xf32> to vector<2x64xbf16>
    %cst_121 = arith.constant dense<0.000000e+00> : vector<2x256xf32>
    %473 = tpu.matmul %472, %249, %cst_121 {dimension_numbers = #tpu.dot_dimension_numbers<[1], [0], [0], [1], [0, 0, 1, 1], [], []>} : vector<2x64xbf16>, vector<64x256xbf16>, vector<2x256xf32> -> vector<2x256xf32>
    %474 = arith.addf %471, %473 : vector<2x256xf32>
    %475 = vector.extract_strided_slice %474 {offsets = [0, 0], sizes = [2, 192], strides = [1, 1]} : vector<2x256xf32> to vector<2x192xf32>
    %476 = arith.negf %475 : vector<2x192xf32>
    %477 = math.exp %476 : vector<2x192xf32>
    %cst_122 = arith.constant 1.000000e+00 : f32
    %478 = vector.broadcast %cst_122 : f32 to vector<2x192xf32>
    %479 = arith.addf %478, %477 : vector<2x192xf32>
    %480 = arith.divf %478, %479 : vector<2x192xf32>
    %481 = vector.extract_strided_slice %474 {offsets = [0, 192], sizes = [2, 64], strides = [1, 1]} : vector<2x256xf32> to vector<2x64xf32>
    %482 = math.tanh %481 : vector<2x64xf32>
    %483 = vector.extract_strided_slice %480 {offsets = [0, 0], sizes = [2, 64], strides = [1, 1]} : vector<2x192xf32> to vector<2x64xf32>
    %484 = vector.extract_strided_slice %480 {offsets = [0, 64], sizes = [2, 64], strides = [1, 1]} : vector<2x192xf32> to vector<2x64xf32>
    %485 = vector.extract_strided_slice %480 {offsets = [0, 128], sizes = [2, 64], strides = [1, 1]} : vector<2x192xf32> to vector<2x64xf32>
    %486 = arith.mulf %484, %464 : vector<2x64xf32>
    %487 = arith.mulf %483, %482 : vector<2x64xf32>
    %488 = arith.addf %486, %487 : vector<2x64xf32>
    %489 = math.tanh %488 : vector<2x64xf32>
    %490 = arith.mulf %485, %489 : vector<2x64xf32>
    %c7_123 = arith.constant 7 : index
    %c0_124 = arith.constant 0 : index
    %c0_125 = arith.constant 0 : index
    %491 = vector.load %arg4[%c7_123, %c0_124, %c0_125] : memref<8x2x64xf32, #tpu.memory_space<vmem>>, vector<1x2x64xf32>
    %492 = vector.shape_cast %491 : vector<1x2x64xf32> to vector<2x64xf32>
    %493 = vector.shape_cast %490 : vector<2x64xf32> to vector<1x2x64xf32>
    tpu.vector_store %arg4[%c7_123, %c0_124, %c0_125], %493 {strides = array<i32>} : memref<8x2x64xf32, #tpu.memory_space<vmem>>, vector<1x2x64xf32>,
    %c0_126 = arith.constant 0 : index
    %c0_127 = arith.constant 0 : index
    %c0_128 = arith.constant 0 : index
    %494 = vector.load %arg4[%c0_126, %c0_127, %c0_128] : memref<8x2x64xf32, #tpu.memory_space<vmem>>, vector<8x2x64xf32>
    %495 = vector.shape_cast %494 : vector<8x2x64xf32> to vector<16x64xf32>
    %496 = arith.truncf %495 : vector<16x64xf32> to vector<16x64xbf16>
    %c976 = arith.constant 976 : index
    %c0_129 = arith.constant 0 : index
    %497 = vector.load %arg1[%c976, %c0_129] : memref<1104x258xbf16, #tpu.memory_space<vmem>>, vector<64x256xbf16>
    %cst_130 = arith.constant dense<0.000000e+00> : vector<16x256xf32>
    %498 = tpu.matmul %496, %497, %cst_130 {dimension_numbers = #tpu.dot_dimension_numbers<[1], [0], [0], [1], [0, 0, 1, 1], [], []>} : vector<16x64xbf16>, vector<64x256xbf16>, vector<16x256xf32> -> vector<16x256xf32>
    %c168 = arith.constant 168 : index
    %c0_131 = arith.constant 0 : index
    %499 = vector.load %arg2[%c168, %c0_131] : memref<192x258xf32, #tpu.memory_space<vmem>>, vector<1x256xf32>
    %500 = vector.broadcast %499 : vector<1x256xf32> to vector<16x256xf32>
    %501 = arith.addf %498, %500 : vector<16x256xf32>
    %502 = vector.shape_cast %501 : vector<16x256xf32> to vector<8x2x256xf32>
    %cst_132 = arith.constant 0.000000e+00 : f32
    %503 = vector.broadcast %cst_132 : f32 to vector<2x64xf32>
    %cst_133 = arith.constant 0.000000e+00 : f32
    %504 = vector.broadcast %cst_133 : f32 to vector<2x64xf32>
    %505 = vector.extract_strided_slice %502 {offsets = [0, 0, 0], sizes = [1, 2, 256], strides = [1, 1, 1]} : vector<8x2x256xf32> to vector<1x2x256xf32>
    %506 = vector.shape_cast %505 : vector<1x2x256xf32> to vector<2x256xf32>
    %507 = arith.truncf %503 : vector<2x64xf32> to vector<2x64xbf16>
    %cst_134 = arith.constant dense<0.000000e+00> : vector<2x256xf32>
    %508 = tpu.matmul %507, %250, %cst_134 {dimension_numbers = #tpu.dot_dimension_numbers<[1], [0], [0], [1], [0, 0, 1, 1], [], []>} : vector<2x64xbf16>, vector<64x256xbf16>, vector<2x256xf32> -> vector<2x256xf32>
    %509 = arith.addf %506, %508 : vector<2x256xf32>
    %510 = vector.extract_strided_slice %509 {offsets = [0, 0], sizes = [2, 192], strides = [1, 1]} : vector<2x256xf32> to vector<2x192xf32>
    %511 = arith.negf %510 : vector<2x192xf32>
    %512 = math.exp %511 : vector<2x192xf32>
    %cst_135 = arith.constant 1.000000e+00 : f32
    %513 = vector.broadcast %cst_135 : f32 to vector<2x192xf32>
    %514 = arith.addf %513, %512 : vector<2x192xf32>
    %515 = arith.divf %513, %514 : vector<2x192xf32>
    %516 = vector.extract_strided_slice %509 {offsets = [0, 192], sizes = [2, 64], strides = [1, 1]} : vector<2x256xf32> to vector<2x64xf32>
    %517 = math.tanh %516 : vector<2x64xf32>
    %518 = vector.extract_strided_slice %515 {offsets = [0, 0], sizes = [2, 64], strides = [1, 1]} : vector<2x192xf32> to vector<2x64xf32>
    %519 = vector.extract_strided_slice %515 {offsets = [0, 64], sizes = [2, 64], strides = [1, 1]} : vector<2x192xf32> to vector<2x64xf32>
    %520 = vector.extract_strided_slice %515 {offsets = [0, 128], sizes = [2, 64], strides = [1, 1]} : vector<2x192xf32> to vector<2x64xf32>
    %521 = arith.mulf %519, %504 : vector<2x64xf32>
    %522 = arith.mulf %518, %517 : vector<2x64xf32>
    %523 = arith.addf %521, %522 : vector<2x64xf32>
    %524 = math.tanh %523 : vector<2x64xf32>
    %525 = arith.mulf %520, %524 : vector<2x64xf32>
    %c0_136 = arith.constant 0 : index
    %c0_137 = arith.constant 0 : index
    %c0_138 = arith.constant 0 : index
    %526 = vector.load %arg4[%c0_136, %c0_137, %c0_138] : memref<8x2x64xf32, #tpu.memory_space<vmem>>, vector<1x2x64xf32>
    %527 = vector.shape_cast %526 : vector<1x2x64xf32> to vector<2x64xf32>
    %528 = vector.shape_cast %525 : vector<2x64xf32> to vector<1x2x64xf32>
    tpu.vector_store %arg4[%c0_136, %c0_137, %c0_138], %528 {strides = array<i32>} : memref<8x2x64xf32, #tpu.memory_space<vmem>>, vector<1x2x64xf32>,
    %529 = vector.extract_strided_slice %502 {offsets = [1, 0, 0], sizes = [1, 2, 256], strides = [1, 1, 1]} : vector<8x2x256xf32> to vector<1x2x256xf32>
    %530 = vector.shape_cast %529 : vector<1x2x256xf32> to vector<2x256xf32>
    %531 = arith.truncf %525 : vector<2x64xf32> to vector<2x64xbf16>
    %cst_139 = arith.constant dense<0.000000e+00> : vector<2x256xf32>
    %532 = tpu.matmul %531, %250, %cst_139 {dimension_numbers = #tpu.dot_dimension_numbers<[1], [0], [0], [1], [0, 0, 1, 1], [], []>} : vector<2x64xbf16>, vector<64x256xbf16>, vector<2x256xf32> -> vector<2x256xf32>
    %533 = arith.addf %530, %532 : vector<2x256xf32>
    %534 = vector.extract_strided_slice %533 {offsets = [0, 0], sizes = [2, 192], strides = [1, 1]} : vector<2x256xf32> to vector<2x192xf32>
    %535 = arith.negf %534 : vector<2x192xf32>
    %536 = math.exp %535 : vector<2x192xf32>
    %cst_140 = arith.constant 1.000000e+00 : f32
    %537 = vector.broadcast %cst_140 : f32 to vector<2x192xf32>
    %538 = arith.addf %537, %536 : vector<2x192xf32>
    %539 = arith.divf %537, %538 : vector<2x192xf32>
    %540 = vector.extract_strided_slice %533 {offsets = [0, 192], sizes = [2, 64], strides = [1, 1]} : vector<2x256xf32> to vector<2x64xf32>
    %541 = math.tanh %540 : vector<2x64xf32>
    %542 = vector.extract_strided_slice %539 {offsets = [0, 0], sizes = [2, 64], strides = [1, 1]} : vector<2x192xf32> to vector<2x64xf32>
    %543 = vector.extract_strided_slice %539 {offsets = [0, 64], sizes = [2, 64], strides = [1, 1]} : vector<2x192xf32> to vector<2x64xf32>
    %544 = vector.extract_strided_slice %539 {offsets = [0, 128], sizes = [2, 64], strides = [1, 1]} : vector<2x192xf32> to vector<2x64xf32>
    %545 = arith.mulf %543, %523 : vector<2x64xf32>
    %546 = arith.mulf %542, %541 : vector<2x64xf32>
    %547 = arith.addf %545, %546 : vector<2x64xf32>
    %548 = math.tanh %547 : vector<2x64xf32>
    %549 = arith.mulf %544, %548 : vector<2x64xf32>
    %c1_141 = arith.constant 1 : index
    %c0_142 = arith.constant 0 : index
    %c0_143 = arith.constant 0 : index
    %550 = vector.load %arg4[%c1_141, %c0_142, %c0_143] : memref<8x2x64xf32, #tpu.memory_space<vmem>>, vector<1x2x64xf32>
    %551 = vector.shape_cast %550 : vector<1x2x64xf32> to vector<2x64xf32>
    %552 = vector.shape_cast %549 : vector<2x64xf32> to vector<1x2x64xf32>
    tpu.vector_store %arg4[%c1_141, %c0_142, %c0_143], %552 {strides = array<i32>} : memref<8x2x64xf32, #tpu.memory_space<vmem>>, vector<1x2x64xf32>,
    %553 = vector.extract_strided_slice %502 {offsets = [2, 0, 0], sizes = [1, 2, 256], strides = [1, 1, 1]} : vector<8x2x256xf32> to vector<1x2x256xf32>
    %554 = vector.shape_cast %553 : vector<1x2x256xf32> to vector<2x256xf32>
    %555 = arith.truncf %549 : vector<2x64xf32> to vector<2x64xbf16>
    %cst_144 = arith.constant dense<0.000000e+00> : vector<2x256xf32>
    %556 = tpu.matmul %555, %250, %cst_144 {dimension_numbers = #tpu.dot_dimension_numbers<[1], [0], [0], [1], [0, 0, 1, 1], [], []>} : vector<2x64xbf16>, vector<64x256xbf16>, vector<2x256xf32> -> vector<2x256xf32>
    %557 = arith.addf %554, %556 : vector<2x256xf32>
    %558 = vector.extract_strided_slice %557 {offsets = [0, 0], sizes = [2, 192], strides = [1, 1]} : vector<2x256xf32> to vector<2x192xf32>
    %559 = arith.negf %558 : vector<2x192xf32>
    %560 = math.exp %559 : vector<2x192xf32>
    %cst_145 = arith.constant 1.000000e+00 : f32
    %561 = vector.broadcast %cst_145 : f32 to vector<2x192xf32>
    %562 = arith.addf %561, %560 : vector<2x192xf32>
    %563 = arith.divf %561, %562 : vector<2x192xf32>
    %564 = vector.extract_strided_slice %557 {offsets = [0, 192], sizes = [2, 64], strides = [1, 1]} : vector<2x256xf32> to vector<2x64xf32>
    %565 = math.tanh %564 : vector<2x64xf32>
    %566 = vector.extract_strided_slice %563 {offsets = [0, 0], sizes = [2, 64], strides = [1, 1]} : vector<2x192xf32> to vector<2x64xf32>
    %567 = vector.extract_strided_slice %563 {offsets = [0, 64], sizes = [2, 64], strides = [1, 1]} : vector<2x192xf32> to vector<2x64xf32>
    %568 = vector.extract_strided_slice %563 {offsets = [0, 128], sizes = [2, 64], strides = [1, 1]} : vector<2x192xf32> to vector<2x64xf32>
    %569 = arith.mulf %567, %547 : vector<2x64xf32>
    %570 = arith.mulf %566, %565 : vector<2x64xf32>
    %571 = arith.addf %569, %570 : vector<2x64xf32>
    %572 = math.tanh %571 : vector<2x64xf32>
    %573 = arith.mulf %568, %572 : vector<2x64xf32>
    %c2_146 = arith.constant 2 : index
    %c0_147 = arith.constant 0 : index
    %c0_148 = arith.constant 0 : index
    %574 = vector.load %arg4[%c2_146, %c0_147, %c0_148] : memref<8x2x64xf32, #tpu.memory_space<vmem>>, vector<1x2x64xf32>
    %575 = vector.shape_cast %574 : vector<1x2x64xf32> to vector<2x64xf32>
    %576 = vector.shape_cast %573 : vector<2x64xf32> to vector<1x2x64xf32>
    tpu.vector_store %arg4[%c2_146, %c0_147, %c0_148], %576 {strides = array<i32>} : memref<8x2x64xf32, #tpu.memory_space<vmem>>, vector<1x2x64xf32>,
    %577 = vector.extract_strided_slice %502 {offsets = [3, 0, 0], sizes = [1, 2, 256], strides = [1, 1, 1]} : vector<8x2x256xf32> to vector<1x2x256xf32>
    %578 = vector.shape_cast %577 : vector<1x2x256xf32> to vector<2x256xf32>
    %579 = arith.truncf %573 : vector<2x64xf32> to vector<2x64xbf16>
    %cst_149 = arith.constant dense<0.000000e+00> : vector<2x256xf32>
    %580 = tpu.matmul %579, %250, %cst_149 {dimension_numbers = #tpu.dot_dimension_numbers<[1], [0], [0], [1], [0, 0, 1, 1], [], []>} : vector<2x64xbf16>, vector<64x256xbf16>, vector<2x256xf32> -> vector<2x256xf32>
    %581 = arith.addf %578, %580 : vector<2x256xf32>
    %582 = vector.extract_strided_slice %581 {offsets = [0, 0], sizes = [2, 192], strides = [1, 1]} : vector<2x256xf32> to vector<2x192xf32>
    %583 = arith.negf %582 : vector<2x192xf32>
    %584 = math.exp %583 : vector<2x192xf32>
    %cst_150 = arith.constant 1.000000e+00 : f32
    %585 = vector.broadcast %cst_150 : f32 to vector<2x192xf32>
    %586 = arith.addf %585, %584 : vector<2x192xf32>
    %587 = arith.divf %585, %586 : vector<2x192xf32>
    %588 = vector.extract_strided_slice %581 {offsets = [0, 192], sizes = [2, 64], strides = [1, 1]} : vector<2x256xf32> to vector<2x64xf32>
    %589 = math.tanh %588 : vector<2x64xf32>
    %590 = vector.extract_strided_slice %587 {offsets = [0, 0], sizes = [2, 64], strides = [1, 1]} : vector<2x192xf32> to vector<2x64xf32>
    %591 = vector.extract_strided_slice %587 {offsets = [0, 64], sizes = [2, 64], strides = [1, 1]} : vector<2x192xf32> to vector<2x64xf32>
    %592 = vector.extract_strided_slice %587 {offsets = [0, 128], sizes = [2, 64], strides = [1, 1]} : vector<2x192xf32> to vector<2x64xf32>
    %593 = arith.mulf %591, %571 : vector<2x64xf32>
    %594 = arith.mulf %590, %589 : vector<2x64xf32>
    %595 = arith.addf %593, %594 : vector<2x64xf32>
    %596 = math.tanh %595 : vector<2x64xf32>
    %597 = arith.mulf %592, %596 : vector<2x64xf32>
    %c3_151 = arith.constant 3 : index
    %c0_152 = arith.constant 0 : index
    %c0_153 = arith.constant 0 : index
    %598 = vector.load %arg4[%c3_151, %c0_152, %c0_153] : memref<8x2x64xf32, #tpu.memory_space<vmem>>, vector<1x2x64xf32>
    %599 = vector.shape_cast %598 : vector<1x2x64xf32> to vector<2x64xf32>
    %600 = vector.shape_cast %597 : vector<2x64xf32> to vector<1x2x64xf32>
    tpu.vector_store %arg4[%c3_151, %c0_152, %c0_153], %600 {strides = array<i32>} : memref<8x2x64xf32, #tpu.memory_space<vmem>>, vector<1x2x64xf32>,
    %601 = vector.extract_strided_slice %502 {offsets = [4, 0, 0], sizes = [1, 2, 256], strides = [1, 1, 1]} : vector<8x2x256xf32> to vector<1x2x256xf32>
    %602 = vector.shape_cast %601 : vector<1x2x256xf32> to vector<2x256xf32>
    %603 = arith.truncf %597 : vector<2x64xf32> to vector<2x64xbf16>
    %cst_154 = arith.constant dense<0.000000e+00> : vector<2x256xf32>
    %604 = tpu.matmul %603, %250, %cst_154 {dimension_numbers = #tpu.dot_dimension_numbers<[1], [0], [0], [1], [0, 0, 1, 1], [], []>} : vector<2x64xbf16>, vector<64x256xbf16>, vector<2x256xf32> -> vector<2x256xf32>
    %605 = arith.addf %602, %604 : vector<2x256xf32>
    %606 = vector.extract_strided_slice %605 {offsets = [0, 0], sizes = [2, 192], strides = [1, 1]} : vector<2x256xf32> to vector<2x192xf32>
    %607 = arith.negf %606 : vector<2x192xf32>
    %608 = math.exp %607 : vector<2x192xf32>
    %cst_155 = arith.constant 1.000000e+00 : f32
    %609 = vector.broadcast %cst_155 : f32 to vector<2x192xf32>
    %610 = arith.addf %609, %608 : vector<2x192xf32>
    %611 = arith.divf %609, %610 : vector<2x192xf32>
    %612 = vector.extract_strided_slice %605 {offsets = [0, 192], sizes = [2, 64], strides = [1, 1]} : vector<2x256xf32> to vector<2x64xf32>
    %613 = math.tanh %612 : vector<2x64xf32>
    %614 = vector.extract_strided_slice %611 {offsets = [0, 0], sizes = [2, 64], strides = [1, 1]} : vector<2x192xf32> to vector<2x64xf32>
    %615 = vector.extract_strided_slice %611 {offsets = [0, 64], sizes = [2, 64], strides = [1, 1]} : vector<2x192xf32> to vector<2x64xf32>
    %616 = vector.extract_strided_slice %611 {offsets = [0, 128], sizes = [2, 64], strides = [1, 1]} : vector<2x192xf32> to vector<2x64xf32>
    %617 = arith.mulf %615, %595 : vector<2x64xf32>
    %618 = arith.mulf %614, %613 : vector<2x64xf32>
    %619 = arith.addf %617, %618 : vector<2x64xf32>
    %620 = math.tanh %619 : vector<2x64xf32>
    %621 = arith.mulf %616, %620 : vector<2x64xf32>
    %c4_156 = arith.constant 4 : index
    %c0_157 = arith.constant 0 : index
    %c0_158 = arith.constant 0 : index
    %622 = vector.load %arg4[%c4_156, %c0_157, %c0_158] : memref<8x2x64xf32, #tpu.memory_space<vmem>>, vector<1x2x64xf32>
    %623 = vector.shape_cast %622 : vector<1x2x64xf32> to vector<2x64xf32>
    %624 = vector.shape_cast %621 : vector<2x64xf32> to vector<1x2x64xf32>
    tpu.vector_store %arg4[%c4_156, %c0_157, %c0_158], %624 {strides = array<i32>} : memref<8x2x64xf32, #tpu.memory_space<vmem>>, vector<1x2x64xf32>,
    %625 = vector.extract_strided_slice %502 {offsets = [5, 0, 0], sizes = [1, 2, 256], strides = [1, 1, 1]} : vector<8x2x256xf32> to vector<1x2x256xf32>
    %626 = vector.shape_cast %625 : vector<1x2x256xf32> to vector<2x256xf32>
    %627 = arith.truncf %621 : vector<2x64xf32> to vector<2x64xbf16>
    %cst_159 = arith.constant dense<0.000000e+00> : vector<2x256xf32>
    %628 = tpu.matmul %627, %250, %cst_159 {dimension_numbers = #tpu.dot_dimension_numbers<[1], [0], [0], [1], [0, 0, 1, 1], [], []>} : vector<2x64xbf16>, vector<64x256xbf16>, vector<2x256xf32> -> vector<2x256xf32>
    %629 = arith.addf %626, %628 : vector<2x256xf32>
    %630 = vector.extract_strided_slice %629 {offsets = [0, 0], sizes = [2, 192], strides = [1, 1]} : vector<2x256xf32> to vector<2x192xf32>
    %631 = arith.negf %630 : vector<2x192xf32>
    %632 = math.exp %631 : vector<2x192xf32>
    %cst_160 = arith.constant 1.000000e+00 : f32
    %633 = vector.broadcast %cst_160 : f32 to vector<2x192xf32>
    %634 = arith.addf %633, %632 : vector<2x192xf32>
    %635 = arith.divf %633, %634 : vector<2x192xf32>
    %636 = vector.extract_strided_slice %629 {offsets = [0, 192], sizes = [2, 64], strides = [1, 1]} : vector<2x256xf32> to vector<2x64xf32>
    %637 = math.tanh %636 : vector<2x64xf32>
    %638 = vector.extract_strided_slice %635 {offsets = [0, 0], sizes = [2, 64], strides = [1, 1]} : vector<2x192xf32> to vector<2x64xf32>
    %639 = vector.extract_strided_slice %635 {offsets = [0, 64], sizes = [2, 64], strides = [1, 1]} : vector<2x192xf32> to vector<2x64xf32>
    %640 = vector.extract_strided_slice %635 {offsets = [0, 128], sizes = [2, 64], strides = [1, 1]} : vector<2x192xf32> to vector<2x64xf32>
    %641 = arith.mulf %639, %619 : vector<2x64xf32>
    %642 = arith.mulf %638, %637 : vector<2x64xf32>
    %643 = arith.addf %641, %642 : vector<2x64xf32>
    %644 = math.tanh %643 : vector<2x64xf32>
    %645 = arith.mulf %640, %644 : vector<2x64xf32>
    %c5_161 = arith.constant 5 : index
    %c0_162 = arith.constant 0 : index
    %c0_163 = arith.constant 0 : index
    %646 = vector.load %arg4[%c5_161, %c0_162, %c0_163] : memref<8x2x64xf32, #tpu.memory_space<vmem>>, vector<1x2x64xf32>
    %647 = vector.shape_cast %646 : vector<1x2x64xf32> to vector<2x64xf32>
    %648 = vector.shape_cast %645 : vector<2x64xf32> to vector<1x2x64xf32>
    tpu.vector_store %arg4[%c5_161, %c0_162, %c0_163], %648 {strides = array<i32>} : memref<8x2x64xf32, #tpu.memory_space<vmem>>, vector<1x2x64xf32>,
    %649 = vector.extract_strided_slice %502 {offsets = [6, 0, 0], sizes = [1, 2, 256], strides = [1, 1, 1]} : vector<8x2x256xf32> to vector<1x2x256xf32>
    %650 = vector.shape_cast %649 : vector<1x2x256xf32> to vector<2x256xf32>
    %651 = arith.truncf %645 : vector<2x64xf32> to vector<2x64xbf16>
    %cst_164 = arith.constant dense<0.000000e+00> : vector<2x256xf32>
    %652 = tpu.matmul %651, %250, %cst_164 {dimension_numbers = #tpu.dot_dimension_numbers<[1], [0], [0], [1], [0, 0, 1, 1], [], []>} : vector<2x64xbf16>, vector<64x256xbf16>, vector<2x256xf32> -> vector<2x256xf32>
    %653 = arith.addf %650, %652 : vector<2x256xf32>
    %654 = vector.extract_strided_slice %653 {offsets = [0, 0], sizes = [2, 192], strides = [1, 1]} : vector<2x256xf32> to vector<2x192xf32>
    %655 = arith.negf %654 : vector<2x192xf32>
    %656 = math.exp %655 : vector<2x192xf32>
    %cst_165 = arith.constant 1.000000e+00 : f32
    %657 = vector.broadcast %cst_165 : f32 to vector<2x192xf32>
    %658 = arith.addf %657, %656 : vector<2x192xf32>
    %659 = arith.divf %657, %658 : vector<2x192xf32>
    %660 = vector.extract_strided_slice %653 {offsets = [0, 192], sizes = [2, 64], strides = [1, 1]} : vector<2x256xf32> to vector<2x64xf32>
    %661 = math.tanh %660 : vector<2x64xf32>
    %662 = vector.extract_strided_slice %659 {offsets = [0, 0], sizes = [2, 64], strides = [1, 1]} : vector<2x192xf32> to vector<2x64xf32>
    %663 = vector.extract_strided_slice %659 {offsets = [0, 64], sizes = [2, 64], strides = [1, 1]} : vector<2x192xf32> to vector<2x64xf32>
    %664 = vector.extract_strided_slice %659 {offsets = [0, 128], sizes = [2, 64], strides = [1, 1]} : vector<2x192xf32> to vector<2x64xf32>
    %665 = arith.mulf %663, %643 : vector<2x64xf32>
    %666 = arith.mulf %662, %661 : vector<2x64xf32>
    %667 = arith.addf %665, %666 : vector<2x64xf32>
    %668 = math.tanh %667 : vector<2x64xf32>
    %669 = arith.mulf %664, %668 : vector<2x64xf32>
    %c6_166 = arith.constant 6 : index
    %c0_167 = arith.constant 0 : index
    %c0_168 = arith.constant 0 : index
    %670 = vector.load %arg4[%c6_166, %c0_167, %c0_168] : memref<8x2x64xf32, #tpu.memory_space<vmem>>, vector<1x2x64xf32>
    %671 = vector.shape_cast %670 : vector<1x2x64xf32> to vector<2x64xf32>
    %672 = vector.shape_cast %669 : vector<2x64xf32> to vector<1x2x64xf32>
    tpu.vector_store %arg4[%c6_166, %c0_167, %c0_168], %672 {strides = array<i32>} : memref<8x2x64xf32, #tpu.memory_space<vmem>>, vector<1x2x64xf32>,
    %673 = vector.extract_strided_slice %502 {offsets = [7, 0, 0], sizes = [1, 2, 256], strides = [1, 1, 1]} : vector<8x2x256xf32> to vector<1x2x256xf32>
    %674 = vector.shape_cast %673 : vector<1x2x256xf32> to vector<2x256xf32>
    %675 = arith.truncf %669 : vector<2x64xf32> to vector<2x64xbf16>
    %cst_169 = arith.constant dense<0.000000e+00> : vector<2x256xf32>
    %676 = tpu.matmul %675, %250, %cst_169 {dimension_numbers = #tpu.dot_dimension_numbers<[1], [0], [0], [1], [0, 0, 1, 1], [], []>} : vector<2x64xbf16>, vector<64x256xbf16>, vector<2x256xf32> -> vector<2x256xf32>
    %677 = arith.addf %674, %676 : vector<2x256xf32>
    %678 = vector.extract_strided_slice %677 {offsets = [0, 0], sizes = [2, 192], strides = [1, 1]} : vector<2x256xf32> to vector<2x192xf32>
    %679 = arith.negf %678 : vector<2x192xf32>
    %680 = math.exp %679 : vector<2x192xf32>
    %cst_170 = arith.constant 1.000000e+00 : f32
    %681 = vector.broadcast %cst_170 : f32 to vector<2x192xf32>
    %682 = arith.addf %681, %680 : vector<2x192xf32>
    %683 = arith.divf %681, %682 : vector<2x192xf32>
    %684 = vector.extract_strided_slice %677 {offsets = [0, 192], sizes = [2, 64], strides = [1, 1]} : vector<2x256xf32> to vector<2x64xf32>
    %685 = math.tanh %684 : vector<2x64xf32>
    %686 = vector.extract_strided_slice %683 {offsets = [0, 0], sizes = [2, 64], strides = [1, 1]} : vector<2x192xf32> to vector<2x64xf32>
    %687 = vector.extract_strided_slice %683 {offsets = [0, 64], sizes = [2, 64], strides = [1, 1]} : vector<2x192xf32> to vector<2x64xf32>
    %688 = vector.extract_strided_slice %683 {offsets = [0, 128], sizes = [2, 64], strides = [1, 1]} : vector<2x192xf32> to vector<2x64xf32>
    %689 = arith.mulf %687, %667 : vector<2x64xf32>
    %690 = arith.mulf %686, %685 : vector<2x64xf32>
    %691 = arith.addf %689, %690 : vector<2x64xf32>
    %692 = math.tanh %691 : vector<2x64xf32>
    %693 = arith.mulf %688, %692 : vector<2x64xf32>
    %c7_171 = arith.constant 7 : index
    %c0_172 = arith.constant 0 : index
    %c0_173 = arith.constant 0 : index
    %694 = vector.load %arg4[%c7_171, %c0_172, %c0_173] : memref<8x2x64xf32, #tpu.memory_space<vmem>>, vector<1x2x64xf32>
    %695 = vector.shape_cast %694 : vector<1x2x64xf32> to vector<2x64xf32>
    %696 = vector.shape_cast %693 : vector<2x64xf32> to vector<1x2x64xf32>
    tpu.vector_store %arg4[%c7_171, %c0_172, %c0_173], %696 {strides = array<i32>} : memref<8x2x64xf32, #tpu.memory_space<vmem>>, vector<1x2x64xf32>,
    %c0_174 = arith.constant 0 : index
    %c0_175 = arith.constant 0 : index
    %c0_176 = arith.constant 0 : index
    %697 = vector.load %arg4[%c0_174, %c0_175, %c0_176] : memref<8x2x64xf32, #tpu.memory_space<vmem>>, vector<8x2x64xf32>
    %cst_177 = arith.constant 0.000000e+00 : f32
    %698 = vector.broadcast %cst_177 : f32 to vector<8x2x64xf32>
    %699 = arith.maximumf %697, %698 : vector<8x2x64xf32>
    %c176 = arith.constant 176 : index
    %c0_178 = arith.constant 0 : index
    %700 = vector.load %arg2[%c176, %c0_178] : memref<192x258xf32, #tpu.memory_space<vmem>>, vector<1x64xf32>
    %701 = vector.shape_cast %700 : vector<1x64xf32> to vector<1x1x64xf32>
    %702 = vector.broadcast %701 : vector<1x1x64xf32> to vector<8x2x64xf32>
    %703 = arith.mulf %699, %702 : vector<8x2x64xf32>
    %cst_179 = arith.constant dense<0.000000e+00> : vector<8x2xf32>
    %704 = vector.multi_reduction <add>, %703, %cst_179 [2] : vector<8x2x64xf32> to vector<8x2xf32>
    %c184 = arith.constant 184 : index
    %c0_180 = arith.constant 0 : index
    %705 = vector.load %arg2[%c184, %c0_180] : memref<192x258xf32, #tpu.memory_space<vmem>>, vector<1x1xf32>
    %706 = vector.broadcast %705 : vector<1x1xf32> to vector<8x2xf32>
    %707 = arith.addf %704, %706 : vector<8x2xf32>
    %708 = arith.negf %707 : vector<8x2xf32>
    %709 = math.exp %708 : vector<8x2xf32>
    %cst_181 = arith.constant 1.000000e+00 : f32
    %710 = vector.broadcast %cst_181 : f32 to vector<8x2xf32>
    %711 = arith.addf %710, %709 : vector<8x2xf32>
    %712 = arith.divf %710, %711 : vector<8x2xf32>
    %713 = tpu.transpose %712, [1, 0] : vector<8x2xf32> -> vector<2x8xf32>
    %c0_182 = arith.constant 0 : index
    %c0_183 = arith.constant 0 : index
    %714 = vector.load %arg3[%c0_182, %c0_183] : memref<2x8xf32, #tpu.memory_space<vmem>>, vector<2x8xf32>
    tpu.vector_store %arg3[%c0_182, %c0_183], %713 {strides = array<i32>} : memref<2x8xf32, #tpu.memory_space<vmem>>, vector<2x8xf32>,
    return
  }
}

</mosaic_0001>

<llo_original>
// kernel: _lambda_.1
$region0: #{_lambda_.1}
  #allocation0 [shape = 'u32[]', space=smem, size = 0x4, offset = 0x4, fixed_abs, tag = 'smem constant byte address 0x4 - core index']
  #allocation1 [shape = 'u32[144,128]{1,0:T(1,128)}', space=vmem, size = 0x12000, scoped, tag = 'internal scratch']
  #allocation2 [shape = 'f32[8,2,64]{2,1,0:T(2,128)}', space=vmem, size = 0x2000, scoped, tag = 'scratch operand']
  %s0 = inlined_call_operand.vmem [shape: f32[2,24,258], index: 0, kind: input, shape index: {}]
  %s1 = inlined_call_operand.vmem [shape: bf16[1104,258], index: 1, kind: input, shape index: {}]
  %s2 = inlined_call_operand.vmem [shape: f32[192,258], index: 2, kind: input, shape index: {}]
  %s3 = inlined_call_operand.hbm [shape: f32[2,8], index: 3, kind: output, shape index: {}]
  %s4 = sld [smem:[#allocation0]]
  $region22: #{_lambda_.1} parent=0
    _
  %s6 = ssub.s32 1, %s4
  %s7 = scalar_select 0, %s6, %s4
  $region1: #{_lambda_.1} parent=0
    #allocation3 [shape = 'u8[1024]{0}', space=vmem, size = 0x400, scoped, tag = 'output window, operand 0, single buffered']
    #allocation4 [shape = 's32[1]{0}', space=sflag, size = 0x4, scoped, tag = 'scoped memory for _lambda_.1']
    %8 = vsyncpa [#allocation4], 0
    // Predicated region
    $region2: #{_lambda_.1} parent=1 // pred_check
      _
    $region3: #{_lambda_.1} parent=1 // pred_check_branch
      %10 = sbr.rel (0) target = $region5
    $region4: #{_lambda_.1} parent=1 // pred_region
      _
    $region5: #{_lambda_.1} parent=1 // pred_fallthru
      _
    // Predicated region
    $region6: #{_lambda_.1} parent=1 // pred_check
      _
    $region7: #{_lambda_.1} parent=1 // pred_check_branch
      %12 = sbr.rel (0) target = $region9
    $region8: #{_lambda_.1} parent=1 // pred_region
      _
    $region9: #{_lambda_.1} parent=1 // pred_fallthru
      _
    // Predicated region
    $region10: #{_lambda_.1} parent=1 // pred_check
      _
    $region11: #{_lambda_.1} parent=1 // pred_check_branch
      %14 = sbr.rel (0) target = $region13
    $region12: #{_lambda_.1} parent=1 // pred_region
      _
    $region13: #{_lambda_.1} parent=1 // pred_fallthru
      _
    %v16 = vld [vmem:[%s0] sm:$0xff]
    %v17 = vld [vmem:[%s0 + $0x8] sm:$0xff]
    %v18 = vld [vmem:[%s0 + $0x10] sm:$0xff]
    %v19 = vld [vmem:[%s0 + $0x18] sm:$0xff]
    %v20 = vld [vmem:[%s0 + $0x20] sm:$0xff]
    %v21 = vld [vmem:[%s0 + $0x28] sm:$0xff]
    %v22 = vld [vmem:[%s0 + $0x30] sm:$0xff]
    %v23 = vld [vmem:[%s0 + $0x38] sm:$0xff]
    %v24 = vld [vmem:[%s0 + $0x40] sm:$0xff]
    %v25 = vld [vmem:[%s0 + $0x48] sm:$0xff]
    %v26 = vld [vmem:[%s0 + $0x50] sm:$0xff]
    %v27 = vld [vmem:[%s0 + $0x58] sm:$0xff]
    %v28 = vld [vmem:[%s0 + $0x60] sm:$0xff]
    %v29 = vld [vmem:[%s0 + $0x68] sm:$0xff]
    %v30 = vld [vmem:[%s0 + $0x70] sm:$0xff]
    %v31 = vld [vmem:[%s0 + $0x78] sm:$0xff]
    %v32 = vld [vmem:[%s0 + $0x80] sm:$0xff]
    %v33 = vld [vmem:[%s0 + $0x88] sm:$0xff]
    %v34 = vld [vmem:[%s2] sm:$0x1f]
    %v35 = vld [vmem:[%s2 + $0x8] sm:$0x1f]
    %v36 = vld [vmem:[%s2 + $0x10] sm:$0x1f]
    %s37 = scalar_lea.vmem %s2, 24
    %v38 = vld [vmem:[%s37] ss:$8 sm:$0x7]
    %v39 = vld [vmem:[%s1] sm:$0xf]
    %v40 = vld [vmem:[%s1 + $0xc] sm:$0xf]
    %v41 = vld [vmem:[%s1 + $0x18] sm:$0xf]
    %v42 = vld [vmem:[%s1 + $0x24] sm:$0xf]
    %v43 = vld [vmem:[%s1 + $0x30] sm:$0xf]
    %v44 = vld [vmem:[%s1 + $0x3c] sm:$0xf]
    %v45 = vld [vmem:[%s1 + $0x48] sm:$0xf]
    %v46 = vld [vmem:[%s1 + $0x54] sm:$0xf]
    %v47 = vld [vmem:[%s1 + $0x60] sm:$0xf]
    %v48 = vld [vmem:[%s1 + $0x6c] sm:$0xf]
    %v49 = vld [vmem:[%s1 + $0x78] sm:$0xf]
    %v50 = vld [vmem:[%s1 + $0x84] sm:$0xf]
    %v51 = vld [vmem:[%s1 + $0x90] sm:$0xf]
    %v52 = vld [vmem:[%s1 + $0x9c] sm:$0xf]
    %v53 = vld [vmem:[%s1 + $0xa8] sm:$0xf]
    %v54 = vld [vmem:[%s1 + $0xb4] sm:$0xf]
    %v55 = vld [vmem:[%s1 + $0xc0] sm:$0xf]
    %v56 = vld [vmem:[%s1 + $0xcc] sm:$0xf]
    %v57 = vld [vmem:[%s1 + $0xd8] sm:$0xf]
    %v58 = vld [vmem:[%s1 + $0xe4] sm:$0xf]
    %v59 = vld [vmem:[%s1 + $0xf0] sm:$0xf]
    %v60 = vld [vmem:[%s1 + $0xfc] sm:$0xf]
    %v61 = vld [vmem:[%s1 + $0x108] sm:$0xf]
    %v62 = vld [vmem:[%s1 + $0x114] sm:$0xf]
    %v63 = vld [vmem:[%s1 + $0x120] sm:$0xf]
    %v64 = vld [vmem:[%s1 + $0x12c] sm:$0xf]
    %v65 = vld [vmem:[%s1 + $0x138] sm:$0xf]
    %v66 = vld [vmem:[%s1 + $0x144] sm:$0xf]
    %v67 = vld [vmem:[%s1 + $0x150] sm:$0xf]
    %v68 = vld [vmem:[%s1 + $0x15c] sm:$0xf]
    %v69 = vld [vmem:[%s1 + $0x168] sm:$0xf]
    %v70 = vld [vmem:[%s1 + $0x174] sm:$0xf]
    %v71 = vld [vmem:[%s1 + $0x180] sm:$0x1]
    %v72 = vld [vmem:[%s2 + $0x30] ss:$0 sm:$0xff]
    %v73 = vld [vmem:[%s1 + $0x198] sm:$0xff]
    %v74 = vld [vmem:[%s1 + $0x1a0] sm:$0xf]
    %v75 = vld [vmem:[%s1 + $0x1a4] sm:$0xff]
    %v76 = vld [vmem:[%s1 + $0x1ac] sm:$0xf]
    %s77 = scalar_lea.vmem %s2, 72
    %v78 = vld [vmem:[%s77] ss:$8 sm:$0x7]
    %v79 = vlaneseq
    %v80 = vshrl.u32 %v79, 7
    %v81 = vsub.s32 0, %v80
    %v82 = vrot.slane %v34, %v81
    %v83 = vlaneseq
    %v84 = vshrl.u32 %v83, 7
    %v85 = vsub.s32 0, %v84
    %v86 = vrot.slane %v35, %v85
    %v87 = vlaneseq
    %v88 = vshrl.u32 %v87, 7
    %v89 = vsub.s32 0, %v88
    %v90 = vrot.slane %v36, %v89
    %v91 = vmul.f32 %v16, %v82
    %v92 = vmul.f32 %v17, %v86
    %v93 = vmul.f32 %v18, %v90
    %v94 = vmul.f32 %v19, %v82
    %v95 = vmul.f32 %v20, %v86
    %v96 = vmul.f32 %v21, %v90
    %v97 = vmul.f32 %v22, %v82
    %v98 = vmul.f32 %v23, %v86
    %v99 = vmul.f32 %v24, %v90
    %v100 = vmul.f32 %v25, %v82
    %v101 = vmul.f32 %v26, %v86
    %v102 = vmul.f32 %v27, %v90
    %v103 = vmul.f32 %v28, %v82
    %v104 = vmul.f32 %v29, %v86
    %v105 = vmul.f32 %v30, %v90
    %v106 = vmul.f32 %v31, %v82
    %v107 = vmul.f32 %v32, %v86
    %v108 = vmul.f32 %v33, %v90
    %v109 = vlaneseq
    %v110 = vshrl.u32 %v109, 7
    %v111 = vsub.s32 1, %v110
    %v112 = vrot.slane %v34, %v111
    %v113 = vlaneseq
    %v114 = vshrl.u32 %v113, 7
    %v115 = vsub.s32 1, %v114
    %v116 = vrot.slane %v35, %v115
    %v117 = vlaneseq
    %v118 = vshrl.u32 %v117, 7
    %v119 = vsub.s32 1, %v118
    %v120 = vrot.slane %v36, %v119
    %v121 = vmul.f32 %v16, %v112
    %v122 = vmul.f32 %v17, %v116
    %v123 = vmul.f32 %v18, %v120
    %v124 = vmul.f32 %v19, %v112
    %v125 = vmul.f32 %v20, %v116
    %v126 = vmul.f32 %v21, %v120
    %v127 = vmul.f32 %v22, %v112
    %v128 = vmul.f32 %v23, %v116
    %v129 = vmul.f32 %v24, %v120
    %v130 = vmul.f32 %v25, %v112
    %v131 = vmul.f32 %v26, %v116
    %v132 = vmul.f32 %v27, %v120
    %v133 = vmul.f32 %v28, %v112
    %v134 = vmul.f32 %v29, %v116
    %v135 = vmul.f32 %v30, %v120
    %v136 = vmul.f32 %v31, %v112
    %v137 = vmul.f32 %v32, %v116
    %v138 = vmul.f32 %v33, %v120
    %vm157 = vcmask 1046528
    %v158 = vrot.slane %v121, 1
    %v159 = vrot.slane %v124, 1
    %v160 = vsel %vm157, %v158, %v159
    %v161 = vrot.slane %v122, 1
    %v162 = vrot.slane %v125, 1
    %v163 = vsel %vm157, %v161, %v162
    %v164 = vrot.slane %v123, 1
    %v165 = vrot.slane %v126, 1
    %v166 = vsel %vm157, %v164, %v165
    %v167 = vrot.slane %v127, 1
    %v168 = vsel %vm157, %v159, %v167
    %v169 = vrot.slane %v128, 1
    %v170 = vsel %vm157, %v162, %v169
    %v171 = vrot.slane %v129, 1
    %v172 = vsel %vm157, %v165, %v171
    %v173 = vrot.slane %v130, 1
    %v174 = vrot.slane %v133, 1
    %v175 = vsel %vm157, %v173, %v174
    %v176 = vrot.slane %v131, 1
    %v177 = vrot.slane %v134, 1
    %v178 = vsel %vm157, %v176, %v177
    %v179 = vrot.slane %v132, 1
    %v180 = vrot.slane %v135, 1
    %v181 = vsel %vm157, %v179, %v180
    %v182 = vrot.slane %v136, 1
    %v183 = vsel %vm157, %v174, %v182
    %v184 = vrot.slane %v137, 1
    %v185 = vsel %vm157, %v177, %v184
    %v186 = vrot.slane %v138, 1
    %v187 = vsel %vm157, %v180, %v186
    %v206 = vadd.f32 %v91, %v160
    %v207 = vadd.f32 %v92, %v163
    %v208 = vadd.f32 %v93, %v166
    %v209 = vadd.f32 %v94, %v168
    %v210 = vadd.f32 %v95, %v170
    %v211 = vadd.f32 %v96, %v172
    %v212 = vadd.f32 %v97, %v167
    %v213 = vadd.f32 %v98, %v169
    %v214 = vadd.f32 %v99, %v171
    %v215 = vadd.f32 %v100, %v175
    %v216 = vadd.f32 %v101, %v178
    %v217 = vadd.f32 %v102, %v181
    %v218 = vadd.f32 %v103, %v183
    %v219 = vadd.f32 %v104, %v185
    %v220 = vadd.f32 %v105, %v187
    %v221 = vadd.f32 %v106, %v182
    %v222 = vadd.f32 %v107, %v184
    %v223 = vadd.f32 %v108, %v186
    %v224 = vlaneseq
    %v225 = vshrl.u32 %v224, 7
    %v226 = vsub.s32 2, %v225
    %v227 = vrot.slane %v34, %v226
    %v228 = vlaneseq
    %v229 = vshrl.u32 %v228, 7
    %v230 = vsub.s32 2, %v229
    %v231 = vrot.slane %v35, %v230
    %v232 = vlaneseq
    %v233 = vshrl.u32 %v232, 7
    %v234 = vsub.s32 2, %v233
    %v235 = vrot.slane %v36, %v234
    %v236 = vmul.f32 %v16, %v227
    %v237 = vmul.f32 %v17, %v231
    %v238 = vmul.f32 %v18, %v235
    %v239 = vmul.f32 %v19, %v227
    %v240 = vmul.f32 %v20, %v231
    %v241 = vmul.f32 %v21, %v235
    %v242 = vmul.f32 %v22, %v227
    %v243 = vmul.f32 %v23, %v231
    %v244 = vmul.f32 %v24, %v235
    %v245 = vmul.f32 %v25, %v227
    %v246 = vmul.f32 %v26, %v231
    %v247 = vmul.f32 %v27, %v235
    %v248 = vmul.f32 %v28, %v227
    %v249 = vmul.f32 %v29, %v231
    %v250 = vmul.f32 %v30, %v235
    %v251 = vmul.f32 %v31, %v227
    %v252 = vmul.f32 %v32, %v231
    %v253 = vmul.f32 %v33, %v235
    %vm272 = vcmask 1045504
    %v273 = vrot.slane %v236, 2
    %v274 = vrot.slane %v239, 2
    %v275 = vsel %vm272, %v273, %v274
    %v276 = vrot.slane %v237, 2
    %v277 = vrot.slane %v240, 2
    %v278 = vsel %vm272, %v276, %v277
    %v279 = vrot.slane %v238, 2
    %v280 = vrot.slane %v241, 2
    %v281 = vsel %vm272, %v279, %v280
    %v282 = vrot.slane %v242, 2
    %v283 = vsel %vm272, %v274, %v282
    %v284 = vrot.slane %v243, 2
    %v285 = vsel %vm272, %v277, %v284
    %v286 = vrot.slane %v244, 2
    %v287 = vsel %vm272, %v280, %v286
    %v288 = vrot.slane %v245, 2
    %v289 = vrot.slane %v248, 2
    %v290 = vsel %vm272, %v288, %v289
    %v291 = vrot.slane %v246, 2
    %v292 = vrot.slane %v249, 2
    %v293 = vsel %vm272, %v291, %v292
    %v294 = vrot.slane %v247, 2
    %v295 = vrot.slane %v250, 2
    %v296 = vsel %vm272, %v294, %v295
    %v297 = vrot.slane %v251, 2
    %v298 = vsel %vm272, %v289, %v297
    %v299 = vrot.slane %v252, 2
    %v300 = vsel %vm272, %v292, %v299
    %v301 = vrot.slane %v253, 2
    %v302 = vsel %vm272, %v295, %v301
    %v321 = vadd.f32 %v206, %v275
    %v322 = vadd.f32 %v207, %v278
    %v323 = vadd.f32 %v208, %v281
    %v324 = vadd.f32 %v209, %v283
    %v325 = vadd.f32 %v210, %v285
    %v326 = vadd.f32 %v211, %v287
    %v327 = vadd.f32 %v212, %v282
    %v328 = vadd.f32 %v213, %v284
    %v329 = vadd.f32 %v214, %v286
    %v330 = vadd.f32 %v215, %v290
    %v331 = vadd.f32 %v216, %v293
    %v332 = vadd.f32 %v217, %v296
    %v333 = vadd.f32 %v218, %v298
    %v334 = vadd.f32 %v219, %v300
    %v335 = vadd.f32 %v220, %v302
    %v336 = vadd.f32 %v221, %v297
    %v337 = vadd.f32 %v222, %v299
    %v338 = vadd.f32 %v223, %v301
    %v339 = vlaneseq
    %v340 = vshrl.u32 %v339, 7
    %v341 = vsub.s32 3, %v340
    %v342 = vrot.slane %v34, %v341
    %v343 = vlaneseq
    %v344 = vshrl.u32 %v343, 7
    %v345 = vsub.s32 3, %v344
    %v346 = vrot.slane %v35, %v345
    %v347 = vlaneseq
    %v348 = vshrl.u32 %v347, 7
    %v349 = vsub.s32 3, %v348
    %v350 = vrot.slane %v36, %v349
    %v351 = vmul.f32 %v16, %v342
    %v352 = vmul.f32 %v17, %v346
    %v353 = vmul.f32 %v18, %v350
    %v354 = vmul.f32 %v19, %v342
    %v355 = vmul.f32 %v20, %v346
    %v356 = vmul.f32 %v21, %v350
    %v357 = vmul.f32 %v22, %v342
    %v358 = vmul.f32 %v23, %v346
    %v359 = vmul.f32 %v24, %v350
    %v360 = vmul.f32 %v25, %v342
    %v361 = vmul.f32 %v26, %v346
    %v362 = vmul.f32 %v27, %v350
    %v363 = vmul.f32 %v28, %v342
    %v364 = vmul.f32 %v29, %v346
    %v365 = vmul.f32 %v30, %v350
    %v366 = vmul.f32 %v31, %v342
    %v367 = vmul.f32 %v32, %v346
    %v368 = vmul.f32 %v33, %v350
    %vm387 = vcmask 1044480
    %v388 = vrot.slane %v351, 3
    %v389 = vrot.slane %v354, 3
    %v390 = vsel %vm387, %v388, %v389
    %v391 = vrot.slane %v352, 3
    %v392 = vrot.slane %v355, 3
    %v393 = vsel %vm387, %v391, %v392
    %v394 = vrot.slane %v353, 3
    %v395 = vrot.slane %v356, 3
    %v396 = vsel %vm387, %v394, %v395
    %v397 = vrot.slane %v357, 3
    %v398 = vsel %vm387, %v389, %v397
    %v399 = vrot.slane %v358, 3
    %v400 = vsel %vm387, %v392, %v399
    %v401 = vrot.slane %v359, 3
    %v402 = vsel %vm387, %v395, %v401
    %v403 = vrot.slane %v360, 3
    %v404 = vrot.slane %v363, 3
    %v405 = vsel %vm387, %v403, %v404
    %v406 = vrot.slane %v361, 3
    %v407 = vrot.slane %v364, 3
    %v408 = vsel %vm387, %v406, %v407
    %v409 = vrot.slane %v362, 3
    %v410 = vrot.slane %v365, 3
    %v411 = vsel %vm387, %v409, %v410
    %v412 = vrot.slane %v366, 3
    %v413 = vsel %vm387, %v404, %v412
    %v414 = vrot.slane %v367, 3
    %v415 = vsel %vm387, %v407, %v414
    %v416 = vrot.slane %v368, 3
    %v417 = vsel %vm387, %v410, %v416
    %v436 = vadd.f32 %v321, %v390
    %v437 = vadd.f32 %v322, %v393
    %v438 = vadd.f32 %v323, %v396
    %v439 = vadd.f32 %v324, %v398
    %v440 = vadd.f32 %v325, %v400
    %v441 = vadd.f32 %v326, %v402
    %v442 = vadd.f32 %v327, %v397
    %v443 = vadd.f32 %v328, %v399
    %v444 = vadd.f32 %v329, %v401
    %v445 = vadd.f32 %v330, %v405
    %v446 = vadd.f32 %v331, %v408
    %v447 = vadd.f32 %v332, %v411
    %v448 = vadd.f32 %v333, %v413
    %v449 = vadd.f32 %v334, %v415
    %v450 = vadd.f32 %v335, %v417
    %v451 = vadd.f32 %v336, %v412
    %v452 = vadd.f32 %v337, %v414
    %v453 = vadd.f32 %v338, %v416
    %v454 = vlaneseq
    %v455 = vshrl.u32 %v454, 7
    %v456 = vsub.s32 4, %v455
    %v457 = vrot.slane %v34, %v456
    %v458 = vlaneseq
    %v459 = vshrl.u32 %v458, 7
    %v460 = vsub.s32 4, %v459
    %v461 = vrot.slane %v35, %v460
    %v462 = vlaneseq
    %v463 = vshrl.u32 %v462, 7
    %v464 = vsub.s32 4, %v463
    %v465 = vrot.slane %v36, %v464
    %v466 = vmul.f32 %v16, %v457
    %v467 = vmul.f32 %v17, %v461
    %v468 = vmul.f32 %v18, %v465
    %v469 = vmul.f32 %v19, %v457
    %v470 = vmul.f32 %v20, %v461
    %v471 = vmul.f32 %v21, %v465
    %v472 = vmul.f32 %v22, %v457
    %v473 = vmul.f32 %v23, %v461
    %v474 = vmul.f32 %v24, %v465
    %v475 = vmul.f32 %v25, %v457
    %v476 = vmul.f32 %v26, %v461
    %v477 = vmul.f32 %v27, %v465
    %v478 = vmul.f32 %v28, %v457
    %v479 = vmul.f32 %v29, %v461
    %v480 = vmul.f32 %v30, %v465
    %v481 = vmul.f32 %v31, %v457
    %v482 = vmul.f32 %v32, %v461
    %v483 = vmul.f32 %v33, %v465
    %vm502 = vcmask 1043456
    %v503 = vrot.slane %v466, 4
    %v504 = vrot.slane %v469, 4
    %v505 = vsel %vm502, %v503, %v504
    %v506 = vrot.slane %v467, 4
    %v507 = vrot.slane %v470, 4
    %v508 = vsel %vm502, %v506, %v507
    %v509 = vrot.slane %v468, 4
    %v510 = vrot.slane %v471, 4
    %v511 = vsel %vm502, %v509, %v510
    %v512 = vrot.slane %v472, 4
    %v513 = vsel %vm502, %v504, %v512
    %v514 = vrot.slane %v473, 4
    %v515 = vsel %vm502, %v507, %v514
    %v516 = vrot.slane %v474, 4
    %v517 = vsel %vm502, %v510, %v516
    %v518 = vrot.slane %v475, 4
    %v519 = vrot.slane %v478, 4
    %v520 = vsel %vm502, %v518, %v519
    %v521 = vrot.slane %v476, 4
    %v522 = vrot.slane %v479, 4
    %v523 = vsel %vm502, %v521, %v522
    %v524 = vrot.slane %v477, 4
    %v525 = vrot.slane %v480, 4
    %v526 = vsel %vm502, %v524, %v525
    %v527 = vrot.slane %v481, 4
    %v528 = vsel %vm502, %v519, %v527
    %v529 = vrot.slane %v482, 4
    %v530 = vsel %vm502, %v522, %v529
    %v531 = vrot.slane %v483, 4
    %v532 = vsel %vm502, %v525, %v531
    %v551 = vadd.f32 %v436, %v505
    %v552 = vadd.f32 %v437, %v508
    %v553 = vadd.f32 %v438, %v511
    %v554 = vadd.f32 %v439, %v513
    %v555 = vadd.f32 %v440, %v515
    %v556 = vadd.f32 %v441, %v517
    %v557 = vadd.f32 %v442, %v512
    %v558 = vadd.f32 %v443, %v514
    %v559 = vadd.f32 %v444, %v516
    %v560 = vadd.f32 %v445, %v520
    %v561 = vadd.f32 %v446, %v523
    %v562 = vadd.f32 %v447, %v526
    %v563 = vadd.f32 %v448, %v528
    %v564 = vadd.f32 %v449, %v530
    %v565 = vadd.f32 %v450, %v532
    %v566 = vadd.f32 %v451, %v527
    %v567 = vadd.f32 %v452, %v529
    %v568 = vadd.f32 %v453, %v531
    %v570 = vlaneseq
    %v571 = vshrl.u32 %v570, 7
    %v572 = vsub.s32 0, %v571
    %v573 = vrot.slane %v38, %v572
    %v574 = vlaneseq
    %v575 = vshrl.u32 %v574, 7
    %v576 = vsub.s32 1, %v575
    %v577 = vrot.slane %v38, %v576
    %v578 = vlaneseq
    %v579 = vshrl.u32 %v578, 7
    %v580 = vsub.s32 2, %v579
    %v581 = vrot.slane %v38, %v580
    %v585 = vadd.f32 %v551, %v573
    %v586 = vadd.f32 %v552, %v577
    %v587 = vadd.f32 %v553, %v581
    %v588 = vadd.f32 %v554, %v573
    %v589 = vadd.f32 %v555, %v577
    %v590 = vadd.f32 %v556, %v581
    %v591 = vadd.f32 %v557, %v573
    %v592 = vadd.f32 %v558, %v577
    %v593 = vadd.f32 %v559, %v581
    %v594 = vadd.f32 %v560, %v573
    %v595 = vadd.f32 %v561, %v577
    %v596 = vadd.f32 %v562, %v581
    %v597 = vadd.f32 %v563, %v573
    %v598 = vadd.f32 %v564, %v577
    %v599 = vadd.f32 %v565, %v581
    %v600 = vadd.f32 %v566, %v573
    %v601 = vadd.f32 %v567, %v577
    %v602 = vadd.f32 %v568, %v581
    %v603 = vmax.f32 %v585, 0.0
    %v604 = vmax.f32 %v586, 0.0
    %v605 = vmax.f32 %v587, 0.0
    %v606 = vmax.f32 %v588, 0.0
    %v607 = vmax.f32 %v589, 0.0
    %v608 = vmax.f32 %v590, 0.0
    %v609 = vmax.f32 %v591, 0.0
    %v610 = vmax.f32 %v592, 0.0
    %v611 = vmax.f32 %v593, 0.0
    %v612 = vmax.f32 %v594, 0.0
    %v613 = vmax.f32 %v595, 0.0
    %v614 = vmax.f32 %v596, 0.0
    %v615 = vmax.f32 %v597, 0.0
    %v616 = vmax.f32 %v598, 0.0
    %v617 = vmax.f32 %v599, 0.0
    %v618 = vmax.f32 %v600, 0.0
    %v619 = vmax.f32 %v601, 0.0
    %v620 = vmax.f32 %v602, 0.0
    %v639 = vcombine.low %v603, %v604
    %v640 = vcombine.high %v603, %v604
    %v641 = vcombine.high %v605, %v605
    %v642 = vcombine.low %v606, %v607
    %v643 = vcombine.high %v606, %v607
    %v644 = vcombine.high %v608, %v608
    %v645 = vcombine.low %v609, %v610
    %v646 = vcombine.low %v612, %v613
    %v647 = vcombine.high %v612, %v613
    %v648 = vcombine.high %v614, %v614
    %v649 = vcombine.low %v615, %v616
    %v650 = vcombine.high %v615, %v616
    %v651 = vcombine.high %v617, %v617
    %v652 = vcombine.low %v618, %v619
    %v653 = vcombine.low %v639, %v640
    %v654 = vcombine.high %v639, %v640
    %v655 = vcombine.low %v605, %v641
    %v656 = vcombine.low %v642, %v643
    %v657 = vcombine.high %v642, %v643
    %v658 = vcombine.low %v608, %v644
    %v659 = vcombine.low %v645, %v646
    %v660 = vcombine.high %v645, %v646
    %v661 = vcombine.low %v611, %v614
    %v662 = vcombine.low %v647, %v649
    %v663 = vcombine.high %v647, %v649
    %v664 = vcombine.low %v648, %v617
    %v665 = vcombine.low %v650, %v652
    %v666 = vcombine.high %v650, %v652
    %v667 = vcombine.low %v651, %v620
    %v683 = vpack.c.bf16 %v656, %v653
    %v684 = vpack.c.bf16 %v657, %v654
    %v685 = vpack.c.bf16 %v658, %v655
    %v686 = vpack.c.bf16 %v662, %v659
    %v687 = vpack.c.bf16 %v663, %v660
    %v688 = vpack.c.bf16 %v664, %v661
    %v689 = vpack.c.bf16 %v665, %v665
    %v690 = vpack.c.bf16 %v666, %v666
    %v691 = vpack.c.bf16 %v667, %v667
    %v725 = vunpack.c.l.b16 %v39
    %v726 = vunpack.c.l.b16 %v40
    %v727 = vunpack.c.l.b16 %v41
    %v728 = vunpack.c.l.b16 %v42
    %v729 = vunpack.c.l.b16 %v43
    %v730 = vunpack.c.l.b16 %v44
    %v731 = vunpack.c.l.b16 %v45
    %v732 = vunpack.c.l.b16 %v46
    %v733 = vunpack.c.l.b16 %v47
    %v734 = vunpack.c.l.b16 %v48
    %v735 = vunpack.c.l.b16 %v49
    %v736 = vunpack.c.l.b16 %v50
    %v737 = vunpack.c.l.b16 %v51
    %v738 = vunpack.c.l.b16 %v52
    %v739 = vunpack.c.l.b16 %v53
    %v740 = vunpack.c.l.b16 %v54
    %v741 = vunpack.c.l.b16 %v55
    %v742 = vunpack.c.l.b16 %v56
    %v743 = vunpack.c.l.b16 %v57
    %v744 = vunpack.c.l.b16 %v58
    %v745 = vunpack.c.l.b16 %v59
    %v746 = vunpack.c.l.b16 %v60
    %v747 = vunpack.c.l.b16 %v61
    %v748 = vunpack.c.l.b16 %v62
    %v749 = vunpack.c.l.b16 %v63
    %v750 = vunpack.c.l.b16 %v64
    %v751 = vunpack.c.l.b16 %v65
    %v752 = vunpack.c.l.b16 %v66
    %v753 = vunpack.c.l.b16 %v67
    %v754 = vunpack.c.l.b16 %v68
    %v755 = vunpack.c.l.b16 %v69
    %v756 = vunpack.c.l.b16 %v70
    %v757 = vunpack.c.l.b16 %v71
    %v758 = vpack.c.b16 %v726, %v725
    %v759 = vpack.c.b16 %v728, %v727
    %v760 = vpack.c.b16 %v730, %v729
    %v761 = vpack.c.b16 %v732, %v731
    %v762 = vpack.c.b16 %v734, %v733
    %v763 = vpack.c.b16 %v736, %v735
    %v764 = vpack.c.b16 %v738, %v737
    %v765 = vpack.c.b16 %v740, %v739
    %v766 = vpack.c.b16 %v742, %v741
    %v767 = vpack.c.b16 %v744, %v743
    %v768 = vpack.c.b16 %v746, %v745
    %v769 = vpack.c.b16 %v748, %v747
    %v770 = vpack.c.b16 %v750, %v749
    %v771 = vpack.c.b16 %v752, %v751
    %v772 = vpack.c.b16 %v754, %v753
    %v773 = vpack.c.b16 %v756, %v755
    %v774 = vpack.c.b16 %v757, %v757
    %vm791 = vcmask 15360
    %v793 = vsel %vm791, %v685, 0
    %v796 = vsel %vm791, %v688, 0
    %v799 = vsel %vm791, %v691, 0
    %vm801 = vcmask 1040384
    %v803 = vsel %vm801, %v774, 0
    %805 = vmatprep.subr.bf16.mxu0 0
    %806 = vmatpush1.bf16.msra.mxu0 %v758
    %807 = vmatprep.subr.bf16.mxu0 0
    %808 = vmatpush1.bf16.msra.mxu0 %v759
    %809 = vmatprep.subr.bf16.mxu0 0
    %810 = vmatpush1.bf16.msra.mxu0 %v760
    %811 = vmatprep.subr.bf16.mxu0 0
    %812 = vmatpush1.bf16.msra.mxu0 %v761
    %813 = vmatprep.subr.bf16.mxu0 0
    %814 = vmatpush1.bf16.msra.mxu0 %v762
    %815 = vmatprep.subr.bf16.mxu0 0
    %816 = vmatpush1.bf16.msra.mxu0 %v763
    %817 = vmatprep.subr.bf16.mxu0 0
    %818 = vmatpush1.bf16.msra.mxu0 %v764
    %819 = vmatprep.subr.bf16.mxu0 0
    %820 = vmatpush1.bf16.msra.mxu0 %v765
    %821 = vmatprep.subr.bf16.mxu0 0
    %822 = vmatpush1.bf16.msra.mxu0 %v766
    %823 = vmatprep.subr.bf16.mxu0 0
    %824 = vmatpush1.bf16.msra.mxu0 %v767
    %825 = vmatprep.subr.bf16.mxu0 0
    %826 = vmatpush1.bf16.msra.mxu0 %v768
    %827 = vmatprep.subr.bf16.mxu0 0
    %828 = vmatpush1.bf16.msra.mxu0 %v769
    %829 = vmatprep.subr.bf16.mxu0 0
    %830 = vmatpush1.bf16.msra.mxu0 %v770
    %831 = vmatprep.subr.bf16.mxu0 0
    %832 = vmatpush1.bf16.msra.mxu0 %v771
    %833 = vmatprep.subr.bf16.mxu0 0
    %834 = vmatpush1.bf16.msra.mxu0 %v772
    %835 = vmatprep.subr.bf16.mxu0 0
    %836 = vmatpush1.bf16.msra.mxu0 %v773
    %837 = vmatprep.mubr.bf16.mxu0 %v684
    %838 = vmatmul.mubr.bf16.gmra.mrb[0].mxu0 %v683
    %v839 = vpop.f32.mrb[0].mxu0
    %v840 = vadd.f32 %v72, %v839
    %v841 = vpop.f32.mrb[0].mxu0
    %v842 = vpop.f32.mrb[0].mxu0
    %v843 = vadd.f32 %v72, %v842
    %v844 = vpop.f32.mrb[0].mxu0
    %845 = vmatprep.mubr.bf16.mxu0 %v687
    %846 = vmatmul.mubr.bf16.gmra.mrb[0].mxu0 %v686
    %v847 = vpop.f32.mrb[0].mxu0
    %v848 = vadd.f32 %v72, %v847
    %v849 = vpop.f32.mrb[0].mxu0
    %v850 = vpop.f32.mrb[0].mxu0
    %v851 = vadd.f32 %v72, %v850
    %v852 = vpop.f32.mrb[0].mxu0
    %853 = vmatprep.mubr.bf16.mxu0 %v690
    %854 = vmatmul.mubr.bf16.gmra.mrb[0].mxu0 %v689
    %v855 = vpop.f32.mrb[0].mxu0
    %v856 = vadd.f32 %v72, %v855
    %v857 = vpop.f32.mrb[0].mxu0
    %v858 = vpop.f32.mrb[0].mxu0
    %v859 = vpop.f32.mrb[0].mxu0
    %860 = vdwg.mxu0
    %861 = vmatprep.subr.bf16.mxu0 0
    %862 = vmatpush1.bf16.msra.mxu0 %v803
    %863 = vmatprep.subr.bf16.mxu0 0
    %864 = vmatpush1.bf16.msra.mxu0 0
    %865 = vmatprep.subr.bf16.mxu0 0
    %866 = vmatpush1.bf16.msra.mxu0 0
    %867 = vmatprep.subr.bf16.mxu0 0
    %868 = vmatpush1.bf16.msra.mxu0 0
    %869 = vmatprep.subr.bf16.mxu0 0
    %870 = vmatpush1.bf16.msra.mxu0 0
    %871 = vmatprep.subr.bf16.mxu0 0
    %872 = vmatpush1.bf16.msra.mxu0 0
    %873 = vmatprep.subr.bf16.mxu0 0
    %874 = vmatpush1.bf16.msra.mxu0 0
    %875 = vmatprep.subr.bf16.mxu0 0
    %876 = vmatpush1.bf16.msra.mxu0 0
    %877 = vmatprep.subr.bf16.mxu0 0
    %878 = vmatpush1.bf16.msra.mxu0 0
    %879 = vmatprep.subr.bf16.mxu0 0
    %880 = vmatpush1.bf16.msra.mxu0 0
    %881 = vmatprep.subr.bf16.mxu0 0
    %882 = vmatpush1.bf16.msra.mxu0 0
    %883 = vmatprep.subr.bf16.mxu0 0
    %884 = vmatpush1.bf16.msra.mxu0 0
    %885 = vmatprep.subr.bf16.mxu0 0
    %886 = vmatpush1.bf16.msra.mxu0 0
    %887 = vmatprep.subr.bf16.mxu0 0
    %888 = vmatpush1.bf16.msra.mxu0 0
    %889 = vmatprep.subr.bf16.mxu0 0
    %890 = vmatpush1.bf16.msra.mxu0 0
    %891 = vmatprep.subr.bf16.mxu0 0
    %892 = vmatpush1.bf16.msra.mxu0 0
    %893 = vmatprep.mubr.bf16.mxu0 0
    %894 = vmatmul.mubr.bf16.gmra.mrb[0].mxu0 %v793
    %v895 = vpop.f32.mrb[0].mxu0
    %v896 = vadd.f32 %v840, %v895
    %v897 = vpop.f32.mrb[0].mxu0
    %v898 = vpop.f32.mrb[0].mxu0
    %v899 = vadd.f32 %v843, %v898
    %v900 = vpop.f32.mrb[0].mxu0
    %901 = vmatprep.mubr.bf16.mxu0 0
    %902 = vmatmul.mubr.bf16.gmra.mrb[0].mxu0 %v796
    %v903 = vpop.f32.mrb[0].mxu0
    %v904 = vadd.f32 %v848, %v903
    %v905 = vpop.f32.mrb[0].mxu0
    %v906 = vpop.f32.mrb[0].mxu0
    %v907 = vadd.f32 %v851, %v906
    %v908 = vpop.f32.mrb[0].mxu0
    %909 = vmatprep.mubr.bf16.mxu0 0
    %910 = vmatmul.mubr.bf16.gmra.mrb[0].mxu0 %v799
    %v911 = vpop.f32.mrb[0].mxu0
    %v912 = vadd.f32 %v856, %v911
    %v913 = vpop.f32.mrb[0].mxu0
    %v914 = vpop.f32.mrb[0].mxu0
    %v915 = vpop.f32.mrb[0].mxu0
    %916 = vdwg.mxu0
    %v917 = vpack.c.bf16 %v899, %v896
    %v918 = vpack.c.bf16 %v907, %v904
    %v919 = vpack.c.bf16 %v912, %v912
    %v921 = vlaneseq
    %v922 = vshrl.u32 %v921, 7
    %v923 = vsub.s32 0, %v922
    %v924 = vrot.slane %v78, %v923
    %v925 = vlaneseq
    %v926 = vshrl.u32 %v925, 7
    %v927 = vsub.s32 1, %v926
    %v928 = vrot.slane %v78, %v927
    %v929 = vlaneseq
    %v930 = vshrl.u32 %v929, 7
    %v931 = vsub.s32 2, %v930
    %v932 = vrot.slane %v78, %v931
    %v940 = vunpack.c.l.b16 %v73
    %v941 = vunpack.c.h.b16 %v73
    %v942 = vunpack.c.l.b16 %v74
    %v943 = vunpack.c.l.b16 %v75
    %v944 = vunpack.c.h.b16 %v75
    %v945 = vunpack.c.l.b16 %v76
    %v946 = vpack.c.b16 %v943, %v940
    %v947 = vpack.c.b16 %v944, %v941
    %v948 = vpack.c.b16 %v945, %v942
    %vm952 = vcmask 130048
    %v954 = vsel %vm952, %v917, 0
    %v957 = vsel %vm952, %v918, 0
    %v960 = vsel %vm952, %v919, 0
    %962 = vmatprep.subr.bf16.mxu0 %v947
    %963 = vmatpush1.bf16.msra.mxu0 %v946
    %964 = vmatprep.subr.bf16.mxu0 0
    %965 = vmatpush1.bf16.msra.mxu0 0
    %966 = vmatprep.subr.bf16.mxu0 0
    %967 = vmatpush1.bf16.msra.mxu0 0
    %968 = vmatprep.subr.bf16.mxu0 0
    %969 = vmatpush1.bf16.msra.mxu0 0
    %970 = vmatprep.subr.bf16.mxu0 0
    %971 = vmatpush1.bf16.msra.mxu0 0
    %972 = vmatprep.subr.bf16.mxu0 0
    %973 = vmatpush1.bf16.msra.mxu0 0
    %974 = vmatprep.subr.bf16.mxu0 0
    %975 = vmatpush1.bf16.msra.mxu0 0
    %976 = vmatprep.subr.bf16.mxu0 0
    %977 = vmatpush1.bf16.msra.mxu0 0
    %978 = vmatprep.subr.bf16.mxu0 0
    %979 = vmatpush1.bf16.msra.mxu0 0
    %980 = vmatprep.subr.bf16.mxu0 0
    %981 = vmatpush1.bf16.msra.mxu0 0
    %982 = vmatprep.subr.bf16.mxu0 0
    %983 = vmatpush1.bf16.msra.mxu0 0
    %984 = vmatprep.subr.bf16.mxu0 0
    %985 = vmatpush1.bf16.msra.mxu0 0
    %986 = vmatprep.subr.bf16.mxu0 0
    %987 = vmatpush1.bf16.msra.mxu0 0
    %988 = vmatprep.subr.bf16.mxu0 0
    %989 = vmatpush1.bf16.msra.mxu0 0
    %990 = vmatprep.subr.bf16.mxu0 0
    %991 = vmatpush1.bf16.msra.mxu0 0
    %992 = vmatprep.subr.bf16.mxu0 0
    %993 = vmatpush1.bf16.msra.mxu0 0
    %994 = vmatprep.mubr.bf16.mxu0 0
    %995 = vmatmul.mubr.bf16.gmra.mrb[0].mxu0 %v954
    %v996 = vpop.f32.mrb[0].mxu0
    %v997 = vadd.f32 %v924, %v996
    %v998 = vpop.f32.mrb[0].mxu0
    %v999 = vadd.f32 %v928, %v998
    %v1000 = vpop.f32.mrb[0].mxu0
    %v1001 = vadd.f32 %v924, %v1000
    %v1002 = vpop.f32.mrb[0].mxu0
    %v1003 = vadd.f32 %v928, %v1002
    %1004 = vmatprep.mubr.bf16.mxu0 0
    %1005 = vmatmul.mubr.bf16.gmra.mrb[0].mxu0 %v957
    %v1006 = vpop.f32.mrb[0].mxu0
    %v1007 = vadd.f32 %v924, %v1006
    %v1008 = vpop.f32.mrb[0].mxu0
    %v1009 = vadd.f32 %v928, %v1008
    %v1010 = vpop.f32.mrb[0].mxu0
    %v1011 = vadd.f32 %v924, %v1010
    %v1012 = vpop.f32.mrb[0].mxu0
    %v1013 = vadd.f32 %v928, %v1012
    %1014 = vmatprep.mubr.bf16.mxu0 0
    %1015 = vmatmul.mubr.bf16.gmra.mrb[0].mxu0 %v960
    %v1016 = vpop.f32.mrb[0].mxu0
    %v1017 = vadd.f32 %v924, %v1016
    %v1018 = vpop.f32.mrb[0].mxu0
    %v1019 = vadd.f32 %v928, %v1018
    %v1020 = vpop.f32.mrb[0].mxu0
    %v1021 = vpop.f32.mrb[0].mxu0
    %1022 = vdwg.mxu0
    %1023 = vmatprep.subr.bf16.mxu0 0
    %1024 = vmatpush1.bf16.msra.mxu0 %v948
    %1025 = vmatprep.subr.bf16.mxu0 0
    %1026 = vmatpush1.bf16.msra.mxu0 0
    %1027 = vmatprep.subr.bf16.mxu0 0
    %1028 = vmatpush1.bf16.msra.mxu0 0
    %1029 = vmatprep.subr.bf16.mxu0 0
    %1030 = vmatpush1.bf16.msra.mxu0 0
    %1031 = vmatprep.subr.bf16.mxu0 0
    %1032 = vmatpush1.bf16.msra.mxu0 0
    %1033 = vmatprep.subr.bf16.mxu0 0
    %1034 = vmatpush1.bf16.msra.mxu0 0
    %1035 = vmatprep.subr.bf16.mxu0 0
    %1036 = vmatpush1.bf16.msra.mxu0 0
    %1037 = vmatprep.subr.bf16.mxu0 0
    %1038 = vmatpush1.bf16.msra.mxu0 0
    %1039 = vmatprep.subr.bf16.mxu0 0
    %1040 = vmatpush1.bf16.msra.mxu0 0
    %1041 = vmatprep.subr.bf16.mxu0 0
    %1042 = vmatpush1.bf16.msra.mxu0 0
    %1043 = vmatprep.subr.bf16.mxu0 0
    %1044 = vmatpush1.bf16.msra.mxu0 0
    %1045 = vmatprep.subr.bf16.mxu0 0
    %1046 = vmatpush1.bf16.msra.mxu0 0
    %1047 = vmatprep.subr.bf16.mxu0 0
    %1048 = vmatpush1.bf16.msra.mxu0 0
    %1049 = vmatprep.subr.bf16.mxu0 0
    %1050 = vmatpush1.bf16.msra.mxu0 0
    %1051 = vmatprep.subr.bf16.mxu0 0
    %1052 = vmatpush1.bf16.msra.mxu0 0
    %1053 = vmatprep.subr.bf16.mxu0 0
    %1054 = vmatpush1.bf16.msra.mxu0 0
    %1055 = vmatprep.mubr.bf16.mxu0 0
    %1056 = vmatmul.mubr.bf16.gmra.mrb[0].mxu0 %v954
    %v1057 = vpop.f32.mrb[0].mxu0
    %v1058 = vadd.f32 %v932, %v1057
    %v1059 = vpop.f32.mrb[0].mxu0
    %v1060 = vpop.f32.mrb[0].mxu0
    %v1061 = vadd.f32 %v932, %v1060
    %v1062 = vpop.f32.mrb[0].mxu0
    %1063 = vmatprep.mubr.bf16.mxu0 0
    %1064 = vmatmul.mubr.bf16.gmra.mrb[0].mxu0 %v957
    %v1065 = vpop.f32.mrb[0].mxu0
    %v1066 = vadd.f32 %v932, %v1065
    %v1067 = vpop.f32.mrb[0].mxu0
    %v1068 = vpop.f32.mrb[0].mxu0
    %v1069 = vadd.f32 %v932, %v1068
    %v1070 = vpop.f32.mrb[0].mxu0
    %1071 = vmatprep.mubr.bf16.mxu0 0
    %1072 = vmatmul.mubr.bf16.gmra.mrb[0].mxu0 %v960
    %v1073 = vpop.f32.mrb[0].mxu0
    %v1074 = vadd.f32 %v932, %v1073
    %v1075 = vpop.f32.mrb[0].mxu0
    %v1076 = vpop.f32.mrb[0].mxu0
    %v1077 = vpop.f32.mrb[0].mxu0
    %1078 = vdwg.mxu0
    %v1079 = vmax.f32 %v997, 0.0
    %v1080 = vmax.f32 %v999, 0.0
    %v1081 = vmax.f32 %v1058, 0.0
    %v1082 = vmax.f32 %v1001, 0.0
    %v1083 = vmax.f32 %v1003, 0.0
    %v1084 = vmax.f32 %v1061, 0.0
    %v1085 = vmax.f32 %v1007, 0.0
    %v1086 = vmax.f32 %v1009, 0.0
    %v1087 = vmax.f32 %v1066, 0.0
    %v1088 = vmax.f32 %v1011, 0.0
    %v1089 = vmax.f32 %v1013, 0.0
    %v1090 = vmax.f32 %v1069, 0.0
    %v1091 = vmax.f32 %v1017, 0.0
    %v1092 = vmax.f32 %v1019, 0.0
    %v1093 = vmax.f32 %v1074, 0.0
    %v1094 = vld [vmem:[%s1 + $0x1b0] sm:$0xf]
    %v1095 = vld [vmem:[%s1 + $0x1bc] sm:$0xf]
    %v1096 = vld [vmem:[%s1 + $0x1c8] sm:$0xf]
    %v1097 = vld [vmem:[%s1 + $0x1d4] sm:$0xf]
    %v1098 = vld [vmem:[%s1 + $0x1e0] sm:$0xf]
    %v1099 = vld [vmem:[%s1 + $0x1ec] sm:$0xf]
    %v1100 = vld [vmem:[%s1 + $0x1f8] sm:$0xf]
    %v1101 = vld [vmem:[%s1 + $0x204] sm:$0xf]
    %v1102 = vld [vmem:[%s1 + $0x210] sm:$0xf]
    %v1103 = vld [vmem:[%s1 + $0x21c] sm:$0xf]
    %v1104 = vld [vmem:[%s1 + $0x228] sm:$0xf]
    %v1105 = vld [vmem:[%s1 + $0x234] sm:$0xf]
    %v1106 = vld [vmem:[%s1 + $0x240] sm:$0xf]
    %v1107 = vld [vmem:[%s1 + $0x24c] sm:$0xf]
    %v1108 = vld [vmem:[%s1 + $0x258] sm:$0xf]
    %v1109 = vld [vmem:[%s1 + $0x264] sm:$0xf]
    %v1110 = vld [vmem:[%s1 + $0x270] sm:$0xf]
    %v1111 = vld [vmem:[%s1 + $0x27c] sm:$0xf]
    %v1112 = vld [vmem:[%s1 + $0x288] sm:$0xf]
    %v1113 = vld [vmem:[%s1 + $0x294] sm:$0xf]
    %v1114 = vld [vmem:[%s1 + $0x2a0] sm:$0xf]
    %v1115 = vld [vmem:[%s1 + $0x2ac] sm:$0xf]
    %v1116 = vld [vmem:[%s1 + $0x2b8] sm:$0xf]
    %v1117 = vld [vmem:[%s1 + $0x2c4] sm:$0xf]
    %v1118 = vld [vmem:[%s1 + $0x2d0] sm:$0xf]
    %v1119 = vld [vmem:[%s1 + $0x2dc] sm:$0xf]
    %v1120 = vld [vmem:[%s1 + $0x2e8] sm:$0xf]
    %v1121 = vld [vmem:[%s1 + $0x2f4] sm:$0xf]
    %v1122 = vld [vmem:[%s1 + $0x300] sm:$0xf]
    %v1123 = vld [vmem:[%s1 + $0x30c] sm:$0xf]
    %v1124 = vld [vmem:[%s1 + $0x318] sm:$0xf]
    %v1125 = vld [vmem:[%s1 + $0x324] sm:$0xf]
    %v1126 = vld [vmem:[%s1 + $0x330] sm:$0x1]
    %v1127 = vld [vmem:[%s2 + $0x60] ss:$0 sm:$0xff]
    %v1128 = vpack.c.bf16 %v1082, %v1079
    %v1129 = vpack.c.bf16 %v1083, %v1080
    %v1130 = vpack.c.bf16 %v1084, %v1081
    %v1131 = vpack.c.bf16 %v1088, %v1085
    %v1132 = vpack.c.bf16 %v1089, %v1086
    %v1133 = vpack.c.bf16 %v1090, %v1087
    %v1134 = vpack.c.bf16 %v1091, %v1091
    %v1135 = vpack.c.bf16 %v1092, %v1092
    %v1136 = vpack.c.bf16 %v1093, %v1093
    %v1170 = vunpack.c.l.b16 %v1094
    %v1171 = vunpack.c.l.b16 %v1095
    %v1172 = vunpack.c.l.b16 %v1096
    %v1173 = vunpack.c.l.b16 %v1097
    %v1174 = vunpack.c.l.b16 %v1098
    %v1175 = vunpack.c.l.b16 %v1099
    %v1176 = vunpack.c.l.b16 %v1100
    %v1177 = vunpack.c.l.b16 %v1101
    %v1178 = vunpack.c.l.b16 %v1102
    %v1179 = vunpack.c.l.b16 %v1103
    %v1180 = vunpack.c.l.b16 %v1104
    %v1181 = vunpack.c.l.b16 %v1105
    %v1182 = vunpack.c.l.b16 %v1106
    %v1183 = vunpack.c.l.b16 %v1107
    %v1184 = vunpack.c.l.b16 %v1108
    %v1185 = vunpack.c.l.b16 %v1109
    %v1186 = vunpack.c.l.b16 %v1110
    %v1187 = vunpack.c.l.b16 %v1111
    %v1188 = vunpack.c.l.b16 %v1112
    %v1189 = vunpack.c.l.b16 %v1113
    %v1190 = vunpack.c.l.b16 %v1114
    %v1191 = vunpack.c.l.b16 %v1115
    %v1192 = vunpack.c.l.b16 %v1116
    %v1193 = vunpack.c.l.b16 %v1117
    %v1194 = vunpack.c.l.b16 %v1118
    %v1195 = vunpack.c.l.b16 %v1119
    %v1196 = vunpack.c.l.b16 %v1120
    %v1197 = vunpack.c.l.b16 %v1121
    %v1198 = vunpack.c.l.b16 %v1122
    %v1199 = vunpack.c.l.b16 %v1123
    %v1200 = vunpack.c.l.b16 %v1124
    %v1201 = vunpack.c.l.b16 %v1125
    %v1202 = vunpack.c.l.b16 %v1126
    %v1203 = vpack.c.b16 %v1171, %v1170
    %v1204 = vpack.c.b16 %v1173, %v1172
    %v1205 = vpack.c.b16 %v1175, %v1174
    %v1206 = vpack.c.b16 %v1177, %v1176
    %v1207 = vpack.c.b16 %v1179, %v1178
    %v1208 = vpack.c.b16 %v1181, %v1180
    %v1209 = vpack.c.b16 %v1183, %v1182
    %v1210 = vpack.c.b16 %v1185, %v1184
    %v1211 = vpack.c.b16 %v1187, %v1186
    %v1212 = vpack.c.b16 %v1189, %v1188
    %v1213 = vpack.c.b16 %v1191, %v1190
    %v1214 = vpack.c.b16 %v1193, %v1192
    %v1215 = vpack.c.b16 %v1195, %v1194
    %v1216 = vpack.c.b16 %v1197, %v1196
    %v1217 = vpack.c.b16 %v1199, %v1198
    %v1218 = vpack.c.b16 %v1201, %v1200
    %v1219 = vpack.c.b16 %v1202, %v1202
    %v1237 = vsel %vm791, %v1130, 0
    %v1240 = vsel %vm791, %v1133, 0
    %v1243 = vsel %vm791, %v1136, 0
    %v1246 = vsel %vm801, %v1219, 0
    %1248 = vmatprep.subr.bf16.mxu0 0
    %1249 = vmatpush1.bf16.msra.mxu0 %v1203
    %1250 = vmatprep.subr.bf16.mxu0 0
    %1251 = vmatpush1.bf16.msra.mxu0 %v1204
    %1252 = vmatprep.subr.bf16.mxu0 0
    %1253 = vmatpush1.bf16.msra.mxu0 %v1205
    %1254 = vmatprep.subr.bf16.mxu0 0
    %1255 = vmatpush1.bf16.msra.mxu0 %v1206
    %1256 = vmatprep.subr.bf16.mxu0 0
    %1257 = vmatpush1.bf16.msra.mxu0 %v1207
    %1258 = vmatprep.subr.bf16.mxu0 0
    %1259 = vmatpush1.bf16.msra.mxu0 %v1208
    %1260 = vmatprep.subr.bf16.mxu0 0
    %1261 = vmatpush1.bf16.msra.mxu0 %v1209
    %1262 = vmatprep.subr.bf16.mxu0 0
    %1263 = vmatpush1.bf16.msra.mxu0 %v1210
    %1264 = vmatprep.subr.bf16.mxu0 0
    %1265 = vmatpush1.bf16.msra.mxu0 %v1211
    %1266 = vmatprep.subr.bf16.mxu0 0
    %1267 = vmatpush1.bf16.msra.mxu0 %v1212
    %1268 = vmatprep.subr.bf16.mxu0 0
    %1269 = vmatpush1.bf16.msra.mxu0 %v1213
    %1270 = vmatprep.subr.bf16.mxu0 0
    %1271 = vmatpush1.bf16.msra.mxu0 %v1214
    %1272 = vmatprep.subr.bf16.mxu0 0
    %1273 = vmatpush1.bf16.msra.mxu0 %v1215
    %1274 = vmatprep.subr.bf16.mxu0 0
    %1275 = vmatpush1.bf16.msra.mxu0 %v1216
    %1276 = vmatprep.subr.bf16.mxu0 0
    %1277 = vmatpush1.bf16.msra.mxu0 %v1217
    %1278 = vmatprep.subr.bf16.mxu0 0
    %1279 = vmatpush1.bf16.msra.mxu0 %v1218
    %1280 = vmatprep.mubr.bf16.mxu0 %v1129
    %1281 = vmatmul.mubr.bf16.gmra.mrb[0].mxu0 %v1128
    %v1282 = vpop.f32.mrb[0].mxu0
    %v1283 = vadd.f32 %v1127, %v1282
    %v1284 = vpop.f32.mrb[0].mxu0
    %v1285 = vpop.f32.mrb[0].mxu0
    %v1286 = vadd.f32 %v1127, %v1285
    %v1287 = vpop.f32.mrb[0].mxu0
    %1288 = vmatprep.mubr.bf16.mxu0 %v1132
    %1289 = vmatmul.mubr.bf16.gmra.mrb[0].mxu0 %v1131
    %v1290 = vpop.f32.mrb[0].mxu0
    %v1291 = vadd.f32 %v1127, %v1290
    %v1292 = vpop.f32.mrb[0].mxu0
    %v1293 = vpop.f32.mrb[0].mxu0
    %v1294 = vadd.f32 %v1127, %v1293
    %v1295 = vpop.f32.mrb[0].mxu0
    %1296 = vmatprep.mubr.bf16.mxu0 %v1135
    %1297 = vmatmul.mubr.bf16.gmra.mrb[0].mxu0 %v1134
    %v1298 = vpop.f32.mrb[0].mxu0
    %v1299 = vadd.f32 %v1127, %v1298
    %v1300 = vpop.f32.mrb[0].mxu0
    %v1301 = vpop.f32.mrb[0].mxu0
    %v1302 = vpop.f32.mrb[0].mxu0
    %1303 = vdwg.mxu0
    %1304 = vmatprep.subr.bf16.mxu0 0
    %1305 = vmatpush1.bf16.msra.mxu0 %v1246
    %1306 = vmatprep.subr.bf16.mxu0 0
    %1307 = vmatpush1.bf16.msra.mxu0 0
    %1308 = vmatprep.subr.bf16.mxu0 0
    %1309 = vmatpush1.bf16.msra.mxu0 0
    %1310 = vmatprep.subr.bf16.mxu0 0
    %1311 = vmatpush1.bf16.msra.mxu0 0
    %1312 = vmatprep.subr.bf16.mxu0 0
    %1313 = vmatpush1.bf16.msra.mxu0 0
    %1314 = vmatprep.subr.bf16.mxu0 0
    %1315 = vmatpush1.bf16.msra.mxu0 0
    %1316 = vmatprep.subr.bf16.mxu0 0
    %1317 = vmatpush1.bf16.msra.mxu0 0
    %1318 = vmatprep.subr.bf16.mxu0 0
    %1319 = vmatpush1.bf16.msra.mxu0 0
    %1320 = vmatprep.subr.bf16.mxu0 0
    %1321 = vmatpush1.bf16.msra.mxu0 0
    %1322 = vmatprep.subr.bf16.mxu0 0
    %1323 = vmatpush1.bf16.msra.mxu0 0
    %1324 = vmatprep.subr.bf16.mxu0 0
    %1325 = vmatpush1.bf16.msra.mxu0 0
    %1326 = vmatprep.subr.bf16.mxu0 0
    %1327 = vmatpush1.bf16.msra.mxu0 0
    %1328 = vmatprep.subr.bf16.mxu0 0
    %1329 = vmatpush1.bf16.msra.mxu0 0
    %1330 = vmatprep.subr.bf16.mxu0 0
    %1331 = vmatpush1.bf16.msra.mxu0 0
    %1332 = vmatprep.subr.bf16.mxu0 0
    %1333 = vmatpush1.bf16.msra.mxu0 0
    %1334 = vmatprep.subr.bf16.mxu0 0
    %1335 = vmatpush1.bf16.msra.mxu0 0
    %1336 = vmatprep.mubr.bf16.mxu0 0
    %1337 = vmatmul.mubr.bf16.gmra.mrb[0].mxu0 %v1237
    %v1338 = vpop.f32.mrb[0].mxu0
    %v1339 = vadd.f32 %v1283, %v1338
    %v1340 = vpop.f32.mrb[0].mxu0
    %v1341 = vpop.f32.mrb[0].mxu0
    %v1342 = vadd.f32 %v1286, %v1341
    %v1343 = vpop.f32.mrb[0].mxu0
    %1344 = vmatprep.mubr.bf16.mxu0 0
    %1345 = vmatmul.mubr.bf16.gmra.mrb[0].mxu0 %v1240
    %v1346 = vpop.f32.mrb[0].mxu0
    %v1347 = vadd.f32 %v1291, %v1346
    %v1348 = vpop.f32.mrb[0].mxu0
    %v1349 = vpop.f32.mrb[0].mxu0
    %v1350 = vadd.f32 %v1294, %v1349
    %v1351 = vpop.f32.mrb[0].mxu0
    %1352 = vmatprep.mubr.bf16.mxu0 0
    %1353 = vmatmul.mubr.bf16.gmra.mrb[0].mxu0 %v1243
    %v1354 = vpop.f32.mrb[0].mxu0
    %v1355 = vadd.f32 %v1299, %v1354
    %v1356 = vpop.f32.mrb[0].mxu0
    %v1357 = vpop.f32.mrb[0].mxu0
    %v1358 = vpop.f32.mrb[0].mxu0
    %1359 = vdwg.mxu0
    %v1360 = vmax.f32 %v1339, 0.0
    %v1361 = vmax.f32 %v1342, 0.0
    %v1362 = vmax.f32 %v1347, 0.0
    %v1363 = vmax.f32 %v1350, 0.0
    %v1364 = vmax.f32 %v1355, 0.0
    %v1370 = vcombine.high %v1360, %v1360
    %v1371 = vcombine.high %v1361, %v1361
    %v1372 = vcombine.high %v1362, %v1362
    %v1373 = vcombine.high %v1363, %v1363
    %v1374 = vcombine.high %v1364, %v1364
    %v1380 = vld [vmem:[%s2 + $0x78] sm:$0x1f]
    %v1381 = vld [vmem:[%s2 + $0x90] ss:$0 sm:$0xff]
    %v1382 = vld [vmem:[%s1 + $0x348] sm:$0xf]
    %v1383 = vld [vmem:[%s1 + $0x354] sm:$0xf]
    %v1384 = vld [vmem:[%s2 + $0xa8] ss:$0 sm:$0xff]
    %v1385 = vld [vmem:[%s1 + $0x360] sm:$0xf]
    %v1386 = vld [vmem:[%s1 + $0x36c] sm:$0xf]
    %v1387 = vld [vmem:[%s1 + $0x378] sm:$0xf]
    %v1388 = vld [vmem:[%s1 + $0x384] sm:$0xf]
    %v1389 = vld [vmem:[%s2 + $0xc0] ss:$0 sm:$0xff]
    %v1390 = vlaneseq
    %v1391 = vshrl.u32 %v1390, 7
    %v1392 = vsub.s32 0, %v1391
    %v1393 = vrot.slane %v1380, %v1392
    %v1395 = vcombine.high %v1393, %v1393
    %v1397 = vmul.f32 %v1360, %v1393
    %v1398 = vmul.f32 %v1370, %v1395
    %v1399 = vmul.f32 %v1361, %v1393
    %v1400 = vmul.f32 %v1371, %v1395
    %v1401 = vmul.f32 %v1372, %v1393
    %v1402 = vmul.f32 %v1363, %v1395
    %v1403 = vmul.f32 %v1373, %v1393
    %v1404 = vmul.f32 %v1364, %v1395
    %v1405 = vlaneseq
    %v1406 = vshrl.u32 %v1405, 7
    %v1407 = vsub.s32 1, %v1406
    %v1408 = vrot.slane %v1380, %v1407
    %v1410 = vcombine.high %v1408, %v1408
    %vm1411 = vcmask 1044484
    %vm1412 = vmor %vm801, %vm1411
    %v1413 = vrot.slane %v1408, 7
    %v1414 = vrot.slane %v1413, 4
    %v1415 = vrot.slane %v1410, 7
    %v1416 = vsel %vm1412, %v1414, %v1415
    %v1417 = vrot.slane %v1415, 4
    %v1418 = vsel %vm1412, %v1417, %v1413
    %v1423 = vmul.f32 %v1360, %v1413
    %v1424 = vmul.f32 %v1370, %v1416
    %v1425 = vmul.f32 %v1361, %v1418
    %v1426 = vmul.f32 %v1371, %v1416
    %v1427 = vmul.f32 %v1362, %v1417
    %v1428 = vmul.f32 %v1372, %v1413
    %v1429 = vmul.f32 %v1363, %v1416
    %v1430 = vmul.f32 %v1373, %v1418
    %v1431 = vmul.f32 %v1364, %v1416
    %v1432 = vmul.f32 %v1374, %v1417
    %vm1443 = vcmask 1042432
    %vm1444 = vcmask 1046532
    %vm1445 = vmor %vm1443, %vm1444
    %v1446 = vrot.slane %v1423, 5
    %v1447 = vrot.slane %v1446, 4
    %v1448 = vrot.slane %v1424, 5
    %v1449 = vsel %vm1445, %v1447, %v1448
    %v1450 = vrot.slane %v1448, 4
    %v1451 = vrot.slane %v1425, 5
    %v1452 = vsel %vm1445, %v1450, %v1451
    %v1453 = vrot.slane %v1451, 4
    %v1454 = vrot.slane %v1426, 5
    %v1455 = vsel %vm1445, %v1453, %v1454
    %v1456 = vrot.slane %v1454, 4
    %v1457 = vrot.slane %v1427, 5
    %v1458 = vsel %vm1445, %v1456, %v1457
    %v1459 = vrot.slane %v1428, 5
    %v1460 = vrot.slane %v1459, 4
    %v1461 = vrot.slane %v1429, 5
    %v1462 = vsel %vm1445, %v1460, %v1461
    %v1463 = vrot.slane %v1461, 4
    %v1464 = vrot.slane %v1430, 5
    %v1465 = vsel %vm1445, %v1463, %v1464
    %v1466 = vrot.slane %v1464, 4
    %v1467 = vrot.slane %v1431, 5
    %v1468 = vsel %vm1445, %v1466, %v1467
    %v1469 = vrot.slane %v1467, 4
    %v1470 = vrot.slane %v1432, 5
    %v1471 = vsel %vm1445, %v1469, %v1470
    %v1480 = vadd.f32 %v1397, %v1449
    %v1481 = vadd.f32 %v1398, %v1452
    %v1482 = vadd.f32 %v1399, %v1455
    %v1483 = vadd.f32 %v1400, %v1458
    %v1484 = vadd.f32 %v1401, %v1462
    %v1485 = vadd.f32 %v1402, %v1465
    %v1486 = vadd.f32 %v1403, %v1468
    %v1487 = vadd.f32 %v1404, %v1471
    %v1488 = vlaneseq
    %v1489 = vshrl.u32 %v1488, 7
    %v1490 = vsub.s32 2, %v1489
    %v1491 = vrot.slane %v1380, %v1490
    %v1493 = vcombine.high %v1491, %v1491
    %vm1494 = vcmask 1041408
    %vm1495 = vcmask 1045508
    %vm1496 = vmor %vm1494, %vm1495
    %v1497 = vrot.slane %v1491, 6
    %v1498 = vrot.slane %v1497, 4
    %v1499 = vrot.slane %v1493, 6
    %v1500 = vsel %vm1496, %v1498, %v1499
    %v1501 = vrot.slane %v1499, 4
    %v1502 = vsel %vm1496, %v1501, %v1497
    %v1507 = vmul.f32 %v1360, %v1497
    %v1508 = vmul.f32 %v1370, %v1500
    %v1509 = vmul.f32 %v1361, %v1502
    %v1510 = vmul.f32 %v1371, %v1500
    %v1511 = vmul.f32 %v1362, %v1501
    %v1512 = vmul.f32 %v1372, %v1497
    %v1513 = vmul.f32 %v1363, %v1500
    %v1514 = vmul.f32 %v1373, %v1502
    %v1515 = vmul.f32 %v1364, %v1500
    %v1516 = vmul.f32 %v1374, %v1501
    %v1527 = vrot.slane %v1507, 6
    %v1528 = vrot.slane %v1527, 4
    %v1529 = vrot.slane %v1508, 6
    %v1530 = vsel %vm1496, %v1528, %v1529
    %v1531 = vrot.slane %v1529, 4
    %v1532 = vrot.slane %v1509, 6
    %v1533 = vsel %vm1496, %v1531, %v1532
    %v1534 = vrot.slane %v1532, 4
    %v1535 = vrot.slane %v1510, 6
    %v1536 = vsel %vm1496, %v1534, %v1535
    %v1537 = vrot.slane %v1535, 4
    %v1538 = vrot.slane %v1511, 6
    %v1539 = vsel %vm1496, %v1537, %v1538
    %v1540 = vrot.slane %v1512, 6
    %v1541 = vrot.slane %v1540, 4
    %v1542 = vrot.slane %v1513, 6
    %v1543 = vsel %vm1496, %v1541, %v1542
    %v1544 = vrot.slane %v1542, 4
    %v1545 = vrot.slane %v1514, 6
    %v1546 = vsel %vm1496, %v1544, %v1545
    %v1547 = vrot.slane %v1545, 4
    %v1548 = vrot.slane %v1515, 6
    %v1549 = vsel %vm1496, %v1547, %v1548
    %v1550 = vrot.slane %v1548, 4
    %v1551 = vrot.slane %v1516, 6
    %v1552 = vsel %vm1496, %v1550, %v1551
    %v1561 = vadd.f32 %v1480, %v1530
    %v1562 = vadd.f32 %v1481, %v1533
    %v1563 = vadd.f32 %v1482, %v1536
    %v1564 = vadd.f32 %v1483, %v1539
    %v1565 = vadd.f32 %v1484, %v1543
    %v1566 = vadd.f32 %v1485, %v1546
    %v1567 = vadd.f32 %v1486, %v1549
    %v1568 = vadd.f32 %v1487, %v1552
    %v1569 = vlaneseq
    %v1570 = vshrl.u32 %v1569, 7
    %v1571 = vsub.s32 3, %v1570
    %v1572 = vrot.slane %v1380, %v1571
    %v1574 = vcombine.high %v1572, %v1572
    %v1575 = vrot.slane %v1572, 5
    %v1576 = vrot.slane %v1575, 4
    %v1577 = vrot.slane %v1574, 5
    %v1578 = vsel %vm1445, %v1576, %v1577
    %v1579 = vrot.slane %v1577, 4
    %v1580 = vsel %vm1445, %v1579, %v1575
    %v1585 = vmul.f32 %v1360, %v1575
    %v1586 = vmul.f32 %v1370, %v1578
    %v1587 = vmul.f32 %v1361, %v1580
    %v1588 = vmul.f32 %v1371, %v1578
    %v1589 = vmul.f32 %v1362, %v1579
    %v1590 = vmul.f32 %v1372, %v1575
    %v1591 = vmul.f32 %v1363, %v1578
    %v1592 = vmul.f32 %v1373, %v1580
    %v1593 = vmul.f32 %v1364, %v1578
    %v1594 = vmul.f32 %v1374, %v1579
    %v1605 = vrot.slane %v1585, 7
    %v1606 = vrot.slane %v1605, 4
    %v1607 = vrot.slane %v1586, 7
    %v1608 = vsel %vm1412, %v1606, %v1607
    %v1609 = vrot.slane %v1607, 4
    %v1610 = vrot.slane %v1587, 7
    %v1611 = vsel %vm1412, %v1609, %v1610
    %v1612 = vrot.slane %v1610, 4
    %v1613 = vrot.slane %v1588, 7
    %v1614 = vsel %vm1412, %v1612, %v1613
    %v1615 = vrot.slane %v1613, 4
    %v1616 = vrot.slane %v1589, 7
    %v1617 = vsel %vm1412, %v1615, %v1616
    %v1618 = vrot.slane %v1590, 7
    %v1619 = vrot.slane %v1618, 4
    %v1620 = vrot.slane %v1591, 7
    %v1621 = vsel %vm1412, %v1619, %v1620
    %v1622 = vrot.slane %v1620, 4
    %v1623 = vrot.slane %v1592, 7
    %v1624 = vsel %vm1412, %v1622, %v1623
    %v1625 = vrot.slane %v1623, 4
    %v1626 = vrot.slane %v1593, 7
    %v1627 = vsel %vm1412, %v1625, %v1626
    %v1628 = vrot.slane %v1626, 4
    %v1629 = vrot.slane %v1594, 7
    %v1630 = vsel %vm1412, %v1628, %v1629
    %v1639 = vadd.f32 %v1561, %v1608
    %v1640 = vadd.f32 %v1562, %v1611
    %v1641 = vadd.f32 %v1563, %v1614
    %v1642 = vadd.f32 %v1564, %v1617
    %v1643 = vadd.f32 %v1565, %v1621
    %v1644 = vadd.f32 %v1566, %v1624
    %v1645 = vadd.f32 %v1567, %v1627
    %v1646 = vadd.f32 %v1568, %v1630
    %v1647 = vlaneseq
    %v1648 = vshrl.u32 %v1647, 7
    %v1649 = vsub.s32 4, %v1648
    %v1650 = vrot.slane %v1380, %v1649
    %v1652 = vcombine.high %v1650, %v1650
    %v1654 = vmul.f32 %v1370, %v1650
    %v1655 = vmul.f32 %v1361, %v1652
    %v1656 = vmul.f32 %v1371, %v1650
    %v1657 = vmul.f32 %v1362, %v1652
    %v1658 = vmul.f32 %v1363, %v1650
    %v1659 = vmul.f32 %v1373, %v1652
    %v1660 = vmul.f32 %v1364, %v1650
    %v1661 = vmul.f32 %v1374, %v1652
    %v1662 = vadd.f32 %v1639, %v1654
    %v1663 = vadd.f32 %v1640, %v1655
    %v1664 = vadd.f32 %v1641, %v1656
    %v1665 = vadd.f32 %v1642, %v1657
    %v1666 = vadd.f32 %v1643, %v1658
    %v1667 = vadd.f32 %v1644, %v1659
    %v1668 = vadd.f32 %v1645, %v1660
    %v1669 = vadd.f32 %v1646, %v1661
    %v1671 = vcombine.high %v1381, %v1381
    %v1673 = vadd.f32 %v1662, %v1381
    %v1674 = vadd.f32 %v1663, %v1671
    %v1675 = vadd.f32 %v1664, %v1381
    %v1676 = vadd.f32 %v1665, %v1671
    %v1677 = vadd.f32 %v1666, %v1381
    %v1678 = vadd.f32 %v1667, %v1671
    %v1679 = vadd.f32 %v1668, %v1381
    %v1680 = vadd.f32 %v1669, %v1671
    %v1681 = vmax.f32 %v1673, 0.0
    %v1682 = vmax.f32 %v1674, 0.0
    %v1683 = vmax.f32 %v1675, 0.0
    %v1684 = vmax.f32 %v1676, 0.0
    %v1685 = vmax.f32 %v1677, 0.0
    %v1686 = vmax.f32 %v1678, 0.0
    %v1687 = vmax.f32 %v1679, 0.0
    %v1688 = vmax.f32 %v1680, 0.0
    %v1697 = vcombine.low %v1681, %v1682
    %v1698 = vcombine.low %v1683, %v1684
    %v1699 = vcombine.low %v1685, %v1686
    %v1700 = vcombine.low %v1687, %v1688
    %v1705 = vpack.c.bf16 %v1698, %v1697
    %v1706 = vpack.c.bf16 %v1700, %v1699
    %v1709 = vunpack.c.l.b16 %v1382
    %v1710 = vunpack.c.l.b16 %v1383
    %v1711 = vpack.c.b16 %v1710, %v1709
    %v1714 = vsel %vm952, %v1705, 0
    %v1717 = vsel %vm952, %v1706, 0
    %1719 = vmatprep.subr.bf16.mxu0 0
    %1720 = vmatpush1.bf16.msra.mxu0 %v1711
    %1721 = vmatprep.subr.bf16.mxu0 0
    %1722 = vmatpush1.bf16.msra.mxu0 0
    %1723 = vmatprep.subr.bf16.mxu0 0
    %1724 = vmatpush1.bf16.msra.mxu0 0
    %1725 = vmatprep.subr.bf16.mxu0 0
    %1726 = vmatpush1.bf16.msra.mxu0 0
    %1727 = vmatprep.subr.bf16.mxu0 0
    %1728 = vmatpush1.bf16.msra.mxu0 0
    %1729 = vmatprep.subr.bf16.mxu0 0
    %1730 = vmatpush1.bf16.msra.mxu0 0
    %1731 = vmatprep.subr.bf16.mxu0 0
    %1732 = vmatpush1.bf16.msra.mxu0 0
    %1733 = vmatprep.subr.bf16.mxu0 0
    %1734 = vmatpush1.bf16.msra.mxu0 0
    %1735 = vmatprep.subr.bf16.mxu0 0
    %1736 = vmatpush1.bf16.msra.mxu0 0
    %1737 = vmatprep.subr.bf16.mxu0 0
    %1738 = vmatpush1.bf16.msra.mxu0 0
    %1739 = vmatprep.subr.bf16.mxu0 0
    %1740 = vmatpush1.bf16.msra.mxu0 0
    %1741 = vmatprep.subr.bf16.mxu0 0
    %1742 = vmatpush1.bf16.msra.mxu0 0
    %1743 = vmatprep.subr.bf16.mxu0 0
    %1744 = vmatpush1.bf16.msra.mxu0 0
    %1745 = vmatprep.subr.bf16.mxu0 0
    %1746 = vmatpush1.bf16.msra.mxu0 0
    %1747 = vmatprep.subr.bf16.mxu0 0
    %1748 = vmatpush1.bf16.msra.mxu0 0
    %1749 = vmatprep.subr.bf16.mxu0 0
    %1750 = vmatpush1.bf16.msra.mxu0 0
    %1751 = vmatprep.mubr.bf16.mxu0 0
    %1752 = vmatmul.mubr.bf16.gmra.mrb[0].mxu0 %v1714
    %v1753 = vpop.f32.mrb[0].mxu0
    %v1754 = vadd.f32 %v1384, %v1753
    %v1755 = vpop.f32.mrb[0].mxu0
    %v1756 = vpop.f32.mrb[0].mxu0
    %v1757 = vadd.f32 %v1384, %v1756
    %v1758 = vpop.f32.mrb[0].mxu0
    %1759 = vmatprep.mubr.bf16.mxu0 0
    %1760 = vmatmul.mubr.bf16.gmra.mrb[0].mxu0 %v1717
    %v1761 = vpop.f32.mrb[0].mxu0
    %v1762 = vadd.f32 %v1384, %v1761
    %v1763 = vpop.f32.mrb[0].mxu0
    %v1764 = vpop.f32.mrb[0].mxu0
    %v1765 = vadd.f32 %v1384, %v1764
    %v1766 = vpop.f32.mrb[0].mxu0
    %1767 = vdwg.mxu0
    %v1768 = vpack.c.bf16 %v1757, %v1754
    %v1769 = vpack.c.bf16 %v1765, %v1762
    %v1774 = vunpack.c.l.b16 %v1385
    %v1775 = vunpack.c.l.b16 %v1386
    %v1776 = vunpack.c.l.b16 %v1387
    %v1777 = vunpack.c.l.b16 %v1388
    %v1778 = vpack.c.b16 %v1775, %v1774
    %v1779 = vpack.c.b16 %v1777, %v1776
    %vm1782 = vcmask 261120
    %v1784 = vsel %vm1782, %v1768, 0
    %v1787 = vsel %vm1782, %v1769, 0
    %1789 = vmatprep.subr.bf16.mxu0 0
    %1790 = vmatpush1.bf16.msra.mxu0 %v1778
    %1791 = vmatprep.subr.bf16.mxu0 0
    %1792 = vmatpush1.bf16.msra.mxu0 %v1779
    %1793 = vmatprep.subr.bf16.mxu0 0
    %1794 = vmatpush1.bf16.msra.mxu0 0
    %1795 = vmatprep.subr.bf16.mxu0 0
    %1796 = vmatpush1.bf16.msra.mxu0 0
    %1797 = vmatprep.subr.bf16.mxu0 0
    %1798 = vmatpush1.bf16.msra.mxu0 0
    %1799 = vmatprep.subr.bf16.mxu0 0
    %1800 = vmatpush1.bf16.msra.mxu0 0
    %1801 = vmatprep.subr.bf16.mxu0 0
    %1802 = vmatpush1.bf16.msra.mxu0 0
    %1803 = vmatprep.subr.bf16.mxu0 0
    %1804 = vmatpush1.bf16.msra.mxu0 0
    %1805 = vmatprep.subr.bf16.mxu0 0
    %1806 = vmatpush1.bf16.msra.mxu0 0
    %1807 = vmatprep.subr.bf16.mxu0 0
    %1808 = vmatpush1.bf16.msra.mxu0 0
    %1809 = vmatprep.subr.bf16.mxu0 0
    %1810 = vmatpush1.bf16.msra.mxu0 0
    %1811 = vmatprep.subr.bf16.mxu0 0
    %1812 = vmatpush1.bf16.msra.mxu0 0
    %1813 = vmatprep.subr.bf16.mxu0 0
    %1814 = vmatpush1.bf16.msra.mxu0 0
    %1815 = vmatprep.subr.bf16.mxu0 0
    %1816 = vmatpush1.bf16.msra.mxu0 0
    %1817 = vmatprep.subr.bf16.mxu0 0
    %1818 = vmatpush1.bf16.msra.mxu0 0
    %1819 = vmatprep.subr.bf16.mxu0 0
    %1820 = vmatpush1.bf16.msra.mxu0 0
    %1821 = vmatprep.mubr.bf16.mxu0 0
    %1822 = vmatmul.mubr.bf16.gmra.mrb[0].mxu0 %v1784
    %v1823 = vpop.f32.mrb[0].mxu0
    %v1824 = vadd.f32 %v1389, %v1823
    %v1825 = vpop.f32.mrb[0].mxu0
    %v1826 = vpop.f32.mrb[0].mxu0
    %v1827 = vadd.f32 %v1389, %v1826
    %v1828 = vpop.f32.mrb[0].mxu0
    %1829 = vmatprep.mubr.bf16.mxu0 0
    %1830 = vmatmul.mubr.bf16.gmra.mrb[0].mxu0 %v1787
    %v1831 = vpop.f32.mrb[0].mxu0
    %v1832 = vadd.f32 %v1389, %v1831
    %v1833 = vpop.f32.mrb[0].mxu0
    %v1834 = vpop.f32.mrb[0].mxu0
    %v1835 = vadd.f32 %v1389, %v1834
    %v1836 = vpop.f32.mrb[0].mxu0
    %1837 = vdwg.mxu0
    %v1838 = vmax.f32 %v1824, 0.0
    %v1839 = vmax.f32 %v1827, 0.0
    %v1840 = vmax.f32 %v1832, 0.0
    %v1841 = vmax.f32 %v1835, 0.0
    %v1842 = vld [vmem:[%s1 + $0x390] sm:$0xf]
    %v1843 = vld [vmem:[%s1 + $0x39c] sm:$0xf]
    %v1844 = vld [vmem:[%s2 + $0xd8] ss:$0 sm:$0xff]
    %v1845 = vpack.c.bf16 %v1839, %v1838
    %v1846 = vpack.c.bf16 %v1841, %v1840
    %v1849 = vunpack.c.l.b16 %v1842
    %v1850 = vunpack.c.l.b16 %v1843
    %v1851 = vpack.c.b16 %v1850, %v1849
    %v1854 = vsel %vm952, %v1845, 0
    %v1857 = vsel %vm952, %v1846, 0
    %1859 = vmatprep.subr.bf16.mxu0 0
    %1860 = vmatpush1.bf16.msra.mxu0 %v1851
    %1861 = vmatprep.subr.bf16.mxu0 0
    %1862 = vmatpush1.bf16.msra.mxu0 0
    %1863 = vmatprep.subr.bf16.mxu0 0
    %1864 = vmatpush1.bf16.msra.mxu0 0
    %1865 = vmatprep.subr.bf16.mxu0 0
    %1866 = vmatpush1.bf16.msra.mxu0 0
    %1867 = vmatprep.subr.bf16.mxu0 0
    %1868 = vmatpush1.bf16.msra.mxu0 0
    %1869 = vmatprep.subr.bf16.mxu0 0
    %1870 = vmatpush1.bf16.msra.mxu0 0
    %1871 = vmatprep.subr.bf16.mxu0 0
    %1872 = vmatpush1.bf16.msra.mxu0 0
    %1873 = vmatprep.subr.bf16.mxu0 0
    %1874 = vmatpush1.bf16.msra.mxu0 0
    %1875 = vmatprep.subr.bf16.mxu0 0
    %1876 = vmatpush1.bf16.msra.mxu0 0
    %1877 = vmatprep.subr.bf16.mxu0 0
    %1878 = vmatpush1.bf16.msra.mxu0 0
    %1879 = vmatprep.subr.bf16.mxu0 0
    %1880 = vmatpush1.bf16.msra.mxu0 0
    %1881 = vmatprep.subr.bf16.mxu0 0
    %1882 = vmatpush1.bf16.msra.mxu0 0
    %1883 = vmatprep.subr.bf16.mxu0 0
    %1884 = vmatpush1.bf16.msra.mxu0 0
    %1885 = vmatprep.subr.bf16.mxu0 0
    %1886 = vmatpush1.bf16.msra.mxu0 0
    %1887 = vmatprep.subr.bf16.mxu0 0
    %1888 = vmatpush1.bf16.msra.mxu0 0
    %1889 = vmatprep.subr.bf16.mxu0 0
    %1890 = vmatpush1.bf16.msra.mxu0 0
    %1891 = vmatprep.mubr.bf16.mxu0 0
    %1892 = vmatmul.mubr.bf16.gmra.mrb[0].mxu0 %v1854
    %v1893 = vpop.f32.mrb[0].mxu0
    %v1894 = vadd.f32 %v1844, %v1893
    %v1895 = vpop.f32.mrb[0].mxu0
    %v1896 = vpop.f32.mrb[0].mxu0
    %v1897 = vadd.f32 %v1844, %v1896
    %v1898 = vpop.f32.mrb[0].mxu0
    %1899 = vmatprep.mubr.bf16.mxu0 0
    %1900 = vmatmul.mubr.bf16.gmra.mrb[0].mxu0 %v1857
    %v1901 = vpop.f32.mrb[0].mxu0
    %v1902 = vadd.f32 %v1844, %v1901
    %v1903 = vpop.f32.mrb[0].mxu0
    %v1904 = vpop.f32.mrb[0].mxu0
    %v1905 = vadd.f32 %v1844, %v1904
    %v1906 = vpop.f32.mrb[0].mxu0
    %1907 = vdwg.mxu0
    %v1908 = vmax.f32 %v1894, 0.0
    %v1909 = vmax.f32 %v1897, 0.0
    %v1910 = vmax.f32 %v1902, 0.0
    %v1911 = vmax.f32 %v1905, 0.0
    %v1912 = vld [vmem:[%s2 + $0xf0] sm:$0x1f]
    %v1913 = vld [vmem:[%s2 + $0x108] ss:$0 sm:$0xff]
    %v1914 = vld [vmem:[%s1 + $0x3a8] sm:$0xf]
    %v1915 = vld [vmem:[%s1 + $0x3b4] sm:$0xf]
    %v1916 = vld [vmem:[%s1 + $0x3c0] sm:$0xf]
    %v1917 = vld [vmem:[%s1 + $0x3cc] sm:$0xf]
    %v1918 = vld [vmem:[%s2 + $0x120] ss:$0 sm:$0xff]
    %v1919 = vld [vmem:[%s1 + $0x3d8] sm:$0xf]
    %v1920 = vld [vmem:[%s1 + $0x3e4] sm:$0xf]
    %v1921 = vld [vmem:[%s1 + $0x3f0] sm:$0xf]
    %v1922 = vld [vmem:[%s1 + $0x3fc] sm:$0xf]
    %v1923 = vld [vmem:[%s2 + $0x138] ss:$0 sm:$0xff]
    %v1924 = vlaneseq
    %v1925 = vshrl.u32 %v1924, 7
    %v1926 = vsub.s32 0, %v1925
    %v1927 = vrot.slane %v1912, %v1926
    %v1928 = vmul.f32 %v1908, %v1927
    %v1929 = vmul.f32 %v1909, %v1927
    %v1930 = vmul.f32 %v1910, %v1927
    %v1931 = vmul.f32 %v1911, %v1927
    %v1932 = vlaneseq
    %v1933 = vshrl.u32 %v1932, 7
    %v1934 = vsub.s32 1, %v1933
    %v1935 = vrot.slane %v1912, %v1934
    %v1936 = vmul.f32 %v1908, %v1935
    %v1937 = vmul.f32 %v1909, %v1935
    %v1938 = vmul.f32 %v1910, %v1935
    %v1939 = vmul.f32 %v1911, %v1935
    %v1944 = vrot.slane %v1936, 1
    %v1945 = vrot.slane %v1937, 1
    %v1946 = vsel %vm157, %v1944, %v1945
    %v1947 = vrot.slane %v1938, 1
    %v1948 = vrot.slane %v1939, 1
    %v1949 = vsel %vm157, %v1947, %v1948
    %v1954 = vadd.f32 %v1928, %v1946
    %v1955 = vadd.f32 %v1929, %v1945
    %v1956 = vadd.f32 %v1930, %v1949
    %v1957 = vadd.f32 %v1931, %v1948
    %v1958 = vlaneseq
    %v1959 = vshrl.u32 %v1958, 7
    %v1960 = vsub.s32 2, %v1959
    %v1961 = vrot.slane %v1912, %v1960
    %v1962 = vmul.f32 %v1908, %v1961
    %v1963 = vmul.f32 %v1909, %v1961
    %v1964 = vmul.f32 %v1910, %v1961
    %v1965 = vmul.f32 %v1911, %v1961
    %v1970 = vrot.slane %v1962, 2
    %v1971 = vrot.slane %v1963, 2
    %v1972 = vsel %vm272, %v1970, %v1971
    %v1973 = vrot.slane %v1964, 2
    %v1974 = vrot.slane %v1965, 2
    %v1975 = vsel %vm272, %v1973, %v1974
    %v1980 = vadd.f32 %v1954, %v1972
    %v1981 = vadd.f32 %v1955, %v1971
    %v1982 = vadd.f32 %v1956, %v1975
    %v1983 = vadd.f32 %v1957, %v1974
    %v1984 = vlaneseq
    %v1985 = vshrl.u32 %v1984, 7
    %v1986 = vsub.s32 3, %v1985
    %v1987 = vrot.slane %v1912, %v1986
    %v1988 = vmul.f32 %v1908, %v1987
    %v1989 = vmul.f32 %v1909, %v1987
    %v1990 = vmul.f32 %v1910, %v1987
    %v1991 = vmul.f32 %v1911, %v1987
    %v1996 = vrot.slane %v1988, 3
    %v1997 = vrot.slane %v1989, 3
    %v1998 = vsel %vm387, %v1996, %v1997
    %v1999 = vrot.slane %v1990, 3
    %v2000 = vrot.slane %v1991, 3
    %v2001 = vsel %vm387, %v1999, %v2000
    %v2006 = vadd.f32 %v1980, %v1998
    %v2007 = vadd.f32 %v1981, %v1997
    %v2008 = vadd.f32 %v1982, %v2001
    %v2009 = vadd.f32 %v1983, %v2000
    %v2010 = vlaneseq
    %v2011 = vshrl.u32 %v2010, 7
    %v2012 = vsub.s32 4, %v2011
    %v2013 = vrot.slane %v1912, %v2012
    %v2014 = vmul.f32 %v1908, %v2013
    %v2015 = vmul.f32 %v1909, %v2013
    %v2016 = vmul.f32 %v1910, %v2013
    %v2017 = vmul.f32 %v1911, %v2013
    %v2022 = vrot.slane %v2014, 4
    %v2023 = vrot.slane %v2015, 4
    %v2024 = vsel %vm502, %v2022, %v2023
    %v2025 = vrot.slane %v2016, 4
    %v2026 = vrot.slane %v2017, 4
    %v2027 = vsel %vm502, %v2025, %v2026
    %v2032 = vadd.f32 %v2006, %v2024
    %v2033 = vadd.f32 %v2007, %v2023
    %v2034 = vadd.f32 %v2008, %v2027
    %v2035 = vadd.f32 %v2009, %v2026
    %v2036 = vadd.f32 %v2032, %v1913
    %v2037 = vadd.f32 %v2033, %v1913
    %v2038 = vadd.f32 %v2034, %v1913
    %v2039 = vadd.f32 %v2035, %v1913
    %v2040 = vmax.f32 %v2036, 0.0
    %v2041 = vmax.f32 %v2037, 0.0
    %v2042 = vmax.f32 %v2038, 0.0
    %v2043 = vmax.f32 %v2039, 0.0
    %v2048 = vcombine.high %v2040, %v2040
    %v2049 = vcombine.high %v2042, %v2042
    %v2050 = vcombine.low %v2040, %v2048
    %v2051 = vcombine.low %v2041, %v2042
    %v2052 = vcombine.low %v2049, %v2043
    %v2056 = vpack.c.bf16 %v2051, %v2050
    %v2057 = vpack.c.bf16 %v2052, %v2052
    %v2062 = vunpack.c.l.b16 %v1914
    %v2063 = vunpack.c.l.b16 %v1915
    %v2064 = vunpack.c.l.b16 %v1916
    %v2065 = vunpack.c.l.b16 %v1917
    %v2066 = vpack.c.b16 %v2063, %v2062
    %v2067 = vpack.c.b16 %v2065, %v2064
    %v2071 = vsel %vm1782, %v2056, 0
    %v2074 = vsel %vm1782, %v2057, 0
    %2076 = vmatprep.subr.bf16.mxu0 0
    %2077 = vmatpush1.bf16.msra.mxu0 %v2066
    %2078 = vmatprep.subr.bf16.mxu0 0
    %2079 = vmatpush1.bf16.msra.mxu0 %v2067
    %2080 = vmatprep.subr.bf16.mxu0 0
    %2081 = vmatpush1.bf16.msra.mxu0 0
    %2082 = vmatprep.subr.bf16.mxu0 0
    %2083 = vmatpush1.bf16.msra.mxu0 0
    %2084 = vmatprep.subr.bf16.mxu0 0
    %2085 = vmatpush1.bf16.msra.mxu0 0
    %2086 = vmatprep.subr.bf16.mxu0 0
    %2087 = vmatpush1.bf16.msra.mxu0 0
    %2088 = vmatprep.subr.bf16.mxu0 0
    %2089 = vmatpush1.bf16.msra.mxu0 0
    %2090 = vmatprep.subr.bf16.mxu0 0
    %2091 = vmatpush1.bf16.msra.mxu0 0
    %2092 = vmatprep.subr.bf16.mxu0 0
    %2093 = vmatpush1.bf16.msra.mxu0 0
    %2094 = vmatprep.subr.bf16.mxu0 0
    %2095 = vmatpush1.bf16.msra.mxu0 0
    %2096 = vmatprep.subr.bf16.mxu0 0
    %2097 = vmatpush1.bf16.msra.mxu0 0
    %2098 = vmatprep.subr.bf16.mxu0 0
    %2099 = vmatpush1.bf16.msra.mxu0 0
    %2100 = vmatprep.subr.bf16.mxu0 0
    %2101 = vmatpush1.bf16.msra.mxu0 0
    %2102 = vmatprep.subr.bf16.mxu0 0
    %2103 = vmatpush1.bf16.msra.mxu0 0
    %2104 = vmatprep.subr.bf16.mxu0 0
    %2105 = vmatpush1.bf16.msra.mxu0 0
    %2106 = vmatprep.subr.bf16.mxu0 0
    %2107 = vmatpush1.bf16.msra.mxu0 0
    %2108 = vmatprep.mubr.bf16.mxu0 0
    %2109 = vmatmul.mubr.bf16.gmra.mrb[0].mxu0 %v2071
    %v2110 = vpop.f32.mrb[0].mxu0
    %v2111 = vadd.f32 %v1918, %v2110
    %v2112 = vpop.f32.mrb[0].mxu0
    %v2113 = vpop.f32.mrb[0].mxu0
    %v2114 = vadd.f32 %v1918, %v2113
    %v2115 = vpop.f32.mrb[0].mxu0
    %2116 = vmatprep.mubr.bf16.mxu0 0
    %2117 = vmatmul.mubr.bf16.gmra.mrb[0].mxu0 %v2074
    %v2118 = vpop.f32.mrb[0].mxu0
    %v2119 = vadd.f32 %v1918, %v2118
    %v2120 = vpop.f32.mrb[0].mxu0
    %v2121 = vpop.f32.mrb[0].mxu0
    %v2122 = vpop.f32.mrb[0].mxu0
    %2123 = vdwg.mxu0
    %v2124 = vpack.c.bf16 %v2114, %v2111
    %v2125 = vpack.c.bf16 %v2119, %v2119
    %v2130 = vunpack.c.l.b16 %v1919
    %v2131 = vunpack.c.l.b16 %v1920
    %v2132 = vunpack.c.l.b16 %v1921
    %v2133 = vunpack.c.l.b16 %v1922
    %v2134 = vpack.c.b16 %v2131, %v2130
    %v2135 = vpack.c.b16 %v2133, %v2132
    %v2139 = vsel %vm1782, %v2124, 0
    %v2142 = vsel %vm1782, %v2125, 0
    %2144 = vmatprep.subr.bf16.mxu0 0
    %2145 = vmatpush1.bf16.msra.mxu0 %v2134
    %2146 = vmatprep.subr.bf16.mxu0 0
    %2147 = vmatpush1.bf16.msra.mxu0 %v2135
    %2148 = vmatprep.subr.bf16.mxu0 0
    %2149 = vmatpush1.bf16.msra.mxu0 0
    %2150 = vmatprep.subr.bf16.mxu0 0
    %2151 = vmatpush1.bf16.msra.mxu0 0
    %2152 = vmatprep.subr.bf16.mxu0 0
    %2153 = vmatpush1.bf16.msra.mxu0 0
    %2154 = vmatprep.subr.bf16.mxu0 0
    %2155 = vmatpush1.bf16.msra.mxu0 0
    %2156 = vmatprep.subr.bf16.mxu0 0
    %2157 = vmatpush1.bf16.msra.mxu0 0
    %2158 = vmatprep.subr.bf16.mxu0 0
    %2159 = vmatpush1.bf16.msra.mxu0 0
    %2160 = vmatprep.subr.bf16.mxu0 0
    %2161 = vmatpush1.bf16.msra.mxu0 0
    %2162 = vmatprep.subr.bf16.mxu0 0
    %2163 = vmatpush1.bf16.msra.mxu0 0
    %2164 = vmatprep.subr.bf16.mxu0 0
    %2165 = vmatpush1.bf16.msra.mxu0 0
    %2166 = vmatprep.subr.bf16.mxu0 0
    %2167 = vmatpush1.bf16.msra.mxu0 0
    %2168 = vmatprep.subr.bf16.mxu0 0
    %2169 = vmatpush1.bf16.msra.mxu0 0
    %2170 = vmatprep.subr.bf16.mxu0 0
    %2171 = vmatpush1.bf16.msra.mxu0 0
    %2172 = vmatprep.subr.bf16.mxu0 0
    %2173 = vmatpush1.bf16.msra.mxu0 0
    %2174 = vmatprep.subr.bf16.mxu0 0
    %2175 = vmatpush1.bf16.msra.mxu0 0
    %2176 = vmatprep.mubr.bf16.mxu0 0
    %2177 = vmatmul.mubr.bf16.gmra.mrb[0].mxu0 %v2139
    %v2178 = vpop.f32.mrb[0].mxu0
    %v2179 = vadd.f32 %v1923, %v2178
    %v2180 = vpop.f32.mrb[0].mxu0
    %v2181 = vpop.f32.mrb[0].mxu0
    %v2182 = vadd.f32 %v1923, %v2181
    %v2183 = vpop.f32.mrb[0].mxu0
    %2184 = vmatprep.mubr.bf16.mxu0 0
    %2185 = vmatmul.mubr.bf16.gmra.mrb[0].mxu0 %v2142
    %v2186 = vpop.f32.mrb[0].mxu0
    %v2187 = vadd.f32 %v1923, %v2186
    %v2188 = vpop.f32.mrb[0].mxu0
    %v2189 = vpop.f32.mrb[0].mxu0
    %v2190 = vpop.f32.mrb[0].mxu0
    %2191 = vdwg.mxu0
    %v2192 = vmax.f32 %v2179, 0.0
    %v2193 = vmax.f32 %v2182, 0.0
    %v2194 = vmax.f32 %v2187, 0.0
    %v2195 = vld [vmem:[%s1 + $0x408] sm:$0xf]
    %v2196 = vld [vmem:[%s1 + $0x414] sm:$0xf]
    %v2197 = vld [vmem:[%s1 + $0x420] sm:$0xf]
    %v2198 = vld [vmem:[%s1 + $0x42c] sm:$0xf]
    %v2199 = vld [vmem:[%s2 + $0x150] ss:$0 sm:$0xff]
    %v2200 = vpack.c.bf16 %v2193, %v2192
    %v2201 = vpack.c.bf16 %v2194, %v2194
    %v2206 = vunpack.c.l.b16 %v2195
    %v2207 = vunpack.c.l.b16 %v2196
    %v2208 = vunpack.c.l.b16 %v2197
    %v2209 = vunpack.c.l.b16 %v2198
    %v2210 = vpack.c.b16 %v2207, %v2206
    %v2211 = vpack.c.b16 %v2209, %v2208
    %v2215 = vsel %vm1782, %v2200, 0
    %v2218 = vsel %vm1782, %v2201, 0
    %2220 = vmatprep.subr.bf16.mxu0 0
    %2221 = vmatpush1.bf16.msra.mxu0 %v2210
    %2222 = vmatprep.subr.bf16.mxu0 0
    %2223 = vmatpush1.bf16.msra.mxu0 %v2211
    %2224 = vmatprep.subr.bf16.mxu0 0
    %2225 = vmatpush1.bf16.msra.mxu0 0
    %2226 = vmatprep.subr.bf16.mxu0 0
    %2227 = vmatpush1.bf16.msra.mxu0 0
    %2228 = vmatprep.subr.bf16.mxu0 0
    %2229 = vmatpush1.bf16.msra.mxu0 0
    %2230 = vmatprep.subr.bf16.mxu0 0
    %2231 = vmatpush1.bf16.msra.mxu0 0
    %2232 = vmatprep.subr.bf16.mxu0 0
    %2233 = vmatpush1.bf16.msra.mxu0 0
    %2234 = vmatprep.subr.bf16.mxu0 0
    %2235 = vmatpush1.bf16.msra.mxu0 0
    %2236 = vmatprep.subr.bf16.mxu0 0
    %2237 = vmatpush1.bf16.msra.mxu0 0
    %2238 = vmatprep.subr.bf16.mxu0 0
    %2239 = vmatpush1.bf16.msra.mxu0 0
    %2240 = vmatprep.subr.bf16.mxu0 0
    %2241 = vmatpush1.bf16.msra.mxu0 0
    %2242 = vmatprep.subr.bf16.mxu0 0
    %2243 = vmatpush1.bf16.msra.mxu0 0
    %2244 = vmatprep.subr.bf16.mxu0 0
    %2245 = vmatpush1.bf16.msra.mxu0 0
    %2246 = vmatprep.subr.bf16.mxu0 0
    %2247 = vmatpush1.bf16.msra.mxu0 0
    %2248 = vmatprep.subr.bf16.mxu0 0
    %2249 = vmatpush1.bf16.msra.mxu0 0
    %2250 = vmatprep.subr.bf16.mxu0 0
    %2251 = vmatpush1.bf16.msra.mxu0 0
    %2252 = vmatprep.mubr.bf16.mxu0 0
    %2253 = vmatmul.mubr.bf16.gmra.mrb[0].mxu0 %v2215
    %v2254 = vpop.f32.mrb[0].mxu0
    %v2255 = vadd.f32 %v2199, %v2254
    %v2256 = vpop.f32.mrb[0].mxu0
    %v2257 = vpop.f32.mrb[0].mxu0
    %v2258 = vadd.f32 %v2199, %v2257
    %v2259 = vpop.f32.mrb[0].mxu0
    %2260 = vmatprep.mubr.bf16.mxu0 0
    %2261 = vmatmul.mubr.bf16.gmra.mrb[0].mxu0 %v2218
    %v2262 = vpop.f32.mrb[0].mxu0
    %v2263 = vadd.f32 %v2199, %v2262
    %v2264 = vpop.f32.mrb[0].mxu0
    %v2265 = vpop.f32.mrb[0].mxu0
    %v2266 = vpop.f32.mrb[0].mxu0
    %2267 = vdwg.mxu0
    %v2268 = vmax.f32 %v2255, 0.0
    %v2269 = vmax.f32 %v2258, 0.0
    %v2270 = vmax.f32 %v2263, 0.0
    %v2274 = vcombine.high %v2268, %v2268
    %v2275 = vcombine.high %v2269, %v2269
    %v2276 = vcombine.high %v2270, %v2270
    %v2280 = vld [vmem:[%s2 + $0x168] sm:$0x1f]
    %v2281 = vld [vmem:[%s2 + $0x180] ss:$0 sm:$0xff]
    %v2282 = vld [vmem:[%s1 + $0x438] sm:$0xf]
    %v2283 = vld [vmem:[%s1 + $0x444] sm:$0xf]
    %v2284 = vld [vmem:[%s1 + $0x450] sm:$0xf]
    %v2285 = vld [vmem:[%s1 + $0x45c] sm:$0xf]
    %v2286 = vld [vmem:[%s2 + $0x198] ss:$0 sm:$0xff]
    %v2287 = vld [vmem:[%s1 + $0x468] sm:$0xf]
    %v2288 = vld [vmem:[%s1 + $0x474] sm:$0xf]
    %v2289 = vld [vmem:[%s1 + $0x480] sm:$0xf]
    %v2290 = vld [vmem:[%s1 + $0x48c] sm:$0xf]
    %v2291 = vld [vmem:[%s1 + $0x498] sm:$0xf]
    %v2292 = vld [vmem:[%s1 + $0x4a4] sm:$0xf]
    %v2293 = vld [vmem:[%s1 + $0x4b0] sm:$0xf]
    %v2294 = vld [vmem:[%s1 + $0x4bc] sm:$0xf]
    %v2295 = vld [vmem:[%s2 + $0x1b0] ss:$0 sm:$0xff]
    %v2296 = vlaneseq
    %v2297 = vshrl.u32 %v2296, 7
    %v2298 = vsub.s32 0, %v2297
    %v2299 = vrot.slane %v2280, %v2298
    %v2301 = vcombine.high %v2299, %v2299
    %v2303 = vmul.f32 %v2268, %v2299
    %v2304 = vmul.f32 %v2274, %v2301
    %v2305 = vmul.f32 %v2275, %v2299
    %v2306 = vmul.f32 %v2270, %v2301
    %v2307 = vlaneseq
    %v2308 = vshrl.u32 %v2307, 7
    %v2309 = vsub.s32 1, %v2308
    %v2310 = vrot.slane %v2280, %v2309
    %v2312 = vcombine.high %v2310, %v2310
    %v2313 = vrot.slane %v2310, 7
    %v2314 = vrot.slane %v2313, 4
    %v2315 = vrot.slane %v2312, 7
    %v2316 = vsel %vm1412, %v2314, %v2315
    %v2317 = vrot.slane %v2315, 4
    %v2321 = vmul.f32 %v2268, %v2313
    %v2322 = vmul.f32 %v2274, %v2316
    %v2323 = vmul.f32 %v2269, %v2317
    %v2324 = vmul.f32 %v2275, %v2313
    %v2325 = vmul.f32 %v2270, %v2316
    %v2326 = vmul.f32 %v2276, %v2317
    %v2333 = vrot.slane %v2321, 5
    %v2334 = vrot.slane %v2333, 4
    %v2335 = vrot.slane %v2322, 5
    %v2336 = vsel %vm1445, %v2334, %v2335
    %v2337 = vrot.slane %v2335, 4
    %v2338 = vrot.slane %v2323, 5
    %v2339 = vsel %vm1445, %v2337, %v2338
    %v2340 = vrot.slane %v2324, 5
    %v2341 = vrot.slane %v2340, 4
    %v2342 = vrot.slane %v2325, 5
    %v2343 = vsel %vm1445, %v2341, %v2342
    %v2344 = vrot.slane %v2342, 4
    %v2345 = vrot.slane %v2326, 5
    %v2346 = vsel %vm1445, %v2344, %v2345
    %v2351 = vadd.f32 %v2303, %v2336
    %v2352 = vadd.f32 %v2304, %v2339
    %v2353 = vadd.f32 %v2305, %v2343
    %v2354 = vadd.f32 %v2306, %v2346
    %v2355 = vlaneseq
    %v2356 = vshrl.u32 %v2355, 7
    %v2357 = vsub.s32 2, %v2356
    %v2358 = vrot.slane %v2280, %v2357
    %v2360 = vcombine.high %v2358, %v2358
    %v2361 = vrot.slane %v2358, 6
    %v2362 = vrot.slane %v2361, 4
    %v2363 = vrot.slane %v2360, 6
    %v2364 = vsel %vm1496, %v2362, %v2363
    %v2365 = vrot.slane %v2363, 4
    %v2369 = vmul.f32 %v2268, %v2361
    %v2370 = vmul.f32 %v2274, %v2364
    %v2371 = vmul.f32 %v2269, %v2365
    %v2372 = vmul.f32 %v2275, %v2361
    %v2373 = vmul.f32 %v2270, %v2364
    %v2374 = vmul.f32 %v2276, %v2365
    %v2381 = vrot.slane %v2369, 6
    %v2382 = vrot.slane %v2381, 4
    %v2383 = vrot.slane %v2370, 6
    %v2384 = vsel %vm1496, %v2382, %v2383
    %v2385 = vrot.slane %v2383, 4
    %v2386 = vrot.slane %v2371, 6
    %v2387 = vsel %vm1496, %v2385, %v2386
    %v2388 = vrot.slane %v2372, 6
    %v2389 = vrot.slane %v2388, 4
    %v2390 = vrot.slane %v2373, 6
    %v2391 = vsel %vm1496, %v2389, %v2390
    %v2392 = vrot.slane %v2390, 4
    %v2393 = vrot.slane %v2374, 6
    %v2394 = vsel %vm1496, %v2392, %v2393
    %v2399 = vadd.f32 %v2351, %v2384
    %v2400 = vadd.f32 %v2352, %v2387
    %v2401 = vadd.f32 %v2353, %v2391
    %v2402 = vadd.f32 %v2354, %v2394
    %v2403 = vlaneseq
    %v2404 = vshrl.u32 %v2403, 7
    %v2405 = vsub.s32 3, %v2404
    %v2406 = vrot.slane %v2280, %v2405
    %v2408 = vcombine.high %v2406, %v2406
    %v2409 = vrot.slane %v2406, 5
    %v2410 = vrot.slane %v2409, 4
    %v2411 = vrot.slane %v2408, 5
    %v2412 = vsel %vm1445, %v2410, %v2411
    %v2413 = vrot.slane %v2411, 4
    %v2417 = vmul.f32 %v2268, %v2409
    %v2418 = vmul.f32 %v2274, %v2412
    %v2419 = vmul.f32 %v2269, %v2413
    %v2420 = vmul.f32 %v2275, %v2409
    %v2421 = vmul.f32 %v2270, %v2412
    %v2422 = vmul.f32 %v2276, %v2413
    %v2429 = vrot.slane %v2417, 7
    %v2430 = vrot.slane %v2429, 4
    %v2431 = vrot.slane %v2418, 7
    %v2432 = vsel %vm1412, %v2430, %v2431
    %v2433 = vrot.slane %v2431, 4
    %v2434 = vrot.slane %v2419, 7
    %v2435 = vsel %vm1412, %v2433, %v2434
    %v2436 = vrot.slane %v2420, 7
    %v2437 = vrot.slane %v2436, 4
    %v2438 = vrot.slane %v2421, 7
    %v2439 = vsel %vm1412, %v2437, %v2438
    %v2440 = vrot.slane %v2438, 4
    %v2441 = vrot.slane %v2422, 7
    %v2442 = vsel %vm1412, %v2440, %v2441
    %v2447 = vadd.f32 %v2399, %v2432
    %v2448 = vadd.f32 %v2400, %v2435
    %v2449 = vadd.f32 %v2401, %v2439
    %v2450 = vadd.f32 %v2402, %v2442
    %v2451 = vlaneseq
    %v2452 = vshrl.u32 %v2451, 7
    %v2453 = vsub.s32 4, %v2452
    %v2454 = vrot.slane %v2280, %v2453
    %v2456 = vcombine.high %v2454, %v2454
    %v2458 = vmul.f32 %v2274, %v2454
    %v2459 = vmul.f32 %v2269, %v2456
    %v2460 = vmul.f32 %v2270, %v2454
    %v2461 = vmul.f32 %v2276, %v2456
    %v2462 = vadd.f32 %v2447, %v2458
    %v2463 = vadd.f32 %v2448, %v2459
    %v2464 = vadd.f32 %v2449, %v2460
    %v2465 = vadd.f32 %v2450, %v2461
    %v2467 = vcombine.high %v2281, %v2281
    %v2469 = vadd.f32 %v2462, %v2281
    %v2470 = vadd.f32 %v2463, %v2467
    %v2471 = vadd.f32 %v2464, %v2281
    %v2472 = vadd.f32 %v2465, %v2467
    %v2473 = vmax.f32 %v2469, 0.0
    %v2474 = vmax.f32 %v2470, 0.0
    %v2475 = vmax.f32 %v2471, 0.0
    %v2476 = vmax.f32 %v2472, 0.0
    %v2481 = vcombine.low %v2473, %v2474
    %v2482 = vcombine.low %v2475, %v2476
    %v2485 = vpack.c.bf16 %v2482, %v2481
    %v2490 = vunpack.c.l.b16 %v2282
    %v2491 = vunpack.c.l.b16 %v2283
    %v2492 = vunpack.c.l.b16 %v2284
    %v2493 = vunpack.c.l.b16 %v2285
    %v2494 = vpack.c.b16 %v2491, %v2490
    %v2495 = vpack.c.b16 %v2493, %v2492
    %v2499 = vsel %vm1782, %v2485, 0
    %2501 = vmatprep.subr.bf16.mxu0 0
    %2502 = vmatpush1.bf16.msra.mxu0 %v2494
    %2503 = vmatprep.subr.bf16.mxu0 0
    %2504 = vmatpush1.bf16.msra.mxu0 %v2495
    %2505 = vmatprep.subr.bf16.mxu0 0
    %2506 = vmatpush1.bf16.msra.mxu0 0
    %2507 = vmatprep.subr.bf16.mxu0 0
    %2508 = vmatpush1.bf16.msra.mxu0 0
    %2509 = vmatprep.subr.bf16.mxu0 0
    %2510 = vmatpush1.bf16.msra.mxu0 0
    %2511 = vmatprep.subr.bf16.mxu0 0
    %2512 = vmatpush1.bf16.msra.mxu0 0
    %2513 = vmatprep.subr.bf16.mxu0 0
    %2514 = vmatpush1.bf16.msra.mxu0 0
    %2515 = vmatprep.subr.bf16.mxu0 0
    %2516 = vmatpush1.bf16.msra.mxu0 0
    %2517 = vmatprep.subr.bf16.mxu0 0
    %2518 = vmatpush1.bf16.msra.mxu0 0
    %2519 = vmatprep.subr.bf16.mxu0 0
    %2520 = vmatpush1.bf16.msra.mxu0 0
    %2521 = vmatprep.subr.bf16.mxu0 0
    %2522 = vmatpush1.bf16.msra.mxu0 0
    %2523 = vmatprep.subr.bf16.mxu0 0
    %2524 = vmatpush1.bf16.msra.mxu0 0
    %2525 = vmatprep.subr.bf16.mxu0 0
    %2526 = vmatpush1.bf16.msra.mxu0 0
    %2527 = vmatprep.subr.bf16.mxu0 0
    %2528 = vmatpush1.bf16.msra.mxu0 0
    %2529 = vmatprep.subr.bf16.mxu0 0
    %2530 = vmatpush1.bf16.msra.mxu0 0
    %2531 = vmatprep.subr.bf16.mxu0 0
    %2532 = vmatpush1.bf16.msra.mxu0 0
    %2533 = vmatprep.mubr.bf16.mxu0 0
    %2534 = vmatmul.mubr.bf16.gmra.mrb[0].mxu0 %v2499
    %v2535 = vpop.f32.mrb[0].mxu0
    %v2536 = vadd.f32 %v2286, %v2535
    %v2537 = vpop.f32.mrb[0].mxu0
    %v2538 = vpop.f32.mrb[0].mxu0
    %v2539 = vadd.f32 %v2286, %v2538
    %v2540 = vpop.f32.mrb[0].mxu0
    %2541 = vdwg.mxu0
    %v2542 = vpack.c.bf16 %v2539, %v2536
    %v2551 = vunpack.c.l.b16 %v2287
    %v2552 = vunpack.c.l.b16 %v2288
    %v2553 = vunpack.c.l.b16 %v2289
    %v2554 = vunpack.c.l.b16 %v2290
    %v2555 = vunpack.c.l.b16 %v2291
    %v2556 = vunpack.c.l.b16 %v2292
    %v2557 = vunpack.c.l.b16 %v2293
    %v2558 = vunpack.c.l.b16 %v2294
    %v2559 = vpack.c.b16 %v2552, %v2551
    %v2560 = vpack.c.b16 %v2554, %v2553
    %v2561 = vpack.c.b16 %v2556, %v2555
    %v2562 = vpack.c.b16 %v2558, %v2557
    %vm2567 = vcmask 523264
    %v2569 = vsel %vm2567, %v2542, 0
    %2571 = vmatprep.subr.bf16.mxu0 0
    %2572 = vmatpush1.bf16.msra.mxu0 %v2559
    %2573 = vmatprep.subr.bf16.mxu0 0
    %2574 = vmatpush1.bf16.msra.mxu0 %v2560
    %2575 = vmatprep.subr.bf16.mxu0 0
    %2576 = vmatpush1.bf16.msra.mxu0 %v2561
    %2577 = vmatprep.subr.bf16.mxu0 0
    %2578 = vmatpush1.bf16.msra.mxu0 %v2562
    %2579 = vmatprep.subr.bf16.mxu0 0
    %2580 = vmatpush1.bf16.msra.mxu0 0
    %2581 = vmatprep.subr.bf16.mxu0 0
    %2582 = vmatpush1.bf16.msra.mxu0 0
    %2583 = vmatprep.subr.bf16.mxu0 0
    %2584 = vmatpush1.bf16.msra.mxu0 0
    %2585 = vmatprep.subr.bf16.mxu0 0
    %2586 = vmatpush1.bf16.msra.mxu0 0
    %2587 = vmatprep.subr.bf16.mxu0 0
    %2588 = vmatpush1.bf16.msra.mxu0 0
    %2589 = vmatprep.subr.bf16.mxu0 0
    %2590 = vmatpush1.bf16.msra.mxu0 0
    %2591 = vmatprep.subr.bf16.mxu0 0
    %2592 = vmatpush1.bf16.msra.mxu0 0
    %2593 = vmatprep.subr.bf16.mxu0 0
    %2594 = vmatpush1.bf16.msra.mxu0 0
    %2595 = vmatprep.subr.bf16.mxu0 0
    %2596 = vmatpush1.bf16.msra.mxu0 0
    %2597 = vmatprep.subr.bf16.mxu0 0
    %2598 = vmatpush1.bf16.msra.mxu0 0
    %2599 = vmatprep.subr.bf16.mxu0 0
    %2600 = vmatpush1.bf16.msra.mxu0 0
    %2601 = vmatprep.subr.bf16.mxu0 0
    %2602 = vmatpush1.bf16.msra.mxu0 0
    %2603 = vmatprep.mubr.bf16.mxu0 0
    %2604 = vmatmul.mubr.bf16.gmra.mrb[0].mxu0 %v2569
    %v2605 = vpop.f32.mrb[0].mxu0
    %v2606 = vadd.f32 %v2295, %v2605
    %v2607 = vpop.f32.mrb[0].mxu0
    %v2608 = vpop.f32.mrb[0].mxu0
    %v2609 = vadd.f32 %v2295, %v2608
    %v2610 = vpop.f32.mrb[0].mxu0
    %2611 = vdwg.mxu0
    %v2612 = vmax.f32 %v2606, 0.0
    %v2613 = vmax.f32 %v2609, 0.0
    %v2614 = vld [vmem:[%s1 + $0x4c8] sm:$0xf]
    %v2615 = vld [vmem:[%s1 + $0x4d4] sm:$0xf]
    %v2616 = vld [vmem:[%s1 + $0x4e0] sm:$0xf]
    %v2617 = vld [vmem:[%s1 + $0x4ec] sm:$0xf]
    %v2618 = vld [vmem:[%s2 + $0x1c8] ss:$0 sm:$0xff]
    %v2619 = vpack.c.bf16 %v2613, %v2612
    %v2624 = vunpack.c.l.b16 %v2614
    %v2625 = vunpack.c.l.b16 %v2615
    %v2626 = vunpack.c.l.b16 %v2616
    %v2627 = vunpack.c.l.b16 %v2617
    %v2628 = vpack.c.b16 %v2625, %v2624
    %v2629 = vpack.c.b16 %v2627, %v2626
    %v2633 = vsel %vm1782, %v2619, 0
    %2635 = vmatprep.subr.bf16.mxu0 0
    %2636 = vmatpush1.bf16.msra.mxu0 %v2628
    %2637 = vmatprep.subr.bf16.mxu0 0
    %2638 = vmatpush1.bf16.msra.mxu0 %v2629
    %2639 = vmatprep.subr.bf16.mxu0 0
    %2640 = vmatpush1.bf16.msra.mxu0 0
    %2641 = vmatprep.subr.bf16.mxu0 0
    %2642 = vmatpush1.bf16.msra.mxu0 0
    %2643 = vmatprep.subr.bf16.mxu0 0
    %2644 = vmatpush1.bf16.msra.mxu0 0
    %2645 = vmatprep.subr.bf16.mxu0 0
    %2646 = vmatpush1.bf16.msra.mxu0 0
    %2647 = vmatprep.subr.bf16.mxu0 0
    %2648 = vmatpush1.bf16.msra.mxu0 0
    %2649 = vmatprep.subr.bf16.mxu0 0
    %2650 = vmatpush1.bf16.msra.mxu0 0
    %2651 = vmatprep.subr.bf16.mxu0 0
    %2652 = vmatpush1.bf16.msra.mxu0 0
    %2653 = vmatprep.subr.bf16.mxu0 0
    %2654 = vmatpush1.bf16.msra.mxu0 0
    %2655 = vmatprep.subr.bf16.mxu0 0
    %2656 = vmatpush1.bf16.msra.mxu0 0
    %2657 = vmatprep.subr.bf16.mxu0 0
    %2658 = vmatpush1.bf16.msra.mxu0 0
    %2659 = vmatprep.subr.bf16.mxu0 0
    %2660 = vmatpush1.bf16.msra.mxu0 0
    %2661 = vmatprep.subr.bf16.mxu0 0
    %2662 = vmatpush1.bf16.msra.mxu0 0
    %2663 = vmatprep.subr.bf16.mxu0 0
    %2664 = vmatpush1.bf16.msra.mxu0 0
    %2665 = vmatprep.subr.bf16.mxu0 0
    %2666 = vmatpush1.bf16.msra.mxu0 0
    %2667 = vmatprep.mubr.bf16.mxu0 0
    %2668 = vmatmul.mubr.bf16.gmra.mrb[0].mxu0 %v2633
    %v2669 = vpop.f32.mrb[0].mxu0
    %v2670 = vadd.f32 %v2618, %v2669
    %v2671 = vpop.f32.mrb[0].mxu0
    %v2672 = vpop.f32.mrb[0].mxu0
    %v2673 = vadd.f32 %v2618, %v2672
    %v2674 = vpop.f32.mrb[0].mxu0
    %2675 = vdwg.mxu0
    %v2676 = vmax.f32 %v2670, 0.0
    %v2677 = vmax.f32 %v2673, 0.0
    %v2678 = vld [vmem:[%s1 + $0x558] sm:$0xff]
    %v2679 = vld [vmem:[%s1 + $0x564] sm:$0xff]
    %v2680 = vld [vmem:[%s1 + $0x570] sm:$0xff]
    %v2681 = vld [vmem:[%s1 + $0x57c] sm:$0xff]
    %v2682 = vld [vmem:[%s1 + $0x588] sm:$0xff]
    %v2683 = vld [vmem:[%s1 + $0x594] sm:$0xff]
    %v2684 = vld [vmem:[%s1 + $0x5a0] sm:$0xff]
    %v2685 = vld [vmem:[%s1 + $0x5ac] sm:$0xff]
    %v2686 = vld [vmem:[%s1 + $0x618] sm:$0xff]
    %v2687 = vld [vmem:[%s1 + $0x624] sm:$0xff]
    %v2688 = vld [vmem:[%s1 + $0x630] sm:$0xff]
    %v2689 = vld [vmem:[%s1 + $0x63c] sm:$0xff]
    %v2690 = vld [vmem:[%s1 + $0x648] sm:$0xff]
    %v2691 = vld [vmem:[%s1 + $0x654] sm:$0xff]
    %v2692 = vld [vmem:[%s1 + $0x660] sm:$0xff]
    %v2693 = vld [vmem:[%s1 + $0x66c] sm:$0xff]
    %v2696 = vrot.slane %v2677, 7
    %vm2697 = vcmask 1041409
    %v2698 = vsel %vm2697, %v2696, %v2676
    %vm2700 = vcmask 517120
    %2701 = vst.msk [vmem:[#allocation2] sm:$0x3] %vm2700, %v2698
    %vm2702 = vcmask 1042434
    %v2703 = vsel %vm2702, %v2696, %v2676
    %s2705 = scalar_lea.vmem [#allocation2], 2
    %vm2706 = vcmask 518145
    %2707 = vst.msk [vmem:[%s2705 - $0x1] sm:$0x6] %vm2706, %v2703
    %vm2708 = vcmask 1043459
    %v2709 = vsel %vm2708, %v2696, %v2676
    %s2711 = scalar_lea.vmem [#allocation2], 4
    %vm2712 = vcmask 519170
    %2713 = vst.msk [vmem:[%s2711 - $0x2] sm:$0xc] %vm2712, %v2709
    %v2714 = vsel %vm1411, %v2696, %v2676
    %s2716 = scalar_lea.vmem [#allocation2], 6
    %vm2717 = vcmask 520195
    %2718 = vst.msk [vmem:[%s2716 - $0x3] sm:$0x18] %vm2717, %v2714
    %vm2719 = vcmask 1045509
    %v2720 = vsel %vm2719, %v2696, %v2676
    %s2722 = scalar_lea.vmem [#allocation2], 8
    %vm2723 = vcmask 521220
    %2724 = vst.msk [vmem:[%s2722 - $0x4] sm:$0x30] %vm2723, %v2720
    %vm2725 = vcmask 1046534
    %v2726 = vsel %vm2725, %v2696, %v2676
    %s2728 = scalar_lea.vmem [#allocation2], 10
    %vm2729 = vcmask 522245
    %2730 = vst.msk [vmem:[%s2728 - $0x5] sm:$0x60] %vm2729, %v2726
    %vm2731 = vcmask 1047559
    %v2732 = vsel %vm2731, %v2696, %v2676
    %s2734 = scalar_lea.vmem [#allocation2], 12
    %vm2735 = vcmask 523270
    %2736 = vst.msk [vmem:[%s2734 - $0x6] sm:$0xc0] %vm2735, %v2732
    %s2739 = scalar_lea.vmem [#allocation2], 14
    %vm2740 = vcmask 523271
    %2741 = vst.msk [vmem:[%s2739 - $0x7] sm:$0x80] %vm2740, %v2676
    %vm2742 = vcmask 516096
    %2743 = vst.msk [vmem:[%s2739 + $0x1] sm:$0x1] %vm2742, %v2696
    %v2744 = vld [vmem:[#allocation2] sm:$0x3]
    %v2745 = vld [vmem:[#allocation2 + $0x2] sm:$0x3]
    %v2746 = vld [vmem:[#allocation2 + $0x4] sm:$0x3]
    %v2747 = vld [vmem:[#allocation2 + $0x6] sm:$0x3]
    %v2748 = vld [vmem:[#allocation2 + $0x8] sm:$0x3]
    %v2749 = vld [vmem:[#allocation2 + $0xa] sm:$0x3]
    %v2750 = vld [vmem:[#allocation2 + $0xc] sm:$0x3]
    %v2751 = vld [vmem:[#allocation2 + $0xe] sm:$0x3]
    %v2760 = vcombine.low %v2744, %v2745
    %v2761 = vcombine.low %v2746, %v2747
    %v2763 = vunpack.c.l.s4 1983009808
    %v2764 = vunpack.c.0.s8 %v2763
    %v2765 = vlaneseq
    %v2766 = vshrl.u32 %v2765, 7
    %v2767 = vsub.s32 %v2764, %v2766
    %v2768 = vrot.slane %v2760, %v2767
    %v2770 = vunpack.c.l.s4 1983009808
    %v2771 = vunpack.c.0.s8 %v2770
    %v2772 = vlaneseq
    %v2773 = vshrl.u32 %v2772, 7
    %v2774 = vsub.s32 %v2771, %v2773
    %v2775 = vrot.slane %v2761, %v2774
    %v2776 = vcombine.low %v2768, %v2775
    %v2777 = vcombine.low %v2748, %v2749
    %v2778 = vcombine.low %v2750, %v2751
    %v2780 = vunpack.c.l.s4 1983009808
    %v2781 = vunpack.c.0.s8 %v2780
    %v2782 = vlaneseq
    %v2783 = vshrl.u32 %v2782, 7
    %v2784 = vsub.s32 %v2781, %v2783
    %v2785 = vrot.slane %v2777, %v2784
    %v2787 = vunpack.c.l.s4 1983009808
    %v2788 = vunpack.c.0.s8 %v2787
    %v2789 = vlaneseq
    %v2790 = vshrl.u32 %v2789, 7
    %v2791 = vsub.s32 %v2788, %v2790
    %v2792 = vrot.slane %v2778, %v2791
    %v2793 = vcombine.low %v2785, %v2792
    %v2796 = vpack.c.bf16 %v2793, %v2776
    %v2797 = vld [vmem:[%s1 + $0x4f8] sm:$0xff]
    %v2798 = vld [vmem:[%s1 + $0x504] sm:$0xff]
    %v2799 = vld [vmem:[%s1 + $0x510] sm:$0xff]
    %v2800 = vld [vmem:[%s1 + $0x51c] sm:$0xff]
    %v2801 = vld [vmem:[%s1 + $0x528] sm:$0xff]
    %v2802 = vld [vmem:[%s1 + $0x534] sm:$0xff]
    %v2803 = vld [vmem:[%s1 + $0x540] sm:$0xff]
    %v2804 = vld [vmem:[%s1 + $0x54c] sm:$0xff]
    %s2805 = scalar_lea.vmem %s2, 480
    %v2806 = vld [vmem:[%s2805] ss:$8 sm:$0x3]
    %v2808 = vlaneseq
    %v2809 = vshrl.u32 %v2808, 7
    %v2810 = vsub.s32 0, %v2809
    %v2811 = vrot.slane %v2806, %v2810
    %v2812 = vlaneseq
    %v2813 = vshrl.u32 %v2812, 7
    %v2814 = vsub.s32 1, %v2813
    %v2815 = vrot.slane %v2806, %v2814
    %v2826 = vunpack.c.l.b16 %v2797
    %v2827 = vunpack.c.h.b16 %v2797
    %v2828 = vunpack.c.l.b16 %v2798
    %v2829 = vunpack.c.h.b16 %v2798
    %v2830 = vunpack.c.l.b16 %v2799
    %v2831 = vunpack.c.h.b16 %v2799
    %v2832 = vunpack.c.l.b16 %v2800
    %v2833 = vunpack.c.h.b16 %v2800
    %v2834 = vunpack.c.l.b16 %v2801
    %v2835 = vunpack.c.h.b16 %v2801
    %v2836 = vunpack.c.l.b16 %v2802
    %v2837 = vunpack.c.h.b16 %v2802
    %v2838 = vunpack.c.l.b16 %v2803
    %v2839 = vunpack.c.h.b16 %v2803
    %v2840 = vunpack.c.l.b16 %v2804
    %v2841 = vunpack.c.h.b16 %v2804
    %v2842 = vpack.c.b16 %v2828, %v2826
    %v2843 = vpack.c.b16 %v2829, %v2827
    %v2844 = vpack.c.b16 %v2832, %v2830
    %v2845 = vpack.c.b16 %v2833, %v2831
    %v2846 = vpack.c.b16 %v2836, %v2834
    %v2847 = vpack.c.b16 %v2837, %v2835
    %v2848 = vpack.c.b16 %v2840, %v2838
    %v2849 = vpack.c.b16 %v2841, %v2839
    %v2859 = vsel %vm2567, %v2796, 0
    %2861 = vmatprep.subr.bf16.mxu0 %v2843
    %2862 = vmatpush1.bf16.msra.mxu0 %v2842
    %2863 = vmatprep.subr.bf16.mxu0 %v2845
    %2864 = vmatpush1.bf16.msra.mxu0 %v2844
    %2865 = vmatprep.subr.bf16.mxu0 %v2847
    %2866 = vmatpush1.bf16.msra.mxu0 %v2846
    %2867 = vmatprep.subr.bf16.mxu0 %v2849
    %2868 = vmatpush1.bf16.msra.mxu0 %v2848
    %2869 = vmatprep.subr.bf16.mxu0 0
    %2870 = vmatpush1.bf16.msra.mxu0 0
    %2871 = vmatprep.subr.bf16.mxu0 0
    %2872 = vmatpush1.bf16.msra.mxu0 0
    %2873 = vmatprep.subr.bf16.mxu0 0
    %2874 = vmatpush1.bf16.msra.mxu0 0
    %2875 = vmatprep.subr.bf16.mxu0 0
    %2876 = vmatpush1.bf16.msra.mxu0 0
    %2877 = vmatprep.subr.bf16.mxu0 0
    %2878 = vmatpush1.bf16.msra.mxu0 0
    %2879 = vmatprep.subr.bf16.mxu0 0
    %2880 = vmatpush1.bf16.msra.mxu0 0
    %2881 = vmatprep.subr.bf16.mxu0 0
    %2882 = vmatpush1.bf16.msra.mxu0 0
    %2883 = vmatprep.subr.bf16.mxu0 0
    %2884 = vmatpush1.bf16.msra.mxu0 0
    %2885 = vmatprep.subr.bf16.mxu0 0
    %2886 = vmatpush1.bf16.msra.mxu0 0
    %2887 = vmatprep.subr.bf16.mxu0 0
    %2888 = vmatpush1.bf16.msra.mxu0 0
    %2889 = vmatprep.subr.bf16.mxu0 0
    %2890 = vmatpush1.bf16.msra.mxu0 0
    %2891 = vmatprep.subr.bf16.mxu0 0
    %2892 = vmatpush1.bf16.msra.mxu0 0
    %2893 = vmatprep.mubr.bf16.mxu0 0
    %2894 = vmatmul.mubr.bf16.gmra.mrb[0].mxu0 %v2859
    %v2895 = vpop.f32.mrb[0].mxu0
    %v2896 = vadd.f32 %v2811, %v2895
    %v2897 = vpop.f32.mrb[0].mxu0
    %v2898 = vadd.f32 %v2815, %v2897
    %v2899 = vpop.f32.mrb[0].mxu0
    %v2900 = vadd.f32 %v2811, %v2899
    %v2901 = vpop.f32.mrb[0].mxu0
    %v2902 = vadd.f32 %v2815, %v2901
    %2903 = vdwg.mxu0
    %v2908 = vcombine.low %v2896, %v2898
    %v2909 = vcombine.high %v2896, %v2898
    %v2911 = vunpack.c.l.s4 1983009808
    %v2912 = vunpack.c.0.s8 %v2911
    %v2913 = vlaneseq
    %v2914 = vshrl.u32 %v2913, 7
    %v2915 = vsub.s32 %v2912, %v2914
    %v2916 = vrot.slane %v2908, %v2915
    %v2918 = vunpack.c.l.s4 1983009808
    %v2919 = vunpack.c.0.s8 %v2918
    %v2920 = vlaneseq
    %v2921 = vshrl.u32 %v2920, 7
    %v2922 = vsub.s32 %v2919, %v2921
    %v2923 = vrot.slane %v2909, %v2922
    %v2924 = vcombine.high %v2916, %v2916
    %v2925 = vcombine.high %v2923, %v2923
    %v2926 = vcombine.low %v2900, %v2902
    %v2927 = vcombine.high %v2900, %v2902
    %v2929 = vunpack.c.l.s4 1983009808
    %v2930 = vunpack.c.0.s8 %v2929
    %v2931 = vlaneseq
    %v2932 = vshrl.u32 %v2931, 7
    %v2933 = vsub.s32 %v2930, %v2932
    %v2934 = vrot.slane %v2926, %v2933
    %v2936 = vunpack.c.l.s4 1983009808
    %v2937 = vunpack.c.0.s8 %v2936
    %v2938 = vlaneseq
    %v2939 = vshrl.u32 %v2938, 7
    %v2940 = vsub.s32 %v2937, %v2939
    %v2941 = vrot.slane %v2927, %v2940
    %v2942 = vcombine.high %v2934, %v2934
    %v2943 = vcombine.high %v2941, %v2941
    %v2960 = vunpack.c.l.b16 %v2678
    %v2961 = vunpack.c.h.b16 %v2678
    %v2962 = vunpack.c.l.b16 %v2679
    %v2963 = vunpack.c.h.b16 %v2679
    %v2964 = vunpack.c.l.b16 %v2680
    %v2965 = vunpack.c.h.b16 %v2680
    %v2966 = vunpack.c.l.b16 %v2681
    %v2967 = vunpack.c.h.b16 %v2681
    %v2968 = vunpack.c.l.b16 %v2682
    %v2969 = vunpack.c.h.b16 %v2682
    %v2970 = vunpack.c.l.b16 %v2683
    %v2971 = vunpack.c.h.b16 %v2683
    %v2972 = vunpack.c.l.b16 %v2684
    %v2973 = vunpack.c.h.b16 %v2684
    %v2974 = vunpack.c.l.b16 %v2685
    %v2975 = vunpack.c.h.b16 %v2685
    %v2976 = vpack.c.b16 %v2962, %v2960
    %v2977 = vpack.c.b16 %v2963, %v2961
    %v2978 = vpack.c.b16 %v2966, %v2964
    %v2979 = vpack.c.b16 %v2967, %v2965
    %v2980 = vpack.c.b16 %v2970, %v2968
    %v2981 = vpack.c.b16 %v2971, %v2969
    %v2982 = vpack.c.b16 %v2974, %v2972
    %v2983 = vpack.c.b16 %v2975, %v2973
    %v2993 = vsel %vm2567, 0, 0
    %2995 = vmatprep.subr.bf16.mxu0 %v2977
    %2996 = vmatpush1.bf16.msra.mxu0 %v2976
    %2997 = vmatprep.subr.bf16.mxu0 %v2979
    %2998 = vmatpush1.bf16.msra.mxu0 %v2978
    %2999 = vmatprep.subr.bf16.mxu0 %v2981
    %3000 = vmatpush1.bf16.msra.mxu0 %v2980
    %3001 = vmatprep.subr.bf16.mxu0 %v2983
    %3002 = vmatpush1.bf16.msra.mxu0 %v2982
    %3003 = vmatprep.subr.bf16.mxu0 0
    %3004 = vmatpush1.bf16.msra.mxu0 0
    %3005 = vmatprep.subr.bf16.mxu0 0
    %3006 = vmatpush1.bf16.msra.mxu0 0
    %3007 = vmatprep.subr.bf16.mxu0 0
    %3008 = vmatpush1.bf16.msra.mxu0 0
    %3009 = vmatprep.subr.bf16.mxu0 0
    %3010 = vmatpush1.bf16.msra.mxu0 0
    %3011 = vmatprep.subr.bf16.mxu0 0
    %3012 = vmatpush1.bf16.msra.mxu0 0
    %3013 = vmatprep.subr.bf16.mxu0 0
    %3014 = vmatpush1.bf16.msra.mxu0 0
    %3015 = vmatprep.subr.bf16.mxu0 0
    %3016 = vmatpush1.bf16.msra.mxu0 0
    %3017 = vmatprep.subr.bf16.mxu0 0
    %3018 = vmatpush1.bf16.msra.mxu0 0
    %3019 = vmatprep.subr.bf16.mxu0 0
    %3020 = vmatpush1.bf16.msra.mxu0 0
    %3021 = vmatprep.subr.bf16.mxu0 0
    %3022 = vmatpush1.bf16.msra.mxu0 0
    %3023 = vmatprep.subr.bf16.mxu0 0
    %3024 = vmatpush1.bf16.msra.mxu0 0
    %3025 = vmatprep.subr.bf16.mxu0 0
    %3026 = vmatpush1.bf16.msra.mxu0 0
    %3027 = vmatprep.mubr.bf16.mxu0 0
    %3028 = vmatmul.mubr.bf16.gmra.mrb[0].mxu0 %v2993
    %v3029 = vpop.f32.mrb[0].mxu0
    %v3030 = vadd.f32 0.0, %v3029
    %v3031 = vpop.f32.mrb[0].mxu0
    %v3032 = vadd.f32 0.0, %v3031
    %v3033 = vpop.f32.mrb[0].mxu0
    %v3034 = vpop.f32.mrb[0].mxu0
    %3035 = vdwg.mxu0
    %v3038 = vcombine.low %v3030, %v3032
    %v3040 = vunpack.c.l.s4 1983009808
    %v3041 = vunpack.c.0.s8 %v3040
    %v3042 = vlaneseq
    %v3043 = vshrl.u32 %v3042, 7
    %v3044 = vsub.s32 %v3041, %v3043
    %v3045 = vrot.slane %v3038, %v3044
    %v3047 = vadd.f32 %v2916, %v3045
    %v3048 = vxor.u32 %v3047, 2147483648
    %v3049 = vmul.f32 %v3048, 1.442695
    %v3050 = vpow.pop %v3049
    %v3051 = vadd.f32 %v3050, 1.0
    %v3052 = vrcp.pop %v3051
    %v3053 = vmul.f32 1.0, %v3052
    %3055 = vrot.lane.b32.xlu0 %v3047, 64
    %v3056 = vpop.permute.xlu0 %3055
    %v3057 = vrot.slane %v3056, 2
    %v3059 = vtanh.pop %v3057
    %v3060 = vmul.f32 %v3053, 0.0
    %v3061 = vmul.f32 %v3053, %v3059
    %3063 = vrot.lane.b32.xlu0 %v3061, 64
    %v3064 = vpop.permute.xlu0 %3063
    %v3066 = vadd.f32 %v3060, %v3064
    %v3067 = vtanh.pop %v3066
    %v3069 = vrot.slane %v3053, 2
    %3072 = vrot.lane.b32.xlu0 %v3067, 64
    %v3073 = vpop.permute.xlu0 %3072
    %v3075 = vmul.f32 %v3069, %v3073
    %3076 = vst.msk [vmem:[#allocation2] sm:$0x3] %vm2700, %v3075
    %v3077 = vpack.c.bf16 %v3075, %v3075
    %v3079 = vsel %vm2567, %v3077, 0
    %3081 = vmatprep.subr.bf16.mxu0 %v2977
    %3082 = vmatpush1.bf16.msra.mxu0 %v2976
    %3083 = vmatprep.subr.bf16.mxu0 %v2979
    %3084 = vmatpush1.bf16.msra.mxu0 %v2978
    %3085 = vmatprep.subr.bf16.mxu0 %v2981
    %3086 = vmatpush1.bf16.msra.mxu0 %v2980
    %3087 = vmatprep.subr.bf16.mxu0 %v2983
    %3088 = vmatpush1.bf16.msra.mxu0 %v2982
    %3089 = vmatprep.subr.bf16.mxu0 0
    %3090 = vmatpush1.bf16.msra.mxu0 0
    %3091 = vmatprep.subr.bf16.mxu0 0
    %3092 = vmatpush1.bf16.msra.mxu0 0
    %3093 = vmatprep.subr.bf16.mxu0 0
    %3094 = vmatpush1.bf16.msra.mxu0 0
    %3095 = vmatprep.subr.bf16.mxu0 0
    %3096 = vmatpush1.bf16.msra.mxu0 0
    %3097 = vmatprep.subr.bf16.mxu0 0
    %3098 = vmatpush1.bf16.msra.mxu0 0
    %3099 = vmatprep.subr.bf16.mxu0 0
    %3100 = vmatpush1.bf16.msra.mxu0 0
    %3101 = vmatprep.subr.bf16.mxu0 0
    %3102 = vmatpush1.bf16.msra.mxu0 0
    %3103 = vmatprep.subr.bf16.mxu0 0
    %3104 = vmatpush1.bf16.msra.mxu0 0
    %3105 = vmatprep.subr.bf16.mxu0 0
    %3106 = vmatpush1.bf16.msra.mxu0 0
    %3107 = vmatprep.subr.bf16.mxu0 0
    %3108 = vmatpush1.bf16.msra.mxu0 0
    %3109 = vmatprep.subr.bf16.mxu0 0
    %3110 = vmatpush1.bf16.msra.mxu0 0
    %3111 = vmatprep.subr.bf16.mxu0 0
    %3112 = vmatpush1.bf16.msra.mxu0 0
    %3113 = vmatprep.mubr.bf16.mxu0 0
    %3114 = vmatmul.mubr.bf16.gmra.mrb[0].mxu0 %v3079
    %v3115 = vpop.f32.mrb[0].mxu0
    %v3116 = vadd.f32 0.0, %v3115
    %v3117 = vpop.f32.mrb[0].mxu0
    %v3118 = vadd.f32 0.0, %v3117
    %v3119 = vpop.f32.mrb[0].mxu0
    %v3120 = vpop.f32.mrb[0].mxu0
    %3121 = vdwg.mxu0
    %v3124 = vcombine.low %v3116, %v3118
    %v3126 = vunpack.c.l.s4 1983009808
    %v3127 = vunpack.c.0.s8 %v3126
    %v3128 = vlaneseq
    %v3129 = vshrl.u32 %v3128, 7
    %v3130 = vsub.s32 %v3127, %v3129
    %v3131 = vrot.slane %v3124, %v3130
    %v3133 = vadd.f32 %v2924, %v3131
    %v3134 = vxor.u32 %v3133, 2147483648
    %v3135 = vmul.f32 %v3134, 1.442695
    %v3136 = vpow.pop %v3135
    %v3137 = vadd.f32 %v3136, 1.0
    %v3138 = vrcp.pop %v3137
    %v3139 = vmul.f32 1.0, %v3138
    %3141 = vrot.lane.b32.xlu0 %v3133, 64
    %v3142 = vpop.permute.xlu0 %3141
    %v3143 = vrot.slane %v3142, 2
    %v3145 = vtanh.pop %v3143
    %v3146 = vmul.f32 %v3139, %v3066
    %v3147 = vmul.f32 %v3139, %v3145
    %3149 = vrot.lane.b32.xlu0 %v3147, 64
    %v3150 = vpop.permute.xlu0 %3149
    %v3152 = vadd.f32 %v3146, %v3150
    %v3153 = vtanh.pop %v3152
    %v3155 = vrot.slane %v3139, 2
    %3158 = vrot.lane.b32.xlu0 %v3153, 64
    %v3159 = vpop.permute.xlu0 %3158
    %v3161 = vmul.f32 %v3155, %v3159
    %3162 = vst.msk [vmem:[%s2705] sm:$0x3] %vm2700, %v3161
    %v3163 = vpack.c.bf16 %v3161, %v3161
    %v3165 = vsel %vm2567, %v3163, 0
    %3167 = vmatprep.subr.bf16.mxu0 %v2977
    %3168 = vmatpush1.bf16.msra.mxu0 %v2976
    %3169 = vmatprep.subr.bf16.mxu0 %v2979
    %3170 = vmatpush1.bf16.msra.mxu0 %v2978
    %3171 = vmatprep.subr.bf16.mxu0 %v2981
    %3172 = vmatpush1.bf16.msra.mxu0 %v2980
    %3173 = vmatprep.subr.bf16.mxu0 %v2983
    %3174 = vmatpush1.bf16.msra.mxu0 %v2982
    %3175 = vmatprep.subr.bf16.mxu0 0
    %3176 = vmatpush1.bf16.msra.mxu0 0
    %3177 = vmatprep.subr.bf16.mxu0 0
    %3178 = vmatpush1.bf16.msra.mxu0 0
    %3179 = vmatprep.subr.bf16.mxu0 0
    %3180 = vmatpush1.bf16.msra.mxu0 0
    %3181 = vmatprep.subr.bf16.mxu0 0
    %3182 = vmatpush1.bf16.msra.mxu0 0
    %3183 = vmatprep.subr.bf16.mxu0 0
    %3184 = vmatpush1.bf16.msra.mxu0 0
    %3185 = vmatprep.subr.bf16.mxu0 0
    %3186 = vmatpush1.bf16.msra.mxu0 0
    %3187 = vmatprep.subr.bf16.mxu0 0
    %3188 = vmatpush1.bf16.msra.mxu0 0
    %3189 = vmatprep.subr.bf16.mxu0 0
    %3190 = vmatpush1.bf16.msra.mxu0 0
    %3191 = vmatprep.subr.bf16.mxu0 0
    %3192 = vmatpush1.bf16.msra.mxu0 0
    %3193 = vmatprep.subr.bf16.mxu0 0
    %3194 = vmatpush1.bf16.msra.mxu0 0
    %3195 = vmatprep.subr.bf16.mxu0 0
    %3196 = vmatpush1.bf16.msra.mxu0 0
    %3197 = vmatprep.subr.bf16.mxu0 0
    %3198 = vmatpush1.bf16.msra.mxu0 0
    %3199 = vmatprep.mubr.bf16.mxu0 0
    %3200 = vmatmul.mubr.bf16.gmra.mrb[0].mxu0 %v3165
    %v3201 = vpop.f32.mrb[0].mxu0
    %v3202 = vadd.f32 0.0, %v3201
    %v3203 = vpop.f32.mrb[0].mxu0
    %v3204 = vadd.f32 0.0, %v3203
    %v3205 = vpop.f32.mrb[0].mxu0
    %v3206 = vpop.f32.mrb[0].mxu0
    %3207 = vdwg.mxu0
    %v3210 = vcombine.low %v3202, %v3204
    %v3212 = vunpack.c.l.s4 1983009808
    %v3213 = vunpack.c.0.s8 %v3212
    %v3214 = vlaneseq
    %v3215 = vshrl.u32 %v3214, 7
    %v3216 = vsub.s32 %v3213, %v3215
    %v3217 = vrot.slane %v3210, %v3216
    %v3219 = vadd.f32 %v2923, %v3217
    %v3220 = vxor.u32 %v3219, 2147483648
    %v3221 = vmul.f32 %v3220, 1.442695
    %v3222 = vpow.pop %v3221
    %v3223 = vadd.f32 %v3222, 1.0
    %v3224 = vrcp.pop %v3223
    %v3225 = vmul.f32 1.0, %v3224
    %3227 = vrot.lane.b32.xlu0 %v3219, 64
    %v3228 = vpop.permute.xlu0 %3227
    %v3229 = vrot.slane %v3228, 2
    %v3231 = vtanh.pop %v3229
    %v3232 = vmul.f32 %v3225, %v3152
    %v3233 = vmul.f32 %v3225, %v3231
    %3235 = vrot.lane.b32.xlu0 %v3233, 64
    %v3236 = vpop.permute.xlu0 %3235
    %v3238 = vadd.f32 %v3232, %v3236
    %v3239 = vtanh.pop %v3238
    %v3241 = vrot.slane %v3225, 2
    %3244 = vrot.lane.b32.xlu0 %v3239, 64
    %v3245 = vpop.permute.xlu0 %3244
    %v3247 = vmul.f32 %v3241, %v3245
    %3248 = vst.msk [vmem:[%s2711] sm:$0x3] %vm2700, %v3247
    %v3249 = vpack.c.bf16 %v3247, %v3247
    %v3251 = vsel %vm2567, %v3249, 0
    %3253 = vmatprep.subr.bf16.mxu0 %v2977
    %3254 = vmatpush1.bf16.msra.mxu0 %v2976
    %3255 = vmatprep.subr.bf16.mxu0 %v2979
    %3256 = vmatpush1.bf16.msra.mxu0 %v2978
    %3257 = vmatprep.subr.bf16.mxu0 %v2981
    %3258 = vmatpush1.bf16.msra.mxu0 %v2980
    %3259 = vmatprep.subr.bf16.mxu0 %v2983
    %3260 = vmatpush1.bf16.msra.mxu0 %v2982
    %3261 = vmatprep.subr.bf16.mxu0 0
    %3262 = vmatpush1.bf16.msra.mxu0 0
    %3263 = vmatprep.subr.bf16.mxu0 0
    %3264 = vmatpush1.bf16.msra.mxu0 0
    %3265 = vmatprep.subr.bf16.mxu0 0
    %3266 = vmatpush1.bf16.msra.mxu0 0
    %3267 = vmatprep.subr.bf16.mxu0 0
    %3268 = vmatpush1.bf16.msra.mxu0 0
    %3269 = vmatprep.subr.bf16.mxu0 0
    %3270 = vmatpush1.bf16.msra.mxu0 0
    %3271 = vmatprep.subr.bf16.mxu0 0
    %3272 = vmatpush1.bf16.msra.mxu0 0
    %3273 = vmatprep.subr.bf16.mxu0 0
    %3274 = vmatpush1.bf16.msra.mxu0 0
    %3275 = vmatprep.subr.bf16.mxu0 0
    %3276 = vmatpush1.bf16.msra.mxu0 0
    %3277 = vmatprep.subr.bf16.mxu0 0
    %3278 = vmatpush1.bf16.msra.mxu0 0
    %3279 = vmatprep.subr.bf16.mxu0 0
    %3280 = vmatpush1.bf16.msra.mxu0 0
    %3281 = vmatprep.subr.bf16.mxu0 0
    %3282 = vmatpush1.bf16.msra.mxu0 0
    %3283 = vmatprep.subr.bf16.mxu0 0
    %3284 = vmatpush1.bf16.msra.mxu0 0
    %3285 = vmatprep.mubr.bf16.mxu0 0
    %3286 = vmatmul.mubr.bf16.gmra.mrb[0].mxu0 %v3251
    %v3287 = vpop.f32.mrb[0].mxu0
    %v3288 = vadd.f32 0.0, %v3287
    %v3289 = vpop.f32.mrb[0].mxu0
    %v3290 = vadd.f32 0.0, %v3289
    %v3291 = vpop.f32.mrb[0].mxu0
    %v3292 = vpop.f32.mrb[0].mxu0
    %3293 = vdwg.mxu0
    %v3296 = vcombine.low %v3288, %v3290
    %v3298 = vunpack.c.l.s4 1983009808
    %v3299 = vunpack.c.0.s8 %v3298
    %v3300 = vlaneseq
    %v3301 = vshrl.u32 %v3300, 7
    %v3302 = vsub.s32 %v3299, %v3301
    %v3303 = vrot.slane %v3296, %v3302
    %v3305 = vadd.f32 %v2925, %v3303
    %v3306 = vxor.u32 %v3305, 2147483648
    %v3307 = vmul.f32 %v3306, 1.442695
    %v3308 = vpow.pop %v3307
    %v3309 = vadd.f32 %v3308, 1.0
    %v3310 = vrcp.pop %v3309
    %v3311 = vmul.f32 1.0, %v3310
    %3313 = vrot.lane.b32.xlu0 %v3305, 64
    %v3314 = vpop.permute.xlu0 %3313
    %v3315 = vrot.slane %v3314, 2
    %v3317 = vtanh.pop %v3315
    %v3318 = vmul.f32 %v3311, %v3238
    %v3319 = vmul.f32 %v3311, %v3317
    %3321 = vrot.lane.b32.xlu0 %v3319, 64
    %v3322 = vpop.permute.xlu0 %3321
    %v3324 = vadd.f32 %v3318, %v3322
    %v3325 = vtanh.pop %v3324
    %v3327 = vrot.slane %v3311, 2
    %3330 = vrot.lane.b32.xlu0 %v3325, 64
    %v3331 = vpop.permute.xlu0 %3330
    %v3333 = vmul.f32 %v3327, %v3331
    %3334 = vst.msk [vmem:[%s2716] sm:$0x3] %vm2700, %v3333
    %v3335 = vpack.c.bf16 %v3333, %v3333
    %v3337 = vsel %vm2567, %v3335, 0
    %3339 = vmatprep.subr.bf16.mxu0 %v2977
    %3340 = vmatpush1.bf16.msra.mxu0 %v2976
    %3341 = vmatprep.subr.bf16.mxu0 %v2979
    %3342 = vmatpush1.bf16.msra.mxu0 %v2978
    %3343 = vmatprep.subr.bf16.mxu0 %v2981
    %3344 = vmatpush1.bf16.msra.mxu0 %v2980
    %3345 = vmatprep.subr.bf16.mxu0 %v2983
    %3346 = vmatpush1.bf16.msra.mxu0 %v2982
    %3347 = vmatprep.subr.bf16.mxu0 0
    %3348 = vmatpush1.bf16.msra.mxu0 0
    %3349 = vmatprep.subr.bf16.mxu0 0
    %3350 = vmatpush1.bf16.msra.mxu0 0
    %3351 = vmatprep.subr.bf16.mxu0 0
    %3352 = vmatpush1.bf16.msra.mxu0 0
    %3353 = vmatprep.subr.bf16.mxu0 0
    %3354 = vmatpush1.bf16.msra.mxu0 0
    %3355 = vmatprep.subr.bf16.mxu0 0
    %3356 = vmatpush1.bf16.msra.mxu0 0
    %3357 = vmatprep.subr.bf16.mxu0 0
    %3358 = vmatpush1.bf16.msra.mxu0 0
    %3359 = vmatprep.subr.bf16.mxu0 0
    %3360 = vmatpush1.bf16.msra.mxu0 0
    %3361 = vmatprep.subr.bf16.mxu0 0
    %3362 = vmatpush1.bf16.msra.mxu0 0
    %3363 = vmatprep.subr.bf16.mxu0 0
    %3364 = vmatpush1.bf16.msra.mxu0 0
    %3365 = vmatprep.subr.bf16.mxu0 0
    %3366 = vmatpush1.bf16.msra.mxu0 0
    %3367 = vmatprep.subr.bf16.mxu0 0
    %3368 = vmatpush1.bf16.msra.mxu0 0
    %3369 = vmatprep.subr.bf16.mxu0 0
    %3370 = vmatpush1.bf16.msra.mxu0 0
    %3371 = vmatprep.mubr.bf16.mxu0 0
    %3372 = vmatmul.mubr.bf16.gmra.mrb[0].mxu0 %v3337
    %v3373 = vpop.f32.mrb[0].mxu0
    %v3374 = vadd.f32 0.0, %v3373
    %v3375 = vpop.f32.mrb[0].mxu0
    %v3376 = vadd.f32 0.0, %v3375
    %v3377 = vpop.f32.mrb[0].mxu0
    %v3378 = vpop.f32.mrb[0].mxu0
    %3379 = vdwg.mxu0
    %v3382 = vcombine.low %v3374, %v3376
    %v3384 = vunpack.c.l.s4 1983009808
    %v3385 = vunpack.c.0.s8 %v3384
    %v3386 = vlaneseq
    %v3387 = vshrl.u32 %v3386, 7
    %v3388 = vsub.s32 %v3385, %v3387
    %v3389 = vrot.slane %v3382, %v3388
    %v3391 = vadd.f32 %v2934, %v3389
    %v3392 = vxor.u32 %v3391, 2147483648
    %v3393 = vmul.f32 %v3392, 1.442695
    %v3394 = vpow.pop %v3393
    %v3395 = vadd.f32 %v3394, 1.0
    %v3396 = vrcp.pop %v3395
    %v3397 = vmul.f32 1.0, %v3396
    %3399 = vrot.lane.b32.xlu0 %v3391, 64
    %v3400 = vpop.permute.xlu0 %3399
    %v3401 = vrot.slane %v3400, 2
    %v3403 = vtanh.pop %v3401
    %v3404 = vmul.f32 %v3397, %v3324
    %v3405 = vmul.f32 %v3397, %v3403
    %3407 = vrot.lane.b32.xlu0 %v3405, 64
    %v3408 = vpop.permute.xlu0 %3407
    %v3410 = vadd.f32 %v3404, %v3408
    %v3411 = vtanh.pop %v3410
    %v3413 = vrot.slane %v3397, 2
    %3416 = vrot.lane.b32.xlu0 %v3411, 64
    %v3417 = vpop.permute.xlu0 %3416
    %v3419 = vmul.f32 %v3413, %v3417
    %3420 = vst.msk [vmem:[%s2722] sm:$0x3] %vm2700, %v3419
    %v3421 = vpack.c.bf16 %v3419, %v3419
    %v3423 = vsel %vm2567, %v3421, 0
    %3425 = vmatprep.subr.bf16.mxu0 %v2977
    %3426 = vmatpush1.bf16.msra.mxu0 %v2976
    %3427 = vmatprep.subr.bf16.mxu0 %v2979
    %3428 = vmatpush1.bf16.msra.mxu0 %v2978
    %3429 = vmatprep.subr.bf16.mxu0 %v2981
    %3430 = vmatpush1.bf16.msra.mxu0 %v2980
    %3431 = vmatprep.subr.bf16.mxu0 %v2983
    %3432 = vmatpush1.bf16.msra.mxu0 %v2982
    %3433 = vmatprep.subr.bf16.mxu0 0
    %3434 = vmatpush1.bf16.msra.mxu0 0
    %3435 = vmatprep.subr.bf16.mxu0 0
    %3436 = vmatpush1.bf16.msra.mxu0 0
    %3437 = vmatprep.subr.bf16.mxu0 0
    %3438 = vmatpush1.bf16.msra.mxu0 0
    %3439 = vmatprep.subr.bf16.mxu0 0
    %3440 = vmatpush1.bf16.msra.mxu0 0
    %3441 = vmatprep.subr.bf16.mxu0 0
    %3442 = vmatpush1.bf16.msra.mxu0 0
    %3443 = vmatprep.subr.bf16.mxu0 0
    %3444 = vmatpush1.bf16.msra.mxu0 0
    %3445 = vmatprep.subr.bf16.mxu0 0
    %3446 = vmatpush1.bf16.msra.mxu0 0
    %3447 = vmatprep.subr.bf16.mxu0 0
    %3448 = vmatpush1.bf16.msra.mxu0 0
    %3449 = vmatprep.subr.bf16.mxu0 0
    %3450 = vmatpush1.bf16.msra.mxu0 0
    %3451 = vmatprep.subr.bf16.mxu0 0
    %3452 = vmatpush1.bf16.msra.mxu0 0
    %3453 = vmatprep.subr.bf16.mxu0 0
    %3454 = vmatpush1.bf16.msra.mxu0 0
    %3455 = vmatprep.subr.bf16.mxu0 0
    %3456 = vmatpush1.bf16.msra.mxu0 0
    %3457 = vmatprep.mubr.bf16.mxu0 0
    %3458 = vmatmul.mubr.bf16.gmra.mrb[0].mxu0 %v3423
    %v3459 = vpop.f32.mrb[0].mxu0
    %v3460 = vadd.f32 0.0, %v3459
    %v3461 = vpop.f32.mrb[0].mxu0
    %v3462 = vadd.f32 0.0, %v3461
    %v3463 = vpop.f32.mrb[0].mxu0
    %v3464 = vpop.f32.mrb[0].mxu0
    %3465 = vdwg.mxu0
    %v3468 = vcombine.low %v3460, %v3462
    %v3470 = vunpack.c.l.s4 1983009808
    %v3471 = vunpack.c.0.s8 %v3470
    %v3472 = vlaneseq
    %v3473 = vshrl.u32 %v3472, 7
    %v3474 = vsub.s32 %v3471, %v3473
    %v3475 = vrot.slane %v3468, %v3474
    %v3477 = vadd.f32 %v2942, %v3475
    %v3478 = vxor.u32 %v3477, 2147483648
    %v3479 = vmul.f32 %v3478, 1.442695
    %v3480 = vpow.pop %v3479
    %v3481 = vadd.f32 %v3480, 1.0
    %v3482 = vrcp.pop %v3481
    %v3483 = vmul.f32 1.0, %v3482
    %3485 = vrot.lane.b32.xlu0 %v3477, 64
    %v3486 = vpop.permute.xlu0 %3485
    %v3487 = vrot.slane %v3486, 2
    %v3489 = vtanh.pop %v3487
    %v3490 = vmul.f32 %v3483, %v3410
    %v3491 = vmul.f32 %v3483, %v3489
    %3493 = vrot.lane.b32.xlu0 %v3491, 64
    %v3494 = vpop.permute.xlu0 %3493
    %v3496 = vadd.f32 %v3490, %v3494
    %v3497 = vtanh.pop %v3496
    %v3499 = vrot.slane %v3483, 2
    %3502 = vrot.lane.b32.xlu0 %v3497, 64
    %v3503 = vpop.permute.xlu0 %3502
    %v3505 = vmul.f32 %v3499, %v3503
    %3506 = vst.msk [vmem:[%s2728] sm:$0x3] %vm2700, %v3505
    %v3507 = vpack.c.bf16 %v3505, %v3505
    %v3509 = vsel %vm2567, %v3507, 0
    %3511 = vmatprep.subr.bf16.mxu0 %v2977
    %3512 = vmatpush1.bf16.msra.mxu0 %v2976
    %3513 = vmatprep.subr.bf16.mxu0 %v2979
    %3514 = vmatpush1.bf16.msra.mxu0 %v2978
    %3515 = vmatprep.subr.bf16.mxu0 %v2981
    %3516 = vmatpush1.bf16.msra.mxu0 %v2980
    %3517 = vmatprep.subr.bf16.mxu0 %v2983
    %3518 = vmatpush1.bf16.msra.mxu0 %v2982
    %3519 = vmatprep.subr.bf16.mxu0 0
    %3520 = vmatpush1.bf16.msra.mxu0 0
    %3521 = vmatprep.subr.bf16.mxu0 0
    %3522 = vmatpush1.bf16.msra.mxu0 0
    %3523 = vmatprep.subr.bf16.mxu0 0
    %3524 = vmatpush1.bf16.msra.mxu0 0
    %3525 = vmatprep.subr.bf16.mxu0 0
    %3526 = vmatpush1.bf16.msra.mxu0 0
    %3527 = vmatprep.subr.bf16.mxu0 0
    %3528 = vmatpush1.bf16.msra.mxu0 0
    %3529 = vmatprep.subr.bf16.mxu0 0
    %3530 = vmatpush1.bf16.msra.mxu0 0
    %3531 = vmatprep.subr.bf16.mxu0 0
    %3532 = vmatpush1.bf16.msra.mxu0 0
    %3533 = vmatprep.subr.bf16.mxu0 0
    %3534 = vmatpush1.bf16.msra.mxu0 0
    %3535 = vmatprep.subr.bf16.mxu0 0
    %3536 = vmatpush1.bf16.msra.mxu0 0
    %3537 = vmatprep.subr.bf16.mxu0 0
    %3538 = vmatpush1.bf16.msra.mxu0 0
    %3539 = vmatprep.subr.bf16.mxu0 0
    %3540 = vmatpush1.bf16.msra.mxu0 0
    %3541 = vmatprep.subr.bf16.mxu0 0
    %3542 = vmatpush1.bf16.msra.mxu0 0
    %3543 = vmatprep.mubr.bf16.mxu0 0
    %3544 = vmatmul.mubr.bf16.gmra.mrb[0].mxu0 %v3509
    %v3545 = vpop.f32.mrb[0].mxu0
    %v3546 = vadd.f32 0.0, %v3545
    %v3547 = vpop.f32.mrb[0].mxu0
    %v3548 = vadd.f32 0.0, %v3547
    %v3549 = vpop.f32.mrb[0].mxu0
    %v3550 = vpop.f32.mrb[0].mxu0
    %3551 = vdwg.mxu0
    %v3554 = vcombine.low %v3546, %v3548
    %v3556 = vunpack.c.l.s4 1983009808
    %v3557 = vunpack.c.0.s8 %v3556
    %v3558 = vlaneseq
    %v3559 = vshrl.u32 %v3558, 7
    %v3560 = vsub.s32 %v3557, %v3559
    %v3561 = vrot.slane %v3554, %v3560
    %v3563 = vadd.f32 %v2941, %v3561
    %v3564 = vxor.u32 %v3563, 2147483648
    %v3565 = vmul.f32 %v3564, 1.442695
    %v3566 = vpow.pop %v3565
    %v3567 = vadd.f32 %v3566, 1.0
    %v3568 = vrcp.pop %v3567
    %v3569 = vmul.f32 1.0, %v3568
    %3571 = vrot.lane.b32.xlu0 %v3563, 64
    %v3572 = vpop.permute.xlu0 %3571
    %v3573 = vrot.slane %v3572, 2
    %v3575 = vtanh.pop %v3573
    %v3576 = vmul.f32 %v3569, %v3496
    %v3577 = vmul.f32 %v3569, %v3575
    %3579 = vrot.lane.b32.xlu0 %v3577, 64
    %v3580 = vpop.permute.xlu0 %3579
    %v3582 = vadd.f32 %v3576, %v3580
    %v3583 = vtanh.pop %v3582
    %v3585 = vrot.slane %v3569, 2
    %3588 = vrot.lane.b32.xlu0 %v3583, 64
    %v3589 = vpop.permute.xlu0 %3588
    %v3591 = vmul.f32 %v3585, %v3589
    %3592 = vst.msk [vmem:[%s2734] sm:$0x3] %vm2700, %v3591
    %v3593 = vpack.c.bf16 %v3591, %v3591
    %v3595 = vsel %vm2567, %v3593, 0
    %3597 = vmatprep.subr.bf16.mxu0 %v2977
    %3598 = vmatpush1.bf16.msra.mxu0 %v2976
    %3599 = vmatprep.subr.bf16.mxu0 %v2979
    %3600 = vmatpush1.bf16.msra.mxu0 %v2978
    %3601 = vmatprep.subr.bf16.mxu0 %v2981
    %3602 = vmatpush1.bf16.msra.mxu0 %v2980
    %3603 = vmatprep.subr.bf16.mxu0 %v2983
    %3604 = vmatpush1.bf16.msra.mxu0 %v2982
    %3605 = vmatprep.subr.bf16.mxu0 0
    %3606 = vmatpush1.bf16.msra.mxu0 0
    %3607 = vmatprep.subr.bf16.mxu0 0
    %3608 = vmatpush1.bf16.msra.mxu0 0
    %3609 = vmatprep.subr.bf16.mxu0 0
    %3610 = vmatpush1.bf16.msra.mxu0 0
    %3611 = vmatprep.subr.bf16.mxu0 0
    %3612 = vmatpush1.bf16.msra.mxu0 0
    %3613 = vmatprep.subr.bf16.mxu0 0
    %3614 = vmatpush1.bf16.msra.mxu0 0
    %3615 = vmatprep.subr.bf16.mxu0 0
    %3616 = vmatpush1.bf16.msra.mxu0 0
    %3617 = vmatprep.subr.bf16.mxu0 0
    %3618 = vmatpush1.bf16.msra.mxu0 0
    %3619 = vmatprep.subr.bf16.mxu0 0
    %3620 = vmatpush1.bf16.msra.mxu0 0
    %3621 = vmatprep.subr.bf16.mxu0 0
    %3622 = vmatpush1.bf16.msra.mxu0 0
    %3623 = vmatprep.subr.bf16.mxu0 0
    %3624 = vmatpush1.bf16.msra.mxu0 0
    %3625 = vmatprep.subr.bf16.mxu0 0
    %3626 = vmatpush1.bf16.msra.mxu0 0
    %3627 = vmatprep.subr.bf16.mxu0 0
    %3628 = vmatpush1.bf16.msra.mxu0 0
    %3629 = vmatprep.mubr.bf16.mxu0 0
    %3630 = vmatmul.mubr.bf16.gmra.mrb[0].mxu0 %v3595
    %v3631 = vpop.f32.mrb[0].mxu0
    %v3632 = vadd.f32 0.0, %v3631
    %v3633 = vpop.f32.mrb[0].mxu0
    %v3634 = vadd.f32 0.0, %v3633
    %v3635 = vpop.f32.mrb[0].mxu0
    %v3636 = vpop.f32.mrb[0].mxu0
    %3637 = vdwg.mxu0
    %v3640 = vcombine.low %v3632, %v3634
    %v3642 = vunpack.c.l.s4 1983009808
    %v3643 = vunpack.c.0.s8 %v3642
    %v3644 = vlaneseq
    %v3645 = vshrl.u32 %v3644, 7
    %v3646 = vsub.s32 %v3643, %v3645
    %v3647 = vrot.slane %v3640, %v3646
    %v3649 = vadd.f32 %v2943, %v3647
    %v3650 = vxor.u32 %v3649, 2147483648
    %v3651 = vmul.f32 %v3650, 1.442695
    %v3652 = vpow.pop %v3651
    %v3653 = vadd.f32 %v3652, 1.0
    %v3654 = vrcp.pop %v3653
    %v3655 = vmul.f32 1.0, %v3654
    %3657 = vrot.lane.b32.xlu0 %v3649, 64
    %v3658 = vpop.permute.xlu0 %3657
    %v3659 = vrot.slane %v3658, 2
    %v3661 = vtanh.pop %v3659
    %v3662 = vmul.f32 %v3655, %v3582
    %v3663 = vmul.f32 %v3655, %v3661
    %3665 = vrot.lane.b32.xlu0 %v3663, 64
    %v3666 = vpop.permute.xlu0 %3665
    %v3668 = vadd.f32 %v3662, %v3666
    %v3669 = vtanh.pop %v3668
    %v3671 = vrot.slane %v3655, 2
    %3674 = vrot.lane.b32.xlu0 %v3669, 64
    %v3675 = vpop.permute.xlu0 %3674
    %v3677 = vmul.f32 %v3671, %v3675
    %3678 = vst.msk [vmem:[%s2739] sm:$0x3] %vm2700, %v3677
    %v3679 = vld [vmem:[#allocation2] sm:$0x3]
    %v3680 = vld [vmem:[#allocation2 + $0x2] sm:$0x3]
    %v3681 = vld [vmem:[#allocation2 + $0x4] sm:$0x3]
    %v3682 = vld [vmem:[#allocation2 + $0x6] sm:$0x3]
    %v3683 = vld [vmem:[#allocation2 + $0x8] sm:$0x3]
    %v3684 = vld [vmem:[#allocation2 + $0xa] sm:$0x3]
    %v3685 = vld [vmem:[#allocation2 + $0xc] sm:$0x3]
    %v3686 = vld [vmem:[#allocation2 + $0xe] sm:$0x3]
    %v3695 = vcombine.low %v3679, %v3680
    %v3696 = vcombine.low %v3681, %v3682
    %v3698 = vunpack.c.l.s4 1983009808
    %v3699 = vunpack.c.0.s8 %v3698
    %v3700 = vlaneseq
    %v3701 = vshrl.u32 %v3700, 7
    %v3702 = vsub.s32 %v3699, %v3701
    %v3703 = vrot.slane %v3695, %v3702
    %v3705 = vunpack.c.l.s4 1983009808
    %v3706 = vunpack.c.0.s8 %v3705
    %v3707 = vlaneseq
    %v3708 = vshrl.u32 %v3707, 7
    %v3709 = vsub.s32 %v3706, %v3708
    %v3710 = vrot.slane %v3696, %v3709
    %v3711 = vcombine.low %v3703, %v3710
    %v3712 = vcombine.low %v3683, %v3684
    %v3713 = vcombine.low %v3685, %v3686
    %v3715 = vunpack.c.l.s4 1983009808
    %v3716 = vunpack.c.0.s8 %v3715
    %v3717 = vlaneseq
    %v3718 = vshrl.u32 %v3717, 7
    %v3719 = vsub.s32 %v3716, %v3718
    %v3720 = vrot.slane %v3712, %v3719
    %v3722 = vunpack.c.l.s4 1983009808
    %v3723 = vunpack.c.0.s8 %v3722
    %v3724 = vlaneseq
    %v3725 = vshrl.u32 %v3724, 7
    %v3726 = vsub.s32 %v3723, %v3725
    %v3727 = vrot.slane %v3713, %v3726
    %v3728 = vcombine.low %v3720, %v3727
    %v3731 = vpack.c.bf16 %v3728, %v3711
    %v3732 = vld [vmem:[%s1 + $0x5b8] sm:$0xff]
    %v3733 = vld [vmem:[%s1 + $0x5c4] sm:$0xff]
    %v3734 = vld [vmem:[%s1 + $0x5d0] sm:$0xff]
    %v3735 = vld [vmem:[%s1 + $0x5dc] sm:$0xff]
    %v3736 = vld [vmem:[%s1 + $0x5e8] sm:$0xff]
    %v3737 = vld [vmem:[%s1 + $0x5f4] sm:$0xff]
    %v3738 = vld [vmem:[%s1 + $0x600] sm:$0xff]
    %v3739 = vld [vmem:[%s1 + $0x60c] sm:$0xff]
    %s3740 = scalar_lea.vmem %s2, 504
    %v3741 = vld [vmem:[%s3740] ss:$8 sm:$0x3]
    %v3743 = vlaneseq
    %v3744 = vshrl.u32 %v3743, 7
    %v3745 = vsub.s32 0, %v3744
    %v3746 = vrot.slane %v3741, %v3745
    %v3747 = vlaneseq
    %v3748 = vshrl.u32 %v3747, 7
    %v3749 = vsub.s32 1, %v3748
    %v3750 = vrot.slane %v3741, %v3749
    %v3761 = vunpack.c.l.b16 %v3732
    %v3762 = vunpack.c.h.b16 %v3732
    %v3763 = vunpack.c.l.b16 %v3733
    %v3764 = vunpack.c.h.b16 %v3733
    %v3765 = vunpack.c.l.b16 %v3734
    %v3766 = vunpack.c.h.b16 %v3734
    %v3767 = vunpack.c.l.b16 %v3735
    %v3768 = vunpack.c.h.b16 %v3735
    %v3769 = vunpack.c.l.b16 %v3736
    %v3770 = vunpack.c.h.b16 %v3736
    %v3771 = vunpack.c.l.b16 %v3737
    %v3772 = vunpack.c.h.b16 %v3737
    %v3773 = vunpack.c.l.b16 %v3738
    %v3774 = vunpack.c.h.b16 %v3738
    %v3775 = vunpack.c.l.b16 %v3739
    %v3776 = vunpack.c.h.b16 %v3739
    %v3777 = vpack.c.b16 %v3763, %v3761
    %v3778 = vpack.c.b16 %v3764, %v3762
    %v3779 = vpack.c.b16 %v3767, %v3765
    %v3780 = vpack.c.b16 %v3768, %v3766
    %v3781 = vpack.c.b16 %v3771, %v3769
    %v3782 = vpack.c.b16 %v3772, %v3770
    %v3783 = vpack.c.b16 %v3775, %v3773
    %v3784 = vpack.c.b16 %v3776, %v3774
    %v3794 = vsel %vm2567, %v3731, 0
    %3796 = vmatprep.subr.bf16.mxu0 %v3778
    %3797 = vmatpush1.bf16.msra.mxu0 %v3777
    %3798 = vmatprep.subr.bf16.mxu0 %v3780
    %3799 = vmatpush1.bf16.msra.mxu0 %v3779
    %3800 = vmatprep.subr.bf16.mxu0 %v3782
    %3801 = vmatpush1.bf16.msra.mxu0 %v3781
    %3802 = vmatprep.subr.bf16.mxu0 %v3784
    %3803 = vmatpush1.bf16.msra.mxu0 %v3783
    %3804 = vmatprep.subr.bf16.mxu0 0
    %3805 = vmatpush1.bf16.msra.mxu0 0
    %3806 = vmatprep.subr.bf16.mxu0 0
    %3807 = vmatpush1.bf16.msra.mxu0 0
    %3808 = vmatprep.subr.bf16.mxu0 0
    %3809 = vmatpush1.bf16.msra.mxu0 0
    %3810 = vmatprep.subr.bf16.mxu0 0
    %3811 = vmatpush1.bf16.msra.mxu0 0
    %3812 = vmatprep.subr.bf16.mxu0 0
    %3813 = vmatpush1.bf16.msra.mxu0 0
    %3814 = vmatprep.subr.bf16.mxu0 0
    %3815 = vmatpush1.bf16.msra.mxu0 0
    %3816 = vmatprep.subr.bf16.mxu0 0
    %3817 = vmatpush1.bf16.msra.mxu0 0
    %3818 = vmatprep.subr.bf16.mxu0 0
    %3819 = vmatpush1.bf16.msra.mxu0 0
    %3820 = vmatprep.subr.bf16.mxu0 0
    %3821 = vmatpush1.bf16.msra.mxu0 0
    %3822 = vmatprep.subr.bf16.mxu0 0
    %3823 = vmatpush1.bf16.msra.mxu0 0
    %3824 = vmatprep.subr.bf16.mxu0 0
    %3825 = vmatpush1.bf16.msra.mxu0 0
    %3826 = vmatprep.subr.bf16.mxu0 0
    %3827 = vmatpush1.bf16.msra.mxu0 0
    %3828 = vmatprep.mubr.bf16.mxu0 0
    %3829 = vmatmul.mubr.bf16.gmra.mrb[0].mxu0 %v3794
    %v3830 = vpop.f32.mrb[0].mxu0
    %v3831 = vadd.f32 %v3746, %v3830
    %v3832 = vpop.f32.mrb[0].mxu0
    %v3833 = vadd.f32 %v3750, %v3832
    %v3834 = vpop.f32.mrb[0].mxu0
    %v3835 = vadd.f32 %v3746, %v3834
    %v3836 = vpop.f32.mrb[0].mxu0
    %v3837 = vadd.f32 %v3750, %v3836
    %3838 = vdwg.mxu0
    %v3843 = vcombine.low %v3831, %v3833
    %v3844 = vcombine.high %v3831, %v3833
    %v3846 = vunpack.c.l.s4 1983009808
    %v3847 = vunpack.c.0.s8 %v3846
    %v3848 = vlaneseq
    %v3849 = vshrl.u32 %v3848, 7
    %v3850 = vsub.s32 %v3847, %v3849
    %v3851 = vrot.slane %v3843, %v3850
    %v3853 = vunpack.c.l.s4 1983009808
    %v3854 = vunpack.c.0.s8 %v3853
    %v3855 = vlaneseq
    %v3856 = vshrl.u32 %v3855, 7
    %v3857 = vsub.s32 %v3854, %v3856
    %v3858 = vrot.slane %v3844, %v3857
    %v3859 = vcombine.high %v3851, %v3851
    %v3860 = vcombine.high %v3858, %v3858
    %v3861 = vcombine.low %v3835, %v3837
    %v3862 = vcombine.high %v3835, %v3837
    %v3864 = vunpack.c.l.s4 1983009808
    %v3865 = vunpack.c.0.s8 %v3864
    %v3866 = vlaneseq
    %v3867 = vshrl.u32 %v3866, 7
    %v3868 = vsub.s32 %v3865, %v3867
    %v3869 = vrot.slane %v3861, %v3868
    %v3871 = vunpack.c.l.s4 1983009808
    %v3872 = vunpack.c.0.s8 %v3871
    %v3873 = vlaneseq
    %v3874 = vshrl.u32 %v3873, 7
    %v3875 = vsub.s32 %v3872, %v3874
    %v3876 = vrot.slane %v3862, %v3875
    %v3877 = vcombine.high %v3869, %v3869
    %v3878 = vcombine.high %v3876, %v3876
    %v3895 = vunpack.c.l.b16 %v2686
    %v3896 = vunpack.c.h.b16 %v2686
    %v3897 = vunpack.c.l.b16 %v2687
    %v3898 = vunpack.c.h.b16 %v2687
    %v3899 = vunpack.c.l.b16 %v2688
    %v3900 = vunpack.c.h.b16 %v2688
    %v3901 = vunpack.c.l.b16 %v2689
    %v3902 = vunpack.c.h.b16 %v2689
    %v3903 = vunpack.c.l.b16 %v2690
    %v3904 = vunpack.c.h.b16 %v2690
    %v3905 = vunpack.c.l.b16 %v2691
    %v3906 = vunpack.c.h.b16 %v2691
    %v3907 = vunpack.c.l.b16 %v2692
    %v3908 = vunpack.c.h.b16 %v2692
    %v3909 = vunpack.c.l.b16 %v2693
    %v3910 = vunpack.c.h.b16 %v2693
    %v3911 = vpack.c.b16 %v3897, %v3895
    %v3912 = vpack.c.b16 %v3898, %v3896
    %v3913 = vpack.c.b16 %v3901, %v3899
    %v3914 = vpack.c.b16 %v3902, %v3900
    %v3915 = vpack.c.b16 %v3905, %v3903
    %v3916 = vpack.c.b16 %v3906, %v3904
    %v3917 = vpack.c.b16 %v3909, %v3907
    %v3918 = vpack.c.b16 %v3910, %v3908
    %3927 = vmatprep.subr.bf16.mxu0 %v3912
    %3928 = vmatpush1.bf16.msra.mxu0 %v3911
    %3929 = vmatprep.subr.bf16.mxu0 %v3914
    %3930 = vmatpush1.bf16.msra.mxu0 %v3913
    %3931 = vmatprep.subr.bf16.mxu0 %v3916
    %3932 = vmatpush1.bf16.msra.mxu0 %v3915
    %3933 = vmatprep.subr.bf16.mxu0 %v3918
    %3934 = vmatpush1.bf16.msra.mxu0 %v3917
    %3935 = vmatprep.subr.bf16.mxu0 0
    %3936 = vmatpush1.bf16.msra.mxu0 0
    %3937 = vmatprep.subr.bf16.mxu0 0
    %3938 = vmatpush1.bf16.msra.mxu0 0
    %3939 = vmatprep.subr.bf16.mxu0 0
    %3940 = vmatpush1.bf16.msra.mxu0 0
    %3941 = vmatprep.subr.bf16.mxu0 0
    %3942 = vmatpush1.bf16.msra.mxu0 0
    %3943 = vmatprep.subr.bf16.mxu0 0
    %3944 = vmatpush1.bf16.msra.mxu0 0
    %3945 = vmatprep.subr.bf16.mxu0 0
    %3946 = vmatpush1.bf16.msra.mxu0 0
    %3947 = vmatprep.subr.bf16.mxu0 0
    %3948 = vmatpush1.bf16.msra.mxu0 0
    %3949 = vmatprep.subr.bf16.mxu0 0
    %3950 = vmatpush1.bf16.msra.mxu0 0
    %3951 = vmatprep.subr.bf16.mxu0 0
    %3952 = vmatpush1.bf16.msra.mxu0 0
    %3953 = vmatprep.subr.bf16.mxu0 0
    %3954 = vmatpush1.bf16.msra.mxu0 0
    %3955 = vmatprep.subr.bf16.mxu0 0
    %3956 = vmatpush1.bf16.msra.mxu0 0
    %3957 = vmatprep.subr.bf16.mxu0 0
    %3958 = vmatpush1.bf16.msra.mxu0 0
    %3959 = vmatprep.mubr.bf16.mxu0 0
    %3960 = vmatmul.mubr.bf16.gmra.mrb[0].mxu0 %v2993
    %v3961 = vpop.f32.mrb[0].mxu0
    %v3962 = vadd.f32 0.0, %v3961
    %v3963 = vpop.f32.mrb[0].mxu0
    %v3964 = vadd.f32 0.0, %v3963
    %v3965 = vpop.f32.mrb[0].mxu0
    %v3966 = vpop.f32.mrb[0].mxu0
    %3967 = vdwg.mxu0
    %v3970 = vcombine.low %v3962, %v3964
    %v3972 = vunpack.c.l.s4 1983009808
    %v3973 = vunpack.c.0.s8 %v3972
    %v3974 = vlaneseq
    %v3975 = vshrl.u32 %v3974, 7
    %v3976 = vsub.s32 %v3973, %v3975
    %v3977 = vrot.slane %v3970, %v3976
    %v3979 = vadd.f32 %v3851, %v3977
    %v3980 = vxor.u32 %v3979, 2147483648
    %v3981 = vmul.f32 %v3980, 1.442695
    %v3982 = vpow.pop %v3981
    %v3983 = vadd.f32 %v3982, 1.0
    %v3984 = vrcp.pop %v3983
    %v3985 = vmul.f32 1.0, %v3984
    %3987 = vrot.lane.b32.xlu0 %v3979, 64
    %v3988 = vpop.permute.xlu0 %3987
    %v3989 = vrot.slane %v3988, 2
    %v3991 = vtanh.pop %v3989
    %v3992 = vmul.f32 %v3985, 0.0
    %v3993 = vmul.f32 %v3985, %v3991
    %3995 = vrot.lane.b32.xlu0 %v3993, 64
    %v3996 = vpop.permute.xlu0 %3995
    %v3998 = vadd.f32 %v3992, %v3996
    %v3999 = vtanh.pop %v3998
    %v4001 = vrot.slane %v3985, 2
    %4004 = vrot.lane.b32.xlu0 %v3999, 64
    %v4005 = vpop.permute.xlu0 %4004
    %v4007 = vmul.f32 %v4001, %v4005
    %4008 = vst.msk [vmem:[#allocation2] sm:$0x3] %vm2700, %v4007
    %v4009 = vpack.c.bf16 %v4007, %v4007
    %v4011 = vsel %vm2567, %v4009, 0
    %4013 = vmatprep.subr.bf16.mxu0 %v3912
    %4014 = vmatpush1.bf16.msra.mxu0 %v3911
    %4015 = vmatprep.subr.bf16.mxu0 %v3914
    %4016 = vmatpush1.bf16.msra.mxu0 %v3913
    %4017 = vmatprep.subr.bf16.mxu0 %v3916
    %4018 = vmatpush1.bf16.msra.mxu0 %v3915
    %4019 = vmatprep.subr.bf16.mxu0 %v3918
    %4020 = vmatpush1.bf16.msra.mxu0 %v3917
    %4021 = vmatprep.subr.bf16.mxu0 0
    %4022 = vmatpush1.bf16.msra.mxu0 0
    %4023 = vmatprep.subr.bf16.mxu0 0
    %4024 = vmatpush1.bf16.msra.mxu0 0
    %4025 = vmatprep.subr.bf16.mxu0 0
    %4026 = vmatpush1.bf16.msra.mxu0 0
    %4027 = vmatprep.subr.bf16.mxu0 0
    %4028 = vmatpush1.bf16.msra.mxu0 0
    %4029 = vmatprep.subr.bf16.mxu0 0
    %4030 = vmatpush1.bf16.msra.mxu0 0
    %4031 = vmatprep.subr.bf16.mxu0 0
    %4032 = vmatpush1.bf16.msra.mxu0 0
    %4033 = vmatprep.subr.bf16.mxu0 0
    %4034 = vmatpush1.bf16.msra.mxu0 0
    %4035 = vmatprep.subr.bf16.mxu0 0
    %4036 = vmatpush1.bf16.msra.mxu0 0
    %4037 = vmatprep.subr.bf16.mxu0 0
    %4038 = vmatpush1.bf16.msra.mxu0 0
    %4039 = vmatprep.subr.bf16.mxu0 0
    %4040 = vmatpush1.bf16.msra.mxu0 0
    %4041 = vmatprep.subr.bf16.mxu0 0
    %4042 = vmatpush1.bf16.msra.mxu0 0
    %4043 = vmatprep.subr.bf16.mxu0 0
    %4044 = vmatpush1.bf16.msra.mxu0 0
    %4045 = vmatprep.mubr.bf16.mxu0 0
    %4046 = vmatmul.mubr.bf16.gmra.mrb[0].mxu0 %v4011
    %v4047 = vpop.f32.mrb[0].mxu0
    %v4048 = vadd.f32 0.0, %v4047
    %v4049 = vpop.f32.mrb[0].mxu0
    %v4050 = vadd.f32 0.0, %v4049
    %v4051 = vpop.f32.mrb[0].mxu0
    %v4052 = vpop.f32.mrb[0].mxu0
    %4053 = vdwg.mxu0
    %v4056 = vcombine.low %v4048, %v4050
    %v4058 = vunpack.c.l.s4 1983009808
    %v4059 = vunpack.c.0.s8 %v4058
    %v4060 = vlaneseq
    %v4061 = vshrl.u32 %v4060, 7
    %v4062 = vsub.s32 %v4059, %v4061
    %v4063 = vrot.slane %v4056, %v4062
    %v4065 = vadd.f32 %v3859, %v4063
    %v4066 = vxor.u32 %v4065, 2147483648
    %v4067 = vmul.f32 %v4066, 1.442695
    %v4068 = vpow.pop %v4067
    %v4069 = vadd.f32 %v4068, 1.0
    %v4070 = vrcp.pop %v4069
    %v4071 = vmul.f32 1.0, %v4070
    %4073 = vrot.lane.b32.xlu0 %v4065, 64
    %v4074 = vpop.permute.xlu0 %4073
    %v4075 = vrot.slane %v4074, 2
    %v4077 = vtanh.pop %v4075
    %v4078 = vmul.f32 %v4071, %v3998
    %v4079 = vmul.f32 %v4071, %v4077
    %4081 = vrot.lane.b32.xlu0 %v4079, 64
    %v4082 = vpop.permute.xlu0 %4081
    %v4084 = vadd.f32 %v4078, %v4082
    %v4085 = vtanh.pop %v4084
    %v4087 = vrot.slane %v4071, 2
    %4090 = vrot.lane.b32.xlu0 %v4085, 64
    %v4091 = vpop.permute.xlu0 %4090
    %v4093 = vmul.f32 %v4087, %v4091
    %4094 = vst.msk [vmem:[%s2705] sm:$0x3] %vm2700, %v4093
    %v4095 = vpack.c.bf16 %v4093, %v4093
    %v4097 = vsel %vm2567, %v4095, 0
    %4099 = vmatprep.subr.bf16.mxu0 %v3912
    %4100 = vmatpush1.bf16.msra.mxu0 %v3911
    %4101 = vmatprep.subr.bf16.mxu0 %v3914
    %4102 = vmatpush1.bf16.msra.mxu0 %v3913
    %4103 = vmatprep.subr.bf16.mxu0 %v3916
    %4104 = vmatpush1.bf16.msra.mxu0 %v3915
    %4105 = vmatprep.subr.bf16.mxu0 %v3918
    %4106 = vmatpush1.bf16.msra.mxu0 %v3917
    %4107 = vmatprep.subr.bf16.mxu0 0
    %4108 = vmatpush1.bf16.msra.mxu0 0
    %4109 = vmatprep.subr.bf16.mxu0 0
    %4110 = vmatpush1.bf16.msra.mxu0 0
    %4111 = vmatprep.subr.bf16.mxu0 0
    %4112 = vmatpush1.bf16.msra.mxu0 0
    %4113 = vmatprep.subr.bf16.mxu0 0
    %4114 = vmatpush1.bf16.msra.mxu0 0
    %4115 = vmatprep.subr.bf16.mxu0 0
    %4116 = vmatpush1.bf16.msra.mxu0 0
    %4117 = vmatprep.subr.bf16.mxu0 0
    %4118 = vmatpush1.bf16.msra.mxu0 0
    %4119 = vmatprep.subr.bf16.mxu0 0
    %4120 = vmatpush1.bf16.msra.mxu0 0
    %4121 = vmatprep.subr.bf16.mxu0 0
    %4122 = vmatpush1.bf16.msra.mxu0 0
    %4123 = vmatprep.subr.bf16.mxu0 0
    %4124 = vmatpush1.bf16.msra.mxu0 0
    %4125 = vmatprep.subr.bf16.mxu0 0
    %4126 = vmatpush1.bf16.msra.mxu0 0
    %4127 = vmatprep.subr.bf16.mxu0 0
    %4128 = vmatpush1.bf16.msra.mxu0 0
    %4129 = vmatprep.subr.bf16.mxu0 0
    %4130 = vmatpush1.bf16.msra.mxu0 0
    %4131 = vmatprep.mubr.bf16.mxu0 0
    %4132 = vmatmul.mubr.bf16.gmra.mrb[0].mxu0 %v4097
    %v4133 = vpop.f32.mrb[0].mxu0
    %v4134 = vadd.f32 0.0, %v4133
    %v4135 = vpop.f32.mrb[0].mxu0
    %v4136 = vadd.f32 0.0, %v4135
    %v4137 = vpop.f32.mrb[0].mxu0
    %v4138 = vpop.f32.mrb[0].mxu0
    %4139 = vdwg.mxu0
    %v4142 = vcombine.low %v4134, %v4136
    %v4144 = vunpack.c.l.s4 1983009808
    %v4145 = vunpack.c.0.s8 %v4144
    %v4146 = vlaneseq
    %v4147 = vshrl.u32 %v4146, 7
    %v4148 = vsub.s32 %v4145, %v4147
    %v4149 = vrot.slane %v4142, %v4148
    %v4151 = vadd.f32 %v3858, %v4149
    %v4152 = vxor.u32 %v4151, 2147483648
    %v4153 = vmul.f32 %v4152, 1.442695
    %v4154 = vpow.pop %v4153
    %v4155 = vadd.f32 %v4154, 1.0
    %v4156 = vrcp.pop %v4155
    %v4157 = vmul.f32 1.0, %v4156
    %4159 = vrot.lane.b32.xlu0 %v4151, 64
    %v4160 = vpop.permute.xlu0 %4159
    %v4161 = vrot.slane %v4160, 2
    %v4163 = vtanh.pop %v4161
    %v4164 = vmul.f32 %v4157, %v4084
    %v4165 = vmul.f32 %v4157, %v4163
    %4167 = vrot.lane.b32.xlu0 %v4165, 64
    %v4168 = vpop.permute.xlu0 %4167
    %v4170 = vadd.f32 %v4164, %v4168
    %v4171 = vtanh.pop %v4170
    %v4173 = vrot.slane %v4157, 2
    %4176 = vrot.lane.b32.xlu0 %v4171, 64
    %v4177 = vpop.permute.xlu0 %4176
    %v4179 = vmul.f32 %v4173, %v4177
    %4180 = vst.msk [vmem:[%s2711] sm:$0x3] %vm2700, %v4179
    %v4181 = vpack.c.bf16 %v4179, %v4179
    %v4183 = vsel %vm2567, %v4181, 0
    %4185 = vmatprep.subr.bf16.mxu0 %v3912
    %4186 = vmatpush1.bf16.msra.mxu0 %v3911
    %4187 = vmatprep.subr.bf16.mxu0 %v3914
    %4188 = vmatpush1.bf16.msra.mxu0 %v3913
    %4189 = vmatprep.subr.bf16.mxu0 %v3916
    %4190 = vmatpush1.bf16.msra.mxu0 %v3915
    %4191 = vmatprep.subr.bf16.mxu0 %v3918
    %4192 = vmatpush1.bf16.msra.mxu0 %v3917
    %4193 = vmatprep.subr.bf16.mxu0 0
    %4194 = vmatpush1.bf16.msra.mxu0 0
    %4195 = vmatprep.subr.bf16.mxu0 0
    %4196 = vmatpush1.bf16.msra.mxu0 0
    %4197 = vmatprep.subr.bf16.mxu0 0
    %4198 = vmatpush1.bf16.msra.mxu0 0
    %4199 = vmatprep.subr.bf16.mxu0 0
    %4200 = vmatpush1.bf16.msra.mxu0 0
    %4201 = vmatprep.subr.bf16.mxu0 0
    %4202 = vmatpush1.bf16.msra.mxu0 0
    %4203 = vmatprep.subr.bf16.mxu0 0
    %4204 = vmatpush1.bf16.msra.mxu0 0
    %4205 = vmatprep.subr.bf16.mxu0 0
    %4206 = vmatpush1.bf16.msra.mxu0 0
    %4207 = vmatprep.subr.bf16.mxu0 0
    %4208 = vmatpush1.bf16.msra.mxu0 0
    %4209 = vmatprep.subr.bf16.mxu0 0
    %4210 = vmatpush1.bf16.msra.mxu0 0
    %4211 = vmatprep.subr.bf16.mxu0 0
    %4212 = vmatpush1.bf16.msra.mxu0 0
    %4213 = vmatprep.subr.bf16.mxu0 0
    %4214 = vmatpush1.bf16.msra.mxu0 0
    %4215 = vmatprep.subr.bf16.mxu0 0
    %4216 = vmatpush1.bf16.msra.mxu0 0
    %4217 = vmatprep.mubr.bf16.mxu0 0
    %4218 = vmatmul.mubr.bf16.gmra.mrb[0].mxu0 %v4183
    %v4219 = vpop.f32.mrb[0].mxu0
    %v4220 = vadd.f32 0.0, %v4219
    %v4221 = vpop.f32.mrb[0].mxu0
    %v4222 = vadd.f32 0.0, %v4221
    %v4223 = vpop.f32.mrb[0].mxu0
    %v4224 = vpop.f32.mrb[0].mxu0
    %4225 = vdwg.mxu0
    %v4228 = vcombine.low %v4220, %v4222
    %v4230 = vunpack.c.l.s4 1983009808
    %v4231 = vunpack.c.0.s8 %v4230
    %v4232 = vlaneseq
    %v4233 = vshrl.u32 %v4232, 7
    %v4234 = vsub.s32 %v4231, %v4233
    %v4235 = vrot.slane %v4228, %v4234
    %v4237 = vadd.f32 %v3860, %v4235
    %v4238 = vxor.u32 %v4237, 2147483648
    %v4239 = vmul.f32 %v4238, 1.442695
    %v4240 = vpow.pop %v4239
    %v4241 = vadd.f32 %v4240, 1.0
    %v4242 = vrcp.pop %v4241
    %v4243 = vmul.f32 1.0, %v4242
    %4245 = vrot.lane.b32.xlu0 %v4237, 64
    %v4246 = vpop.permute.xlu0 %4245
    %v4247 = vrot.slane %v4246, 2
    %v4249 = vtanh.pop %v4247
    %v4250 = vmul.f32 %v4243, %v4170
    %v4251 = vmul.f32 %v4243, %v4249
    %4253 = vrot.lane.b32.xlu0 %v4251, 64
    %v4254 = vpop.permute.xlu0 %4253
    %v4256 = vadd.f32 %v4250, %v4254
    %v4257 = vtanh.pop %v4256
    %v4259 = vrot.slane %v4243, 2
    %4262 = vrot.lane.b32.xlu0 %v4257, 64
    %v4263 = vpop.permute.xlu0 %4262
    %v4265 = vmul.f32 %v4259, %v4263
    %4266 = vst.msk [vmem:[%s2716] sm:$0x3] %vm2700, %v4265
    %v4267 = vpack.c.bf16 %v4265, %v4265
    %v4269 = vsel %vm2567, %v4267, 0
    %4271 = vmatprep.subr.bf16.mxu0 %v3912
    %4272 = vmatpush1.bf16.msra.mxu0 %v3911
    %4273 = vmatprep.subr.bf16.mxu0 %v3914
    %4274 = vmatpush1.bf16.msra.mxu0 %v3913
    %4275 = vmatprep.subr.bf16.mxu0 %v3916
    %4276 = vmatpush1.bf16.msra.mxu0 %v3915
    %4277 = vmatprep.subr.bf16.mxu0 %v3918
    %4278 = vmatpush1.bf16.msra.mxu0 %v3917
    %4279 = vmatprep.subr.bf16.mxu0 0
    %4280 = vmatpush1.bf16.msra.mxu0 0
    %4281 = vmatprep.subr.bf16.mxu0 0
    %4282 = vmatpush1.bf16.msra.mxu0 0
    %4283 = vmatprep.subr.bf16.mxu0 0
    %4284 = vmatpush1.bf16.msra.mxu0 0
    %4285 = vmatprep.subr.bf16.mxu0 0
    %4286 = vmatpush1.bf16.msra.mxu0 0
    %4287 = vmatprep.subr.bf16.mxu0 0
    %4288 = vmatpush1.bf16.msra.mxu0 0
    %4289 = vmatprep.subr.bf16.mxu0 0
    %4290 = vmatpush1.bf16.msra.mxu0 0
    %4291 = vmatprep.subr.bf16.mxu0 0
    %4292 = vmatpush1.bf16.msra.mxu0 0
    %4293 = vmatprep.subr.bf16.mxu0 0
    %4294 = vmatpush1.bf16.msra.mxu0 0
    %4295 = vmatprep.subr.bf16.mxu0 0
    %4296 = vmatpush1.bf16.msra.mxu0 0
    %4297 = vmatprep.subr.bf16.mxu0 0
    %4298 = vmatpush1.bf16.msra.mxu0 0
    %4299 = vmatprep.subr.bf16.mxu0 0
    %4300 = vmatpush1.bf16.msra.mxu0 0
    %4301 = vmatprep.subr.bf16.mxu0 0
    %4302 = vmatpush1.bf16.msra.mxu0 0
    %4303 = vmatprep.mubr.bf16.mxu0 0
    %4304 = vmatmul.mubr.bf16.gmra.mrb[0].mxu0 %v4269
    %v4305 = vpop.f32.mrb[0].mxu0
    %v4306 = vadd.f32 0.0, %v4305
    %v4307 = vpop.f32.mrb[0].mxu0
    %v4308 = vadd.f32 0.0, %v4307
    %v4309 = vpop.f32.mrb[0].mxu0
    %v4310 = vpop.f32.mrb[0].mxu0
    %4311 = vdwg.mxu0
    %v4314 = vcombine.low %v4306, %v4308
    %v4316 = vunpack.c.l.s4 1983009808
    %v4317 = vunpack.c.0.s8 %v4316
    %v4318 = vlaneseq
    %v4319 = vshrl.u32 %v4318, 7
    %v4320 = vsub.s32 %v4317, %v4319
    %v4321 = vrot.slane %v4314, %v4320
    %v4323 = vadd.f32 %v3869, %v4321
    %v4324 = vxor.u32 %v4323, 2147483648
    %v4325 = vmul.f32 %v4324, 1.442695
    %v4326 = vpow.pop %v4325
    %v4327 = vadd.f32 %v4326, 1.0
    %v4328 = vrcp.pop %v4327
    %v4329 = vmul.f32 1.0, %v4328
    %4331 = vrot.lane.b32.xlu0 %v4323, 64
    %v4332 = vpop.permute.xlu0 %4331
    %v4333 = vrot.slane %v4332, 2
    %v4335 = vtanh.pop %v4333
    %v4336 = vmul.f32 %v4329, %v4256
    %v4337 = vmul.f32 %v4329, %v4335
    %4339 = vrot.lane.b32.xlu0 %v4337, 64
    %v4340 = vpop.permute.xlu0 %4339
    %v4342 = vadd.f32 %v4336, %v4340
    %v4343 = vtanh.pop %v4342
    %v4345 = vrot.slane %v4329, 2
    %4348 = vrot.lane.b32.xlu0 %v4343, 64
    %v4349 = vpop.permute.xlu0 %4348
    %v4351 = vmul.f32 %v4345, %v4349
    %4352 = vst.msk [vmem:[%s2722] sm:$0x3] %vm2700, %v4351
    %v4353 = vpack.c.bf16 %v4351, %v4351
    %v4355 = vsel %vm2567, %v4353, 0
    %4357 = vmatprep.subr.bf16.mxu0 %v3912
    %4358 = vmatpush1.bf16.msra.mxu0 %v3911
    %4359 = vmatprep.subr.bf16.mxu0 %v3914
    %4360 = vmatpush1.bf16.msra.mxu0 %v3913
    %4361 = vmatprep.subr.bf16.mxu0 %v3916
    %4362 = vmatpush1.bf16.msra.mxu0 %v3915
    %4363 = vmatprep.subr.bf16.mxu0 %v3918
    %4364 = vmatpush1.bf16.msra.mxu0 %v3917
    %4365 = vmatprep.subr.bf16.mxu0 0
    %4366 = vmatpush1.bf16.msra.mxu0 0
    %4367 = vmatprep.subr.bf16.mxu0 0
    %4368 = vmatpush1.bf16.msra.mxu0 0
    %4369 = vmatprep.subr.bf16.mxu0 0
    %4370 = vmatpush1.bf16.msra.mxu0 0
    %4371 = vmatprep.subr.bf16.mxu0 0
    %4372 = vmatpush1.bf16.msra.mxu0 0
    %4373 = vmatprep.subr.bf16.mxu0 0
    %4374 = vmatpush1.bf16.msra.mxu0 0
    %4375 = vmatprep.subr.bf16.mxu0 0
    %4376 = vmatpush1.bf16.msra.mxu0 0
    %4377 = vmatprep.subr.bf16.mxu0 0
    %4378 = vmatpush1.bf16.msra.mxu0 0
    %4379 = vmatprep.subr.bf16.mxu0 0
    %4380 = vmatpush1.bf16.msra.mxu0 0
    %4381 = vmatprep.subr.bf16.mxu0 0
    %4382 = vmatpush1.bf16.msra.mxu0 0
    %4383 = vmatprep.subr.bf16.mxu0 0
    %4384 = vmatpush1.bf16.msra.mxu0 0
    %4385 = vmatprep.subr.bf16.mxu0 0
    %4386 = vmatpush1.bf16.msra.mxu0 0
    %4387 = vmatprep.subr.bf16.mxu0 0
    %4388 = vmatpush1.bf16.msra.mxu0 0
    %4389 = vmatprep.mubr.bf16.mxu0 0
    %4390 = vmatmul.mubr.bf16.gmra.mrb[0].mxu0 %v4355
    %v4391 = vpop.f32.mrb[0].mxu0
    %v4392 = vadd.f32 0.0, %v4391
    %v4393 = vpop.f32.mrb[0].mxu0
    %v4394 = vadd.f32 0.0, %v4393
    %v4395 = vpop.f32.mrb[0].mxu0
    %v4396 = vpop.f32.mrb[0].mxu0
    %4397 = vdwg.mxu0
    %v4400 = vcombine.low %v4392, %v4394
    %v4402 = vunpack.c.l.s4 1983009808
    %v4403 = vunpack.c.0.s8 %v4402
    %v4404 = vlaneseq
    %v4405 = vshrl.u32 %v4404, 7
    %v4406 = vsub.s32 %v4403, %v4405
    %v4407 = vrot.slane %v4400, %v4406
    %v4409 = vadd.f32 %v3877, %v4407
    %v4410 = vxor.u32 %v4409, 2147483648
    %v4411 = vmul.f32 %v4410, 1.442695
    %v4412 = vpow.pop %v4411
    %v4413 = vadd.f32 %v4412, 1.0
    %v4414 = vrcp.pop %v4413
    %v4415 = vmul.f32 1.0, %v4414
    %4417 = vrot.lane.b32.xlu0 %v4409, 64
    %v4418 = vpop.permute.xlu0 %4417
    %v4419 = vrot.slane %v4418, 2
    %v4421 = vtanh.pop %v4419
    %v4422 = vmul.f32 %v4415, %v4342
    %v4423 = vmul.f32 %v4415, %v4421
    %4425 = vrot.lane.b32.xlu0 %v4423, 64
    %v4426 = vpop.permute.xlu0 %4425
    %v4428 = vadd.f32 %v4422, %v4426
    %v4429 = vtanh.pop %v4428
    %v4431 = vrot.slane %v4415, 2
    %4434 = vrot.lane.b32.xlu0 %v4429, 64
    %v4435 = vpop.permute.xlu0 %4434
    %v4437 = vmul.f32 %v4431, %v4435
    %4438 = vst.msk [vmem:[%s2728] sm:$0x3] %vm2700, %v4437
    %v4439 = vpack.c.bf16 %v4437, %v4437
    %v4441 = vsel %vm2567, %v4439, 0
    %4443 = vmatprep.subr.bf16.mxu0 %v3912
    %4444 = vmatpush1.bf16.msra.mxu0 %v3911
    %4445 = vmatprep.subr.bf16.mxu0 %v3914
    %4446 = vmatpush1.bf16.msra.mxu0 %v3913
    %4447 = vmatprep.subr.bf16.mxu0 %v3916
    %4448 = vmatpush1.bf16.msra.mxu0 %v3915
    %4449 = vmatprep.subr.bf16.mxu0 %v3918
    %4450 = vmatpush1.bf16.msra.mxu0 %v3917
    %4451 = vmatprep.subr.bf16.mxu0 0
    %4452 = vmatpush1.bf16.msra.mxu0 0
    %4453 = vmatprep.subr.bf16.mxu0 0
    %4454 = vmatpush1.bf16.msra.mxu0 0
    %4455 = vmatprep.subr.bf16.mxu0 0
    %4456 = vmatpush1.bf16.msra.mxu0 0
    %4457 = vmatprep.subr.bf16.mxu0 0
    %4458 = vmatpush1.bf16.msra.mxu0 0
    %4459 = vmatprep.subr.bf16.mxu0 0
    %4460 = vmatpush1.bf16.msra.mxu0 0
    %4461 = vmatprep.subr.bf16.mxu0 0
    %4462 = vmatpush1.bf16.msra.mxu0 0
    %4463 = vmatprep.subr.bf16.mxu0 0
    %4464 = vmatpush1.bf16.msra.mxu0 0
    %4465 = vmatprep.subr.bf16.mxu0 0
    %4466 = vmatpush1.bf16.msra.mxu0 0
    %4467 = vmatprep.subr.bf16.mxu0 0
    %4468 = vmatpush1.bf16.msra.mxu0 0
    %4469 = vmatprep.subr.bf16.mxu0 0
    %4470 = vmatpush1.bf16.msra.mxu0 0
    %4471 = vmatprep.subr.bf16.mxu0 0
    %4472 = vmatpush1.bf16.msra.mxu0 0
    %4473 = vmatprep.subr.bf16.mxu0 0
    %4474 = vmatpush1.bf16.msra.mxu0 0
    %4475 = vmatprep.mubr.bf16.mxu0 0
    %4476 = vmatmul.mubr.bf16.gmra.mrb[0].mxu0 %v4441
    %v4477 = vpop.f32.mrb[0].mxu0
    %v4478 = vadd.f32 0.0, %v4477
    %v4479 = vpop.f32.mrb[0].mxu0
    %v4480 = vadd.f32 0.0, %v4479
    %v4481 = vpop.f32.mrb[0].mxu0
    %v4482 = vpop.f32.mrb[0].mxu0
    %4483 = vdwg.mxu0
    %v4486 = vcombine.low %v4478, %v4480
    %v4488 = vunpack.c.l.s4 1983009808
    %v4489 = vunpack.c.0.s8 %v4488
    %v4490 = vlaneseq
    %v4491 = vshrl.u32 %v4490, 7
    %v4492 = vsub.s32 %v4489, %v4491
    %v4493 = vrot.slane %v4486, %v4492
    %v4495 = vadd.f32 %v3876, %v4493
    %v4496 = vxor.u32 %v4495, 2147483648
    %v4497 = vmul.f32 %v4496, 1.442695
    %v4498 = vpow.pop %v4497
    %v4499 = vadd.f32 %v4498, 1.0
    %v4500 = vrcp.pop %v4499
    %v4501 = vmul.f32 1.0, %v4500
    %4503 = vrot.lane.b32.xlu0 %v4495, 64
    %v4504 = vpop.permute.xlu0 %4503
    %v4505 = vrot.slane %v4504, 2
    %v4507 = vtanh.pop %v4505
    %v4508 = vmul.f32 %v4501, %v4428
    %v4509 = vmul.f32 %v4501, %v4507
    %4511 = vrot.lane.b32.xlu0 %v4509, 64
    %v4512 = vpop.permute.xlu0 %4511
    %v4514 = vadd.f32 %v4508, %v4512
    %v4515 = vtanh.pop %v4514
    %v4517 = vrot.slane %v4501, 2
    %4520 = vrot.lane.b32.xlu0 %v4515, 64
    %v4521 = vpop.permute.xlu0 %4520
    %v4523 = vmul.f32 %v4517, %v4521
    %4524 = vst.msk [vmem:[%s2734] sm:$0x3] %vm2700, %v4523
    %v4525 = vpack.c.bf16 %v4523, %v4523
    %v4527 = vsel %vm2567, %v4525, 0
    %4529 = vmatprep.subr.bf16.mxu0 %v3912
    %4530 = vmatpush1.bf16.msra.mxu0 %v3911
    %4531 = vmatprep.subr.bf16.mxu0 %v3914
    %4532 = vmatpush1.bf16.msra.mxu0 %v3913
    %4533 = vmatprep.subr.bf16.mxu0 %v3916
    %4534 = vmatpush1.bf16.msra.mxu0 %v3915
    %4535 = vmatprep.subr.bf16.mxu0 %v3918
    %4536 = vmatpush1.bf16.msra.mxu0 %v3917
    %4537 = vmatprep.subr.bf16.mxu0 0
    %4538 = vmatpush1.bf16.msra.mxu0 0
    %4539 = vmatprep.subr.bf16.mxu0 0
    %4540 = vmatpush1.bf16.msra.mxu0 0
    %4541 = vmatprep.subr.bf16.mxu0 0
    %4542 = vmatpush1.bf16.msra.mxu0 0
    %4543 = vmatprep.subr.bf16.mxu0 0
    %4544 = vmatpush1.bf16.msra.mxu0 0
    %4545 = vmatprep.subr.bf16.mxu0 0
    %4546 = vmatpush1.bf16.msra.mxu0 0
    %4547 = vmatprep.subr.bf16.mxu0 0
    %4548 = vmatpush1.bf16.msra.mxu0 0
    %4549 = vmatprep.subr.bf16.mxu0 0
    %4550 = vmatpush1.bf16.msra.mxu0 0
    %4551 = vmatprep.subr.bf16.mxu0 0
    %4552 = vmatpush1.bf16.msra.mxu0 0
    %4553 = vmatprep.subr.bf16.mxu0 0
    %4554 = vmatpush1.bf16.msra.mxu0 0
    %4555 = vmatprep.subr.bf16.mxu0 0
    %4556 = vmatpush1.bf16.msra.mxu0 0
    %4557 = vmatprep.subr.bf16.mxu0 0
    %4558 = vmatpush1.bf16.msra.mxu0 0
    %4559 = vmatprep.subr.bf16.mxu0 0
    %4560 = vmatpush1.bf16.msra.mxu0 0
    %4561 = vmatprep.mubr.bf16.mxu0 0
    %4562 = vmatmul.mubr.bf16.gmra.mrb[0].mxu0 %v4527
    %v4563 = vpop.f32.mrb[0].mxu0
    %v4564 = vadd.f32 0.0, %v4563
    %v4565 = vpop.f32.mrb[0].mxu0
    %v4566 = vadd.f32 0.0, %v4565
    %v4567 = vpop.f32.mrb[0].mxu0
    %v4568 = vpop.f32.mrb[0].mxu0
    %4569 = vdwg.mxu0
    %v4572 = vcombine.low %v4564, %v4566
    %v4574 = vunpack.c.l.s4 1983009808
    %v4575 = vunpack.c.0.s8 %v4574
    %v4576 = vlaneseq
    %v4577 = vshrl.u32 %v4576, 7
    %v4578 = vsub.s32 %v4575, %v4577
    %v4579 = vrot.slane %v4572, %v4578
    %v4581 = vadd.f32 %v3878, %v4579
    %v4582 = vxor.u32 %v4581, 2147483648
    %v4583 = vmul.f32 %v4582, 1.442695
    %v4584 = vpow.pop %v4583
    %v4585 = vadd.f32 %v4584, 1.0
    %v4586 = vrcp.pop %v4585
    %v4587 = vmul.f32 1.0, %v4586
    %4589 = vrot.lane.b32.xlu0 %v4581, 64
    %v4590 = vpop.permute.xlu0 %4589
    %v4591 = vrot.slane %v4590, 2
    %v4593 = vtanh.pop %v4591
    %v4594 = vmul.f32 %v4587, %v4514
    %v4595 = vmul.f32 %v4587, %v4593
    %4597 = vrot.lane.b32.xlu0 %v4595, 64
    %v4598 = vpop.permute.xlu0 %4597
    %v4600 = vadd.f32 %v4594, %v4598
    %v4601 = vtanh.pop %v4600
    %v4603 = vrot.slane %v4587, 2
    %4606 = vrot.lane.b32.xlu0 %v4601, 64
    %v4607 = vpop.permute.xlu0 %4606
    %v4609 = vmul.f32 %v4603, %v4607
    %4610 = vst.msk [vmem:[%s2739] sm:$0x3] %vm2700, %v4609
    %v4611 = vld [vmem:[#allocation2] sm:$0x3]
    %v4612 = vld [vmem:[#allocation2 + $0x2] sm:$0x3]
    %v4613 = vld [vmem:[#allocation2 + $0x4] sm:$0x3]
    %v4614 = vld [vmem:[#allocation2 + $0x6] sm:$0x3]
    %v4615 = vld [vmem:[#allocation2 + $0x8] sm:$0x3]
    %v4616 = vld [vmem:[#allocation2 + $0xa] sm:$0x3]
    %v4617 = vld [vmem:[#allocation2 + $0xc] sm:$0x3]
    %v4618 = vld [vmem:[#allocation2 + $0xe] sm:$0x3]
    %v4619 = vmax.f32 %v4611, 0.0
    %v4620 = vmax.f32 %v4612, 0.0
    %v4621 = vmax.f32 %v4613, 0.0
    %v4622 = vmax.f32 %v4614, 0.0
    %v4623 = vmax.f32 %v4615, 0.0
    %v4624 = vmax.f32 %v4616, 0.0
    %v4625 = vmax.f32 %v4617, 0.0
    %v4626 = vmax.f32 %v4618, 0.0
    %v4627 = vld [vmem:[%s2 + $0x210] ss:$0 sm:$0xff]
    %v4628 = vmul.f32 %v4619, %v4627
    %v4629 = vmul.f32 %v4620, %v4627
    %v4630 = vmul.f32 %v4621, %v4627
    %v4631 = vmul.f32 %v4622, %v4627
    %v4632 = vmul.f32 %v4623, %v4627
    %v4633 = vmul.f32 %v4624, %v4627
    %v4634 = vmul.f32 %v4625, %v4627
    %v4635 = vmul.f32 %v4626, %v4627
    %v4636 = vsel %vm2700, %v4628, 0.0
    %4637 = vadd.xlane.f32.xlu0 %v4636
    %v4638 = vpop.xlane.xlu0 %4637
    %v4639 = vsel %vm2700, %v4629, 0.0
    %4640 = vadd.xlane.f32.xlu0 %v4639
    %v4641 = vpop.xlane.xlu0 %4640
    %v4642 = vsel %vm2700, %v4630, 0.0
    %4643 = vadd.xlane.f32.xlu0 %v4642
    %v4644 = vpop.xlane.xlu0 %4643
    %v4645 = vsel %vm2700, %v4631, 0.0
    %4646 = vadd.xlane.f32.xlu0 %v4645
    %v4647 = vpop.xlane.xlu0 %4646
    %v4648 = vsel %vm2700, %v4632, 0.0
    %4649 = vadd.xlane.f32.xlu0 %v4648
    %v4650 = vpop.xlane.xlu0 %4649
    %v4651 = vsel %vm2700, %v4633, 0.0
    %4652 = vadd.xlane.f32.xlu0 %v4651
    %v4653 = vpop.xlane.xlu0 %4652
    %v4654 = vsel %vm2700, %v4634, 0.0
    %4655 = vadd.xlane.f32.xlu0 %v4654
    %v4656 = vpop.xlane.xlu0 %4655
    %v4657 = vsel %vm2700, %v4635, 0.0
    %4658 = vadd.xlane.f32.xlu0 %v4657
    %v4659 = vpop.xlane.xlu0 %4658
    %v4660 = vld [vmem:[%s2 + $0x228] ss:$0 sm:$0xff]
    %4662 = vset.pattern.permute.xlu0 0
    %4663 = vperm.xlu0 %4662, %v4660
    %v4664 = vpop.permute.xlu0 %4663
    %v4666 = vadd.f32 %v4638, %v4664
    %v4667 = vadd.f32 %v4641, %v4664
    %v4668 = vadd.f32 %v4644, %v4664
    %v4669 = vadd.f32 %v4647, %v4664
    %v4670 = vadd.f32 %v4650, %v4664
    %v4671 = vadd.f32 %v4653, %v4664
    %v4672 = vadd.f32 %v4656, %v4664
    %v4673 = vadd.f32 %v4659, %v4664
    %v4674 = vxor.u32 %v4666, 2147483648
    %v4675 = vxor.u32 %v4667, 2147483648
    %v4676 = vxor.u32 %v4668, 2147483648
    %v4677 = vxor.u32 %v4669, 2147483648
    %v4678 = vxor.u32 %v4670, 2147483648
    %v4679 = vxor.u32 %v4671, 2147483648
    %v4680 = vxor.u32 %v4672, 2147483648
    %v4681 = vxor.u32 %v4673, 2147483648
    %v4682 = vmul.f32 %v4674, 1.442695
    %v4683 = vpow.pop %v4682
    %v4684 = vmul.f32 %v4675, 1.442695
    %v4685 = vpow.pop %v4684
    %v4686 = vmul.f32 %v4676, 1.442695
    %v4687 = vpow.pop %v4686
    %v4688 = vmul.f32 %v4677, 1.442695
    %v4689 = vpow.pop %v4688
    %v4690 = vmul.f32 %v4678, 1.442695
    %v4691 = vpow.pop %v4690
    %v4692 = vmul.f32 %v4679, 1.442695
    %v4693 = vpow.pop %v4692
    %v4694 = vmul.f32 %v4680, 1.442695
    %v4695 = vpow.pop %v4694
    %v4696 = vmul.f32 %v4681, 1.442695
    %v4697 = vpow.pop %v4696
    %v4698 = vadd.f32 %v4683, 1.0
    %v4699 = vadd.f32 %v4685, 1.0
    %v4700 = vadd.f32 %v4687, 1.0
    %v4701 = vadd.f32 %v4689, 1.0
    %v4702 = vadd.f32 %v4691, 1.0
    %v4703 = vadd.f32 %v4693, 1.0
    %v4704 = vadd.f32 %v4695, 1.0
    %v4705 = vadd.f32 %v4697, 1.0
    %v4706 = vrcp.pop %v4698
    %v4707 = vmul.f32 1.0, %v4706
    %v4708 = vrcp.pop %v4699
    %v4709 = vmul.f32 1.0, %v4708
    %v4710 = vrcp.pop %v4700
    %v4711 = vmul.f32 1.0, %v4710
    %v4712 = vrcp.pop %v4701
    %v4713 = vmul.f32 1.0, %v4712
    %v4714 = vrcp.pop %v4702
    %v4715 = vmul.f32 1.0, %v4714
    %v4716 = vrcp.pop %v4703
    %v4717 = vmul.f32 1.0, %v4716
    %v4718 = vrcp.pop %v4704
    %v4719 = vmul.f32 1.0, %v4718
    %v4720 = vrcp.pop %v4705
    %v4721 = vmul.f32 1.0, %v4720
    %v4730 = vlaneseq
    %v4731 = vand.u32 %v4730, 127
    %v4732 = vlaneseq
    %v4733 = vshrl.u32 %v4732, 7
    %v4734 = vsub.s32 %v4731, %v4733
    %v4735 = vrot.slane %v4707, %v4734
    %v4736 = vlaneseq
    %v4737 = vshrl.u32 %v4736, 7
    %v4738 = vsub.s32 %v4731, %v4737
    %v4739 = vrot.slane %v4709, %v4738
    %v4740 = vlaneseq
    %v4741 = vshrl.u32 %v4740, 7
    %v4742 = vsub.s32 %v4731, %v4741
    %v4743 = vrot.slane %v4711, %v4742
    %v4744 = vlaneseq
    %v4745 = vshrl.u32 %v4744, 7
    %v4746 = vsub.s32 %v4731, %v4745
    %v4747 = vrot.slane %v4713, %v4746
    %v4748 = vlaneseq
    %v4749 = vshrl.u32 %v4748, 7
    %v4750 = vsub.s32 %v4731, %v4749
    %v4751 = vrot.slane %v4715, %v4750
    %v4752 = vlaneseq
    %v4753 = vshrl.u32 %v4752, 7
    %v4754 = vsub.s32 %v4731, %v4753
    %v4755 = vrot.slane %v4717, %v4754
    %v4756 = vlaneseq
    %v4757 = vshrl.u32 %v4756, 7
    %v4758 = vsub.s32 %v4731, %v4757
    %v4759 = vrot.slane %v4719, %v4758
    %v4760 = vlaneseq
    %v4761 = vshrl.u32 %v4760, 7
    %v4762 = vsub.s32 %v4731, %v4761
    %v4763 = vrot.slane %v4721, %v4762
    %v4764 = vsel %vm2697, %v4739, %v4735
    %v4765 = vsel %vm2702, %v4743, %v4764
    %v4766 = vsel %vm2708, %v4747, %v4765
    %v4767 = vsel %vm1411, %v4751, %v4766
    %v4768 = vsel %vm2719, %v4755, %v4767
    %v4769 = vsel %vm2725, %v4759, %v4768
    %v4770 = vsel %vm2731, %v4763, %v4769
    %4772 = vxpose.xlu0.b32.start [1/16] %v4770, 128
    %4773 = vxpose.xlu0.b32.cont [2/16] 0.0, 128
    %4774 = vxpose.xlu0.b32.cont [3/16] 0.0, 128
    %4775 = vxpose.xlu0.b32.cont [4/16] 0.0, 128
    %4776 = vxpose.xlu0.b32.cont [5/16] 0.0, 128
    %4777 = vxpose.xlu0.b32.cont [6/16] 0.0, 128
    %4778 = vxpose.xlu0.b32.cont [7/16] 0.0, 128
    %4779 = vxpose.xlu0.b32.cont [8/16] 0.0, 128
    %4780 = vxpose.xlu0.b32.cont [9/16] 0.0, 128
    %4781 = vxpose.xlu0.b32.cont [10/16] 0.0, 128
    %4782 = vxpose.xlu0.b32.cont [11/16] 0.0, 128
    %4783 = vxpose.xlu0.b32.cont [12/16] 0.0, 128
    %4784 = vxpose.xlu0.b32.cont [13/16] 0.0, 128
    %4785 = vxpose.xlu0.b32.cont [14/16] 0.0, 128
    %4786 = vxpose.xlu0.b32.cont [15/16] 0.0, 128
    %4787 = vxpose.xlu0.b32.end [16/16] 0.0, 128
    %v4788 = vpop.trf.xlu0
    %v4789 = vpop.trf.xlu0
    %v4790 = vpop.trf.xlu0
    %v4791 = vpop.trf.xlu0
    %v4792 = vpop.trf.xlu0
    %v4793 = vpop.trf.xlu0
    %v4794 = vpop.trf.xlu0
    %v4795 = vpop.trf.xlu0
    %v4796 = vpop.trf.xlu0
    %v4797 = vpop.trf.xlu0
    %v4798 = vpop.trf.xlu0
    %v4799 = vpop.trf.xlu0
    %v4800 = vpop.trf.xlu0
    %v4801 = vpop.trf.xlu0
    %v4802 = vpop.trf.xlu0
    %v4803 = vpop.trf.xlu0
    %vm4804 = vcmask 58368
    %4805 = vst.msk [vmem:[#allocation3] sm:$0x3] %vm4804, %v4788
    // Predicated region
    $region14: #{_lambda_.1} parent=1 // pred_check
      _
    $region15: #{_lambda_.1} parent=1 // pred_check_branch
      %4807 = sbr.rel (0) target = $region17
    $region16: #{_lambda_.1} parent=1 // pred_region
      %s4809 = ssub.s32 32, 32
      %4810 = vsyncadd [#allocation4], %s4809
      %s4812 = sshll.u32 [#allocation3], 4
      %s4813 = int_to_ptr.vmem [resolvable:$true] %s4812
      %4815 = dma.vmem_to_hbm [thread:$0]  %s4813, 32, %s3, [#allocation4]
    $region17: #{_lambda_.1} parent=1 // pred_fallthru
      _
    // Predicated region
    $region18: #{_lambda_.1} parent=1 // pred_check
      _
    $region19: #{_lambda_.1} parent=1 // pred_check_branch
      %4817 = sbr.rel (0) target = $region21
    $region20: #{_lambda_.1} parent=1 // pred_region
      %4818 = dma.done [#allocation4], 32
    $region21: #{_lambda_.1} parent=1 // pred_fallthru
      _
    %4819 = vsyncpa [#allocation4], 1

</llo_original>
